<compile_context>
chip_gen: v5e
topology: v5e:2x2
jax: 0.10.0
libtpu: 0.0.40
codegen_flags: <defaults>
</compile_context>

<pallas_src>
import jax
import jax.numpy as jnp
from jax.experimental import pallas as pl
from jax.experimental.pallas import tpu as pltpu

C_PAD = 128          # every feature dim padded to one lane-dense width
G_PAD_MIN = 8        # pooled-output rows padded to a sublane multiple
NEG_INF = -1e30      # finite "-inf" for masked log_softmax columns


# ----------------------------------------------------------------------------
# Helpers
# ----------------------------------------------------------------------------
def _round_up(x, m):
    return ((x + m - 1) // m) * m


def _vmem_capacity_bytes():
    try:
        return int(pltpu.get_tpu_info().vmem_capacity_bytes)
    except Exception:
        return 64 << 20  # conservative default (v7x per-core VMEM)


def _vmem_limit(nbytes, cap):
    # size the scoped-VMEM limit to the actual buffers (+headroom), below capacity
    return int(min(max(nbytes + (4 << 20), 16 << 20), int(cap * 0.9)))


# ----------------------------------------------------------------------------
# Fused resident-L kernel: all 3 layers + (optional) pool + log_softmax.
# No grid -> every operand lives whole in VMEM; L is DMA'd from HBM once.
# ----------------------------------------------------------------------------
def _make_fused_kernel(K, out_cols, pool):
    def kernel(*refs):
        if pool:
            (l_ref, x_ref, w1_ref, b1_ref, w2_ref, b2_ref, w3_ref, b3_ref,
             p_ref, o_ref) = refs
        else:
            (l_ref, x_ref, w1_ref, b1_ref, w2_ref, b2_ref, w3_ref, b3_ref,
             o_ref) = refs
            p_ref = None

        L = l_ref[...]  # bf16 [N, N], resident for the whole network

        def layer(h_in, w_ref, b_ref, relu):
            # h_in bf16 [N, C_PAD]; w_ref bf16 [K, C_PAD, C_PAD]; b_ref f32 [1, C_PAD]
            acc = jnp.dot(h_in, w_ref[0], preferred_element_type=jnp.float32)
            if K > 1:
                t_prev2 = h_in
                t_prev = jnp.dot(
                    L, h_in, preferred_element_type=jnp.float32
                ).astype(jnp.bfloat16)
                acc = acc + jnp.dot(t_prev, w_ref[1],
                                    preferred_element_type=jnp.float32)
                for k in range(2, K):
                    t_new = (
                        2.0 * jnp.dot(L, t_prev, preferred_element_type=jnp.float32)
                        - t_prev2.astype(jnp.float32)
                    ).astype(jnp.bfloat16)
                    acc = acc + jnp.dot(t_new, w_ref[k],
                                        preferred_element_type=jnp.float32)
                    t_prev2, t_prev = t_prev, t_new
            acc = acc + b_ref[...]
            if relu:
                acc = jnp.maximum(acc, 0.0)
            return acc.astype(jnp.bfloat16)

        h = x_ref[...]
        h = layer(h, w1_ref, b1_ref, True)
        h = layer(h, w2_ref, b2_ref, True)
        h = layer(h, w3_ref, b3_ref, False)          # bf16 [N, C_PAD]

        if pool:
            z = jnp.dot(p_ref[...], h.astype(jnp.float32),
                        preferred_element_type=jnp.float32)   # [G_pad, C_PAD]
        else:
            z = h.astype(jnp.float32)                          # [N, C_PAD]

        col = jax.lax.broadcasted_iota(jnp.int32, z.shape, 1)
        valid = col < out_cols
        z = jnp.where(valid, z, NEG_INF)
        m = jnp.max(z, axis=1, keepdims=True)
        e = jnp.where(valid, jnp.exp(z - m), 0.0)
        lse = jnp.log(jnp.sum(e, axis=1, keepdims=True))
        o_ref[...] = (z - m - lse).astype(o_ref.dtype)

    return kernel


def chebnet_fused(L, x_pad, params_pad, P, out_cols, pool, cap):
    n_pad = L.shape[0]
    (w1, b1), (w2, b2), (w3, b3) = params_pad
    K = w1.shape[0]
    out_rows = P.shape[0] if pool else n_pad
    inputs = [L, x_pad, w1, b1, w2, b2, w3, b3] + ([P] if pool else [])
    need = sum(int(a.size) * a.dtype.itemsize for a in inputs)
    need += out_rows * C_PAD * 4
    need += 4 * n_pad * C_PAD * 4          # in-kernel T / accumulator temporaries
    return pl.pallas_call(
        _make_fused_kernel(K, out_cols, pool),
        out_shape=jax.ShapeDtypeStruct((out_rows, C_PAD), jnp.float32),
        compiler_params=pltpu.CompilerParams(
            vmem_limit_bytes=_vmem_limit(need, cap)),
    )(*inputs)


# ----------------------------------------------------------------------------
# Streamed fallback (L too big for VMEM residency).
#   * H init kernel: H = X @ W_0 + b       (row panels, "parallel")
#   * step kernel:   T_k row panel = L[panel,:] @ T_{k-1}   (full contraction,
#                    no reduction axis), 2*..-T_{k-2} for k>=2, and
#                    H panel += T_k @ W_k in the same kernel (optional ReLU on
#                    the last step). T_k stored bf16, H kept f32.
# ----------------------------------------------------------------------------
def _make_h0_kernel(relu):
    def kernel(x_ref, w0_ref, b_ref, h_ref):
        h = jnp.dot(x_ref[...], w0_ref[...],
                    preferred_element_type=jnp.float32) + b_ref[...]
        if relu:
            h = jnp.maximum(h, 0.0)
        h_ref[...] = h
    return kernel


def _stream_h0(x, w0, b, relu, tm, cap):
    n_pad = x.shape[0]
    need = 2 * (tm * C_PAD * 2 + C_PAD * C_PAD * 2 + C_PAD * 4 + tm * C_PAD * 4)
    return pl.pallas_call(
        _make_h0_kernel(relu),
        out_shape=jax.ShapeDtypeStruct((n_pad, C_PAD), jnp.float32),
        grid_spec=pltpu.PrefetchScalarGridSpec(
            num_scalar_prefetch=0,
            grid=(n_pad // tm,),
            in_specs=[
                pl.BlockSpec((tm, C_PAD), lambda i: (i, 0)),
                pl.BlockSpec((C_PAD, C_PAD), lambda i: (0, 0)),
                pl.BlockSpec((1, C_PAD), lambda i: (0, 0)),
            ],
            out_specs=pl.BlockSpec((tm, C_PAD), lambda i: (i, 0)),
        ),
        compiler_params=pltpu.CompilerParams(
            dimension_semantics=("parallel",),
            vmem_limit_bytes=_vmem_limit(need, cap)),
    )(x, w0, b)


def _make_step_kernel(first, relu):
    def kernel(*refs):
        if first:
            l_ref, tprev_ref, h_ref, w_ref, tout_ref, hout_ref = refs
            tprev2_ref = None
        else:
            l_ref, tprev_ref, tprev2_ref, h_ref, w_ref, tout_ref, hout_ref = refs
        # full-contraction row panel on the MXU: bf16 x bf16 -> f32
        t = jnp.dot(l_ref[...], tprev_ref[...], preferred_element_type=jnp.float32)
        if not first:
            t = 2.0 * t - tprev2_ref[...].astype(jnp.float32)
        t_bf16 = t.astype(jnp.bfloat16)
        tout_ref[...] = t_bf16
        h = h_ref[...] + jnp.dot(t_bf16, w_ref[...],
                                 preferred_element_type=jnp.float32)
        if relu:
            h = jnp.maximum(h, 0.0)
        hout_ref[...] = h
    return kernel


def _stream_step(L, t_prev, t_prev2, h, w_k, *, first, relu, tm, cap):
    n_pad = L.shape[0]
    in_arrays = [L, t_prev] + ([] if first else [t_prev2]) + [h, w_k]
    in_specs = [
        pl.BlockSpec((tm, n_pad), lambda i: (i, 0)),       # L row panel (dominant)
        pl.BlockSpec((n_pad, C_PAD), lambda i: (0, 0)),    # full T_{k-1} (resident)
    ]
    if not first:
        in_specs.append(pl.BlockSpec((tm, C_PAD), lambda i: (i, 0)))  # T_{k-2}
    in_specs += [
        pl.BlockSpec((tm, C_PAD), lambda i: (i, 0)),       # H panel
        pl.BlockSpec((C_PAD, C_PAD), lambda i: (0, 0)),    # W_k (resident)
    ]
    need = (2 * tm * n_pad * 2 + 2 * n_pad * C_PAD * 2
            + 2 * tm * C_PAD * (2 + 4) + 2 * C_PAD * C_PAD * 2
            + 2 * tm * C_PAD * (2 + 4))
    return pl.pallas_call(
        _make_step_kernel(first, relu),
        out_shape=(jax.ShapeDtypeStruct((n_pad, C_PAD), jnp.bfloat16),
                   jax.ShapeDtypeStruct((n_pad, C_PAD), jnp.float32)),
        grid_spec=pltpu.PrefetchScalarGridSpec(
            num_scalar_prefetch=0,
            grid=(n_pad // tm,),
            in_specs=in_specs,
            out_specs=(pl.BlockSpec((tm, C_PAD), lambda i: (i, 0)),
                       pl.BlockSpec((tm, C_PAD), lambda i: (i, 0))),
        ),
        compiler_params=pltpu.CompilerParams(
            dimension_semantics=("parallel",),
            vmem_limit_bytes=_vmem_limit(need, cap)),
    )(*in_arrays)


def chebconv_streamed(L, h_in_bf16, W, b, *, relu, tm, cap):
    K = W.shape[0]
    h = _stream_h0(h_in_bf16, W[0], b, relu and K == 1, tm, cap)
    if K > 1:
        t_prev2 = h_in_bf16
        t_prev, h = _stream_step(L, h_in_bf16, None, h, W[1],
                                 first=True, relu=(relu and K == 2), tm=tm, cap=cap)
        for k in range(2, K):
            t_new, h = _stream_step(L, t_prev, t_prev2, h, W[k],
                                    first=False, relu=(relu and k == K - 1),
                                    tm=tm, cap=cap)
            t_prev2, t_prev = t_prev, t_new
    return h  # f32 [n_pad, C_PAD]


def _make_pool_logsoftmax_kernel(out_cols):
    def kernel(p_ref, h_ref, o_ref, acc_ref):
        j = pl.program_id(0)

        @pl.when(j == 0)
        def _():
            acc_ref[...] = jnp.zeros_like(acc_ref)

        acc_ref[...] += jnp.dot(p_ref[...], h_ref[...],
                                preferred_element_type=jnp.float32)

        @pl.when(j == pl.num_programs(0) - 1)
        def _():
            z = acc_ref[...]
            col = jax.lax.broadcasted_iota(jnp.int32, z.shape, 1)
            valid = col < out_cols
            z = jnp.where(valid, z, NEG_INF)
            m = jnp.max(z, axis=1, keepdims=True)
            e = jnp.where(valid, jnp.exp(z - m), 0.0)
            lse = jnp.log(jnp.sum(e, axis=1, keepdims=True))
            o_ref[...] = (z - m - lse).astype(o_ref.dtype)
    return kernel


def pool_log_softmax(P, h, *, out_cols, tk, cap):
    g_pad, n_pad = P.shape
    need = 2 * (g_pad * tk * 4 + tk * C_PAD * 4 + g_pad * C_PAD * 4) + g_pad * C_PAD * 4
    return pl.pallas_call(
        _make_pool_logsoftmax_kernel(out_cols),
        out_shape=jax.ShapeDtypeStruct((g_pad, C_PAD), jnp.float32),
        grid_spec=pltpu.PrefetchScalarGridSpec(
            num_scalar_prefetch=0,
            grid=(n_pad // tk,),
            in_specs=[pl.BlockSpec((g_pad, tk), lambda j: (0, j)),
                      pl.BlockSpec((tk, C_PAD), lambda j: (j, 0))],
            out_specs=pl.BlockSpec((g_pad, C_PAD), lambda j: (0, 0)),
            scratch_shapes=[pltpu.VMEM((g_pad, C_PAD), jnp.float32)],
        ),
        compiler_params=pltpu.CompilerParams(
            dimension_semantics=("arbitrary",),
            vmem_limit_bytes=_vmem_limit(need, cap)),
    )(P, h)


def _make_logsoftmax_kernel(out_cols):
    def kernel(h_ref, o_ref):
        z = h_ref[...]
        col = jax.lax.broadcasted_iota(jnp.int32, z.shape, 1)
        valid = col < out_cols
        z = jnp.where(valid, z, NEG_INF)
        m = jnp.max(z, axis=1, keepdims=True)
        e = jnp.where(valid, jnp.exp(z - m), 0.0)
        lse = jnp.log(jnp.sum(e, axis=1, keepdims=True))
        o_ref[...] = (z - m - lse).astype(o_ref.dtype)
    return kernel


def log_softmax_rows(h, *, out_cols, tm, cap):
    n_pad = h.shape[0]
    return pl.pallas_call(
        _make_logsoftmax_kernel(out_cols),
        out_shape=jax.ShapeDtypeStruct((n_pad, C_PAD), jnp.float32),
        grid_spec=pltpu.PrefetchScalarGridSpec(
            num_scalar_prefetch=0,
            grid=(n_pad // tm,),
            in_specs=[pl.BlockSpec((tm, C_PAD), lambda i: (i, 0))],
            out_specs=pl.BlockSpec((tm, C_PAD), lambda i: (i, 0)),
        ),
        compiler_params=pltpu.CompilerParams(
            dimension_semantics=("parallel",),
            vmem_limit_bytes=_vmem_limit(4 * tm * C_PAD * 4, cap)),
    )(h)


# ----------------------------------------------------------------------------
# Graph / parameter preprocessing (plain JAX; O(N^2) only for the bf16 L write)
# ----------------------------------------------------------------------------
def precompute_graph(edge_index, num_nodes, n_pad):
    """L_hat = -D^{-1/2} A D^{-1/2} (sym norm, lambda_max=2), built directly in
    bf16 from the edge list. Cache/reuse across forward calls when static.
    NOTE: duplicate edges accumulate weight, matching a PyG reference that also
    receives duplicate edges."""
    src = edge_index[0].astype(jnp.int32)
    dst = edge_index[1].astype(jnp.int32)
    ones = jnp.ones(src.shape, jnp.float32)
    deg = jnp.zeros((n_pad,), jnp.float32).at[dst].add(ones)
    dinv = jnp.where(deg > 0, jax.lax.rsqrt(jnp.maximum(deg, 1e-12)), 0.0)
    vals = -(dinv[dst] * dinv[src])
    return jnp.zeros((n_pad, n_pad), jnp.bfloat16).at[dst, src].add(
        vals.astype(jnp.bfloat16))


def build_pool_matrix(batch, num_graphs, n_pad, g_pad):
    n = batch.shape[0]
    batch_pad = jnp.full((n_pad,), -1, jnp.int32).at[:n].set(batch.astype(jnp.int32))
    onehot = (batch_pad[None, :] ==
              jnp.arange(g_pad, dtype=jnp.int32)[:, None]).astype(jnp.float32)
    counts = jnp.maximum(onehot.sum(axis=1, keepdims=True), 1.0)
    return onehot / counts   # empty graphs -> zero row (uniform log_softmax)


def _pad_params(W, b):
    K, cin, cout = W.shape
    Wp = jnp.zeros((K, C_PAD, C_PAD), jnp.float32).at[:, :cin, :cout].set(W)
    bp = jnp.zeros((1, C_PAD), jnp.float32).at[:, :cout].set(b.reshape(1, -1))
    return Wp.astype(jnp.bfloat16), bp


def init_cheb_params(key, in_c, out_c, K):
    kw, _ = jax.random.split(key)
    scale = jnp.sqrt(6.0 / (in_c + out_c))  # glorot-uniform, like PyG Linear init
    W = jax.random.uniform(kw, (K, in_c, out_c), jnp.float32, -scale, scale)
    b = jnp.zeros((out_c,), jnp.float32)
    return W, b


# ----------------------------------------------------------------------------
# Full forward
# ----------------------------------------------------------------------------
def chebnet_forward(params, x, edge_index, batch, num_graphs,
                    use_pooling=True, L=None, force_streamed=False):
    (W1, b1), (W2, b2), (W3, b3) = params
    K = W1.shape[0]
    out_c = W3.shape[2]
    N = x.shape[0]
    cap = _vmem_capacity_bytes()

    n_pad = L.shape[0] if L is not None else _round_up(max(N, 1), 128)

    # residency gate: L + activations + all weights must fit comfortably in VMEM
    resident_bytes = (n_pad * n_pad * 2          # L (bf16)
                      + 6 * n_pad * C_PAD * 4    # x / h / T temporaries
                      + 3 * K * C_PAD * C_PAD * 2)
    use_resident = (not force_streamed) and (resident_bytes <= int(cap * 0.75))

    tm = None
    if not use_resident:
        # largest row-panel that divides n_pad and keeps the double-buffered
        # L panel within ~24 MiB (per-generation VMEM guidance).
        panel_budget = min(24 << 20, int(cap * 0.35))
        tm = 128
        for cand in (512, 256):
            if n_pad % cand == 0 and 2 * cand * n_pad * 2 <= panel_budget:
                tm = cand
                break
        # TODO(synk): for n_pad so large that even a 128-row bf16 L panel blows
        # the panel budget, add a contraction-tiled variant.

    if L is None:
        L = precompute_graph(edge_index, N, n_pad)

    x_pad = jnp.zeros((n_pad, C_PAD), jnp.bfloat16).at[:N, :x.shape[1]].set(
        x.astype(jnp.bfloat16))
    params_pad = (_pad_params(W1, b1), _pad_params(W2, b2), _pad_params(W3, b3))

    g_pad = _round_up(max(num_graphs, 1), G_PAD_MIN)
    P = build_pool_matrix(batch, num_graphs, n_pad, g_pad) if use_pooling else None

    if use_resident:
        out_full = chebnet_fused(L, x_pad, params_pad, P, out_c, use_pooling, cap)
    else:
        (w1p, b1p), (w2p, b2p), (w3p, b3p) = params_pad
        h = chebconv_streamed(L, x_pad, w1p, b1p, relu=True, tm=tm, cap=cap)
        h = chebconv_streamed(L, h.astype(jnp.bfloat16), w2p, b2p,
                              relu=True, tm=tm, cap=cap)
        h = chebconv_streamed(L, h.astype(jnp.bfloat16), w3p, b3p,
                              relu=False, tm=tm, cap=cap)
        if use_pooling:
            out_full = pool_log_softmax(P, h, out_cols=out_c, tk=tm, cap=cap)
        else:
            out_full = log_softmax_rows(h, out_cols=out_c, tm=tm, cap=cap)

    # F.dropout(p=0.5, training=self.training): eval-mode semantics -> identity.
    # TODO(synk): add stateful-PRNG dropout (pltpu.prng_random_bits) for training.
    if use_pooling:
        return out_full[:num_graphs, :out_c]
    return out_full[:N, :out_c]


if __name__ == "__main__":
    key = jax.random.PRNGKey(0)

    # Small synthetic graph batch: 2 graphs, 8 nodes each, in=4, hidden=32, out=8, K=5
    N, in_c, hid_c, out_c, K = 16, 4, 32, 8, 5
    num_graphs = 2

    k_x, k_e, k1, k2, k3 = jax.random.split(key, 5)
    x = jax.random.normal(k_x, (N, in_c), jnp.float32)

    E = 24
    src = jax.random.randint(k_e, (E,), 0, N // 2)
    dst = jax.random.randint(jax.random.fold_in(k_e, 1), (E,), 0, N // 2)
    src = jnp.concatenate([src, src + N // 2])
    dst = jnp.concatenate([dst, dst + N // 2])
    edge_index = jnp.stack(
        [jnp.concatenate([src, dst]), jnp.concatenate([dst, src])], axis=0
    ).astype(jnp.int32)

    batch = jnp.concatenate(
        [jnp.zeros((N // 2,), jnp.int32), jnp.ones((N // 2,), jnp.int32)]
    )

    params = (
        init_cheb_params(k1, in_c, hid_c, K),
        init_cheb_params(k2, hid_c, hid_c, K),
        init_cheb_params(k3, hid_c, out_c, K),
    )

    # main path: single fused kernel, L resident in VMEM, pooling + log_softmax fused
    out = jax.block_until_ready(
        chebnet_forward(params, x, edge_index, batch, num_graphs, use_pooling=True))
    assert out.shape == (num_graphs, out_c)
    assert bool(jnp.all(jnp.isfinite(out)))
    assert jnp.allclose(jnp.exp(out).sum(axis=1), 1.0, atol=1e-4)

    # fused path without pooling (per-node log_softmax, masked to real classes)
    out_nodes = jax.block_until_ready(
        chebnet_forward(params, x, edge_index, batch, num_graphs, use_pooling=False))
    assert out_nodes.shape == (N, out_c)
    assert jnp.allclose(jnp.exp(out_nodes).sum(axis=1), 1.0, atol=1e-4)

    # streamed fallback (large-N path); force it here to exercise the code path
    # and cross-check against the fused result.
    out_s = jax.block_until_ready(
        chebnet_forward(params, x, edge_index, batch, num_graphs,
                        use_pooling=True, force_streamed=True))
    assert out_s.shape == (num_graphs, out_c)
    assert jnp.allclose(out, out_s, atol=5e-2, rtol=5e-2)

    print("KERNEL_OK")
</pallas_src>

<mosaic_0001>
module attributes {stable_mosaic.version = 11 : i64} {
  func.func @kernel(%arg0: memref<128x128xbf16, #tpu.memory_space<vmem>>, %arg1: memref<128x128xbf16, #tpu.memory_space<vmem>>, %arg2: memref<5x128x128xbf16, #tpu.memory_space<vmem>>, %arg3: memref<1x128xf32, #tpu.memory_space<vmem>>, %arg4: memref<5x128x128xbf16, #tpu.memory_space<vmem>>, %arg5: memref<1x128xf32, #tpu.memory_space<vmem>>, %arg6: memref<5x128x128xbf16, #tpu.memory_space<vmem>>, %arg7: memref<1x128xf32, #tpu.memory_space<vmem>>, %arg8: memref<8x128xf32, #tpu.memory_space<vmem>>, %arg9: memref<8x128xf32, #tpu.memory_space<vmem>>) attributes {dimension_semantics = [], scalar_prefetch = 0 : i64, scratch_operands = 0 : i64, tpu.core_type = #tpu.core_type<tc>} {
    %c0 = arith.constant 0 : index
    %c0_0 = arith.constant 0 : index
    %0 = vector.load %arg0[%c0, %c0_0] : memref<128x128xbf16, #tpu.memory_space<vmem>>, vector<128x128xbf16>
    %c0_1 = arith.constant 0 : index
    %c0_2 = arith.constant 0 : index
    %1 = vector.load %arg1[%c0_1, %c0_2] : memref<128x128xbf16, #tpu.memory_space<vmem>>, vector<128x128xbf16>
    %c0_3 = arith.constant 0 : index
    %c0_4 = arith.constant 0 : index
    %c0_5 = arith.constant 0 : index
    %2 = vector.load %arg2[%c0_3, %c0_4, %c0_5] : memref<5x128x128xbf16, #tpu.memory_space<vmem>>, vector<1x128x128xbf16>
    %3 = vector.shape_cast %2 : vector<1x128x128xbf16> to vector<128x128xbf16>
    %cst = arith.constant dense<0.000000e+00> : vector<128x128xf32>
    %4 = tpu.matmul %1, %3, %cst {dimension_numbers = #tpu.dot_dimension_numbers<[1], [0], [0], [1], [0, 0, 1, 1], [], []>} : vector<128x128xbf16>, vector<128x128xbf16>, vector<128x128xf32> -> vector<128x128xf32>
    %cst_6 = arith.constant dense<0.000000e+00> : vector<128x128xf32>
    %5 = tpu.matmul %0, %1, %cst_6 {dimension_numbers = #tpu.dot_dimension_numbers<[1], [0], [0], [1], [0, 0, 1, 1], [], []>} : vector<128x128xbf16>, vector<128x128xbf16>, vector<128x128xf32> -> vector<128x128xf32>
    %6 = arith.truncf %5 : vector<128x128xf32> to vector<128x128xbf16>
    %c1 = arith.constant 1 : index
    %c0_7 = arith.constant 0 : index
    %c0_8 = arith.constant 0 : index
    %7 = vector.load %arg2[%c1, %c0_7, %c0_8] : memref<5x128x128xbf16, #tpu.memory_space<vmem>>, vector<1x128x128xbf16>
    %8 = vector.shape_cast %7 : vector<1x128x128xbf16> to vector<128x128xbf16>
    %cst_9 = arith.constant dense<0.000000e+00> : vector<128x128xf32>
    %9 = tpu.matmul %6, %8, %cst_9 {dimension_numbers = #tpu.dot_dimension_numbers<[1], [0], [0], [1], [0, 0, 1, 1], [], []>} : vector<128x128xbf16>, vector<128x128xbf16>, vector<128x128xf32> -> vector<128x128xf32>
    %10 = arith.addf %4, %9 : vector<128x128xf32>
    %cst_10 = arith.constant dense<0.000000e+00> : vector<128x128xf32>
    %11 = tpu.matmul %0, %6, %cst_10 {dimension_numbers = #tpu.dot_dimension_numbers<[1], [0], [0], [1], [0, 0, 1, 1], [], []>} : vector<128x128xbf16>, vector<128x128xbf16>, vector<128x128xf32> -> vector<128x128xf32>
    %cst_11 = arith.constant 2.000000e+00 : f32
    %12 = vector.broadcast %cst_11 : f32 to vector<128x128xf32>
    %13 = arith.mulf %12, %11 : vector<128x128xf32>
    %14 = arith.extf %1 : vector<128x128xbf16> to vector<128x128xf32>
    %15 = arith.subf %13, %14 : vector<128x128xf32>
    %16 = arith.truncf %15 : vector<128x128xf32> to vector<128x128xbf16>
    %c2 = arith.constant 2 : index
    %c0_12 = arith.constant 0 : index
    %c0_13 = arith.constant 0 : index
    %17 = vector.load %arg2[%c2, %c0_12, %c0_13] : memref<5x128x128xbf16, #tpu.memory_space<vmem>>, vector<1x128x128xbf16>
    %18 = vector.shape_cast %17 : vector<1x128x128xbf16> to vector<128x128xbf16>
    %cst_14 = arith.constant dense<0.000000e+00> : vector<128x128xf32>
    %19 = tpu.matmul %16, %18, %cst_14 {dimension_numbers = #tpu.dot_dimension_numbers<[1], [0], [0], [1], [0, 0, 1, 1], [], []>} : vector<128x128xbf16>, vector<128x128xbf16>, vector<128x128xf32> -> vector<128x128xf32>
    %20 = arith.addf %10, %19 : vector<128x128xf32>
    %cst_15 = arith.constant dense<0.000000e+00> : vector<128x128xf32>
    %21 = tpu.matmul %0, %16, %cst_15 {dimension_numbers = #tpu.dot_dimension_numbers<[1], [0], [0], [1], [0, 0, 1, 1], [], []>} : vector<128x128xbf16>, vector<128x128xbf16>, vector<128x128xf32> -> vector<128x128xf32>
    %cst_16 = arith.constant 2.000000e+00 : f32
    %22 = vector.broadcast %cst_16 : f32 to vector<128x128xf32>
    %23 = arith.mulf %22, %21 : vector<128x128xf32>
    %24 = arith.extf %6 : vector<128x128xbf16> to vector<128x128xf32>
    %25 = arith.subf %23, %24 : vector<128x128xf32>
    %26 = arith.truncf %25 : vector<128x128xf32> to vector<128x128xbf16>
    %c3 = arith.constant 3 : index
    %c0_17 = arith.constant 0 : index
    %c0_18 = arith.constant 0 : index
    %27 = vector.load %arg2[%c3, %c0_17, %c0_18] : memref<5x128x128xbf16, #tpu.memory_space<vmem>>, vector<1x128x128xbf16>
    %28 = vector.shape_cast %27 : vector<1x128x128xbf16> to vector<128x128xbf16>
    %cst_19 = arith.constant dense<0.000000e+00> : vector<128x128xf32>
    %29 = tpu.matmul %26, %28, %cst_19 {dimension_numbers = #tpu.dot_dimension_numbers<[1], [0], [0], [1], [0, 0, 1, 1], [], []>} : vector<128x128xbf16>, vector<128x128xbf16>, vector<128x128xf32> -> vector<128x128xf32>
    %30 = arith.addf %20, %29 : vector<128x128xf32>
    %cst_20 = arith.constant dense<0.000000e+00> : vector<128x128xf32>
    %31 = tpu.matmul %0, %26, %cst_20 {dimension_numbers = #tpu.dot_dimension_numbers<[1], [0], [0], [1], [0, 0, 1, 1], [], []>} : vector<128x128xbf16>, vector<128x128xbf16>, vector<128x128xf32> -> vector<128x128xf32>
    %cst_21 = arith.constant 2.000000e+00 : f32
    %32 = vector.broadcast %cst_21 : f32 to vector<128x128xf32>
    %33 = arith.mulf %32, %31 : vector<128x128xf32>
    %34 = arith.extf %16 : vector<128x128xbf16> to vector<128x128xf32>
    %35 = arith.subf %33, %34 : vector<128x128xf32>
    %36 = arith.truncf %35 : vector<128x128xf32> to vector<128x128xbf16>
    %c4 = arith.constant 4 : index
    %c0_22 = arith.constant 0 : index
    %c0_23 = arith.constant 0 : index
    %37 = vector.load %arg2[%c4, %c0_22, %c0_23] : memref<5x128x128xbf16, #tpu.memory_space<vmem>>, vector<1x128x128xbf16>
    %38 = vector.shape_cast %37 : vector<1x128x128xbf16> to vector<128x128xbf16>
    %cst_24 = arith.constant dense<0.000000e+00> : vector<128x128xf32>
    %39 = tpu.matmul %36, %38, %cst_24 {dimension_numbers = #tpu.dot_dimension_numbers<[1], [0], [0], [1], [0, 0, 1, 1], [], []>} : vector<128x128xbf16>, vector<128x128xbf16>, vector<128x128xf32> -> vector<128x128xf32>
    %40 = arith.addf %30, %39 : vector<128x128xf32>
    %c0_25 = arith.constant 0 : index
    %c0_26 = arith.constant 0 : index
    %41 = vector.load %arg3[%c0_25, %c0_26] : memref<1x128xf32, #tpu.memory_space<vmem>>, vector<1x128xf32>
    %42 = vector.broadcast %41 : vector<1x128xf32> to vector<128x128xf32>
    %43 = arith.addf %40, %42 : vector<128x128xf32>
    %cst_27 = arith.constant 0.000000e+00 : f32
    %44 = vector.broadcast %cst_27 : f32 to vector<128x128xf32>
    %45 = arith.maximumf %43, %44 : vector<128x128xf32>
    %46 = arith.truncf %45 : vector<128x128xf32> to vector<128x128xbf16>
    %c0_28 = arith.constant 0 : index
    %c0_29 = arith.constant 0 : index
    %c0_30 = arith.constant 0 : index
    %47 = vector.load %arg4[%c0_28, %c0_29, %c0_30] : memref<5x128x128xbf16, #tpu.memory_space<vmem>>, vector<1x128x128xbf16>
    %48 = vector.shape_cast %47 : vector<1x128x128xbf16> to vector<128x128xbf16>
    %cst_31 = arith.constant dense<0.000000e+00> : vector<128x128xf32>
    %49 = tpu.matmul %46, %48, %cst_31 {dimension_numbers = #tpu.dot_dimension_numbers<[1], [0], [0], [1], [0, 0, 1, 1], [], []>} : vector<128x128xbf16>, vector<128x128xbf16>, vector<128x128xf32> -> vector<128x128xf32>
    %cst_32 = arith.constant dense<0.000000e+00> : vector<128x128xf32>
    %50 = tpu.matmul %0, %46, %cst_32 {dimension_numbers = #tpu.dot_dimension_numbers<[1], [0], [0], [1], [0, 0, 1, 1], [], []>} : vector<128x128xbf16>, vector<128x128xbf16>, vector<128x128xf32> -> vector<128x128xf32>
    %51 = arith.truncf %50 : vector<128x128xf32> to vector<128x128xbf16>
    %c1_33 = arith.constant 1 : index
    %c0_34 = arith.constant 0 : index
    %c0_35 = arith.constant 0 : index
    %52 = vector.load %arg4[%c1_33, %c0_34, %c0_35] : memref<5x128x128xbf16, #tpu.memory_space<vmem>>, vector<1x128x128xbf16>
    %53 = vector.shape_cast %52 : vector<1x128x128xbf16> to vector<128x128xbf16>
    %cst_36 = arith.constant dense<0.000000e+00> : vector<128x128xf32>
    %54 = tpu.matmul %51, %53, %cst_36 {dimension_numbers = #tpu.dot_dimension_numbers<[1], [0], [0], [1], [0, 0, 1, 1], [], []>} : vector<128x128xbf16>, vector<128x128xbf16>, vector<128x128xf32> -> vector<128x128xf32>
    %55 = arith.addf %49, %54 : vector<128x128xf32>
    %cst_37 = arith.constant dense<0.000000e+00> : vector<128x128xf32>
    %56 = tpu.matmul %0, %51, %cst_37 {dimension_numbers = #tpu.dot_dimension_numbers<[1], [0], [0], [1], [0, 0, 1, 1], [], []>} : vector<128x128xbf16>, vector<128x128xbf16>, vector<128x128xf32> -> vector<128x128xf32>
    %cst_38 = arith.constant 2.000000e+00 : f32
    %57 = vector.broadcast %cst_38 : f32 to vector<128x128xf32>
    %58 = arith.mulf %57, %56 : vector<128x128xf32>
    %59 = arith.extf %46 : vector<128x128xbf16> to vector<128x128xf32>
    %60 = arith.subf %58, %59 : vector<128x128xf32>
    %61 = arith.truncf %60 : vector<128x128xf32> to vector<128x128xbf16>
    %c2_39 = arith.constant 2 : index
    %c0_40 = arith.constant 0 : index
    %c0_41 = arith.constant 0 : index
    %62 = vector.load %arg4[%c2_39, %c0_40, %c0_41] : memref<5x128x128xbf16, #tpu.memory_space<vmem>>, vector<1x128x128xbf16>
    %63 = vector.shape_cast %62 : vector<1x128x128xbf16> to vector<128x128xbf16>
    %cst_42 = arith.constant dense<0.000000e+00> : vector<128x128xf32>
    %64 = tpu.matmul %61, %63, %cst_42 {dimension_numbers = #tpu.dot_dimension_numbers<[1], [0], [0], [1], [0, 0, 1, 1], [], []>} : vector<128x128xbf16>, vector<128x128xbf16>, vector<128x128xf32> -> vector<128x128xf32>
    %65 = arith.addf %55, %64 : vector<128x128xf32>
    %cst_43 = arith.constant dense<0.000000e+00> : vector<128x128xf32>
    %66 = tpu.matmul %0, %61, %cst_43 {dimension_numbers = #tpu.dot_dimension_numbers<[1], [0], [0], [1], [0, 0, 1, 1], [], []>} : vector<128x128xbf16>, vector<128x128xbf16>, vector<128x128xf32> -> vector<128x128xf32>
    %cst_44 = arith.constant 2.000000e+00 : f32
    %67 = vector.broadcast %cst_44 : f32 to vector<128x128xf32>
    %68 = arith.mulf %67, %66 : vector<128x128xf32>
    %69 = arith.extf %51 : vector<128x128xbf16> to vector<128x128xf32>
    %70 = arith.subf %68, %69 : vector<128x128xf32>
    %71 = arith.truncf %70 : vector<128x128xf32> to vector<128x128xbf16>
    %c3_45 = arith.constant 3 : index
    %c0_46 = arith.constant 0 : index
    %c0_47 = arith.constant 0 : index
    %72 = vector.load %arg4[%c3_45, %c0_46, %c0_47] : memref<5x128x128xbf16, #tpu.memory_space<vmem>>, vector<1x128x128xbf16>
    %73 = vector.shape_cast %72 : vector<1x128x128xbf16> to vector<128x128xbf16>
    %cst_48 = arith.constant dense<0.000000e+00> : vector<128x128xf32>
    %74 = tpu.matmul %71, %73, %cst_48 {dimension_numbers = #tpu.dot_dimension_numbers<[1], [0], [0], [1], [0, 0, 1, 1], [], []>} : vector<128x128xbf16>, vector<128x128xbf16>, vector<128x128xf32> -> vector<128x128xf32>
    %75 = arith.addf %65, %74 : vector<128x128xf32>
    %cst_49 = arith.constant dense<0.000000e+00> : vector<128x128xf32>
    %76 = tpu.matmul %0, %71, %cst_49 {dimension_numbers = #tpu.dot_dimension_numbers<[1], [0], [0], [1], [0, 0, 1, 1], [], []>} : vector<128x128xbf16>, vector<128x128xbf16>, vector<128x128xf32> -> vector<128x128xf32>
    %cst_50 = arith.constant 2.000000e+00 : f32
    %77 = vector.broadcast %cst_50 : f32 to vector<128x128xf32>
    %78 = arith.mulf %77, %76 : vector<128x128xf32>
    %79 = arith.extf %61 : vector<128x128xbf16> to vector<128x128xf32>
    %80 = arith.subf %78, %79 : vector<128x128xf32>
    %81 = arith.truncf %80 : vector<128x128xf32> to vector<128x128xbf16>
    %c4_51 = arith.constant 4 : index
    %c0_52 = arith.constant 0 : index
    %c0_53 = arith.constant 0 : index
    %82 = vector.load %arg4[%c4_51, %c0_52, %c0_53] : memref<5x128x128xbf16, #tpu.memory_space<vmem>>, vector<1x128x128xbf16>
    %83 = vector.shape_cast %82 : vector<1x128x128xbf16> to vector<128x128xbf16>
    %cst_54 = arith.constant dense<0.000000e+00> : vector<128x128xf32>
    %84 = tpu.matmul %81, %83, %cst_54 {dimension_numbers = #tpu.dot_dimension_numbers<[1], [0], [0], [1], [0, 0, 1, 1], [], []>} : vector<128x128xbf16>, vector<128x128xbf16>, vector<128x128xf32> -> vector<128x128xf32>
    %85 = arith.addf %75, %84 : vector<128x128xf32>
    %c0_55 = arith.constant 0 : index
    %c0_56 = arith.constant 0 : index
    %86 = vector.load %arg5[%c0_55, %c0_56] : memref<1x128xf32, #tpu.memory_space<vmem>>, vector<1x128xf32>
    %87 = vector.broadcast %86 : vector<1x128xf32> to vector<128x128xf32>
    %88 = arith.addf %85, %87 : vector<128x128xf32>
    %cst_57 = arith.constant 0.000000e+00 : f32
    %89 = vector.broadcast %cst_57 : f32 to vector<128x128xf32>
    %90 = arith.maximumf %88, %89 : vector<128x128xf32>
    %91 = arith.truncf %90 : vector<128x128xf32> to vector<128x128xbf16>
    %c0_58 = arith.constant 0 : index
    %c0_59 = arith.constant 0 : index
    %c0_60 = arith.constant 0 : index
    %92 = vector.load %arg6[%c0_58, %c0_59, %c0_60] : memref<5x128x128xbf16, #tpu.memory_space<vmem>>, vector<1x128x128xbf16>
    %93 = vector.shape_cast %92 : vector<1x128x128xbf16> to vector<128x128xbf16>
    %cst_61 = arith.constant dense<0.000000e+00> : vector<128x128xf32>
    %94 = tpu.matmul %91, %93, %cst_61 {dimension_numbers = #tpu.dot_dimension_numbers<[1], [0], [0], [1], [0, 0, 1, 1], [], []>} : vector<128x128xbf16>, vector<128x128xbf16>, vector<128x128xf32> -> vector<128x128xf32>
    %cst_62 = arith.constant dense<0.000000e+00> : vector<128x128xf32>
    %95 = tpu.matmul %0, %91, %cst_62 {dimension_numbers = #tpu.dot_dimension_numbers<[1], [0], [0], [1], [0, 0, 1, 1], [], []>} : vector<128x128xbf16>, vector<128x128xbf16>, vector<128x128xf32> -> vector<128x128xf32>
    %96 = arith.truncf %95 : vector<128x128xf32> to vector<128x128xbf16>
    %c1_63 = arith.constant 1 : index
    %c0_64 = arith.constant 0 : index
    %c0_65 = arith.constant 0 : index
    %97 = vector.load %arg6[%c1_63, %c0_64, %c0_65] : memref<5x128x128xbf16, #tpu.memory_space<vmem>>, vector<1x128x128xbf16>
    %98 = vector.shape_cast %97 : vector<1x128x128xbf16> to vector<128x128xbf16>
    %cst_66 = arith.constant dense<0.000000e+00> : vector<128x128xf32>
    %99 = tpu.matmul %96, %98, %cst_66 {dimension_numbers = #tpu.dot_dimension_numbers<[1], [0], [0], [1], [0, 0, 1, 1], [], []>} : vector<128x128xbf16>, vector<128x128xbf16>, vector<128x128xf32> -> vector<128x128xf32>
    %100 = arith.addf %94, %99 : vector<128x128xf32>
    %cst_67 = arith.constant dense<0.000000e+00> : vector<128x128xf32>
    %101 = tpu.matmul %0, %96, %cst_67 {dimension_numbers = #tpu.dot_dimension_numbers<[1], [0], [0], [1], [0, 0, 1, 1], [], []>} : vector<128x128xbf16>, vector<128x128xbf16>, vector<128x128xf32> -> vector<128x128xf32>
    %cst_68 = arith.constant 2.000000e+00 : f32
    %102 = vector.broadcast %cst_68 : f32 to vector<128x128xf32>
    %103 = arith.mulf %102, %101 : vector<128x128xf32>
    %104 = arith.extf %91 : vector<128x128xbf16> to vector<128x128xf32>
    %105 = arith.subf %103, %104 : vector<128x128xf32>
    %106 = arith.truncf %105 : vector<128x128xf32> to vector<128x128xbf16>
    %c2_69 = arith.constant 2 : index
    %c0_70 = arith.constant 0 : index
    %c0_71 = arith.constant 0 : index
    %107 = vector.load %arg6[%c2_69, %c0_70, %c0_71] : memref<5x128x128xbf16, #tpu.memory_space<vmem>>, vector<1x128x128xbf16>
    %108 = vector.shape_cast %107 : vector<1x128x128xbf16> to vector<128x128xbf16>
    %cst_72 = arith.constant dense<0.000000e+00> : vector<128x128xf32>
    %109 = tpu.matmul %106, %108, %cst_72 {dimension_numbers = #tpu.dot_dimension_numbers<[1], [0], [0], [1], [0, 0, 1, 1], [], []>} : vector<128x128xbf16>, vector<128x128xbf16>, vector<128x128xf32> -> vector<128x128xf32>
    %110 = arith.addf %100, %109 : vector<128x128xf32>
    %cst_73 = arith.constant dense<0.000000e+00> : vector<128x128xf32>
    %111 = tpu.matmul %0, %106, %cst_73 {dimension_numbers = #tpu.dot_dimension_numbers<[1], [0], [0], [1], [0, 0, 1, 1], [], []>} : vector<128x128xbf16>, vector<128x128xbf16>, vector<128x128xf32> -> vector<128x128xf32>
    %cst_74 = arith.constant 2.000000e+00 : f32
    %112 = vector.broadcast %cst_74 : f32 to vector<128x128xf32>
    %113 = arith.mulf %112, %111 : vector<128x128xf32>
    %114 = arith.extf %96 : vector<128x128xbf16> to vector<128x128xf32>
    %115 = arith.subf %113, %114 : vector<128x128xf32>
    %116 = arith.truncf %115 : vector<128x128xf32> to vector<128x128xbf16>
    %c3_75 = arith.constant 3 : index
    %c0_76 = arith.constant 0 : index
    %c0_77 = arith.constant 0 : index
    %117 = vector.load %arg6[%c3_75, %c0_76, %c0_77] : memref<5x128x128xbf16, #tpu.memory_space<vmem>>, vector<1x128x128xbf16>
    %118 = vector.shape_cast %117 : vector<1x128x128xbf16> to vector<128x128xbf16>
    %cst_78 = arith.constant dense<0.000000e+00> : vector<128x128xf32>
    %119 = tpu.matmul %116, %118, %cst_78 {dimension_numbers = #tpu.dot_dimension_numbers<[1], [0], [0], [1], [0, 0, 1, 1], [], []>} : vector<128x128xbf16>, vector<128x128xbf16>, vector<128x128xf32> -> vector<128x128xf32>
    %120 = arith.addf %110, %119 : vector<128x128xf32>
    %cst_79 = arith.constant dense<0.000000e+00> : vector<128x128xf32>
    %121 = tpu.matmul %0, %116, %cst_79 {dimension_numbers = #tpu.dot_dimension_numbers<[1], [0], [0], [1], [0, 0, 1, 1], [], []>} : vector<128x128xbf16>, vector<128x128xbf16>, vector<128x128xf32> -> vector<128x128xf32>
    %cst_80 = arith.constant 2.000000e+00 : f32
    %122 = vector.broadcast %cst_80 : f32 to vector<128x128xf32>
    %123 = arith.mulf %122, %121 : vector<128x128xf32>
    %124 = arith.extf %106 : vector<128x128xbf16> to vector<128x128xf32>
    %125 = arith.subf %123, %124 : vector<128x128xf32>
    %126 = arith.truncf %125 : vector<128x128xf32> to vector<128x128xbf16>
    %c4_81 = arith.constant 4 : index
    %c0_82 = arith.constant 0 : index
    %c0_83 = arith.constant 0 : index
    %127 = vector.load %arg6[%c4_81, %c0_82, %c0_83] : memref<5x128x128xbf16, #tpu.memory_space<vmem>>, vector<1x128x128xbf16>
    %128 = vector.shape_cast %127 : vector<1x128x128xbf16> to vector<128x128xbf16>
    %cst_84 = arith.constant dense<0.000000e+00> : vector<128x128xf32>
    %129 = tpu.matmul %126, %128, %cst_84 {dimension_numbers = #tpu.dot_dimension_numbers<[1], [0], [0], [1], [0, 0, 1, 1], [], []>} : vector<128x128xbf16>, vector<128x128xbf16>, vector<128x128xf32> -> vector<128x128xf32>
    %130 = arith.addf %120, %129 : vector<128x128xf32>
    %c0_85 = arith.constant 0 : index
    %c0_86 = arith.constant 0 : index
    %131 = vector.load %arg7[%c0_85, %c0_86] : memref<1x128xf32, #tpu.memory_space<vmem>>, vector<1x128xf32>
    %132 = vector.broadcast %131 : vector<1x128xf32> to vector<128x128xf32>
    %133 = arith.addf %130, %132 : vector<128x128xf32>
    %134 = arith.truncf %133 : vector<128x128xf32> to vector<128x128xbf16>
    %c0_87 = arith.constant 0 : index
    %c0_88 = arith.constant 0 : index
    %135 = vector.load %arg8[%c0_87, %c0_88] : memref<8x128xf32, #tpu.memory_space<vmem>>, vector<8x128xf32>
    %136 = arith.extf %134 : vector<128x128xbf16> to vector<128x128xf32>
    %cst_89 = arith.constant dense<0.000000e+00> : vector<8x128xf32>
    %137 = tpu.matmul %135, %136, %cst_89 {dimension_numbers = #tpu.dot_dimension_numbers<[1], [0], [0], [1], [0, 0, 1, 1], [], []>} : vector<8x128xf32>, vector<128x128xf32>, vector<8x128xf32> -> vector<8x128xf32>
    %138 = tpu.iota {dimensions = array<i32: 1>} : vector<8x128xi32>
    %c8_i32 = arith.constant 8 : i32
    %139 = vector.broadcast %c8_i32 : i32 to vector<8x128xi32>
    %140 = arith.cmpi slt, %138, %139 : vector<8x128xi32>
    %cst_90 = arith.constant -1.000000e+30 : f32
    %141 = vector.broadcast %cst_90 : f32 to vector<8x128xf32>
    %142 = arith.select %140, %137, %141 : vector<8x128xi1>, vector<8x128xf32>
    %cst_91 = arith.constant dense<0xFF800000> : vector<8xf32>
    %143 = vector.multi_reduction <maximumf>, %142, %cst_91 [1] : vector<8x128xf32> to vector<8xf32>
    %144 = vector.shape_cast %143 : vector<8xf32> to vector<8x1xf32>
    %145 = vector.broadcast %144 : vector<8x1xf32> to vector<8x128xf32>
    %146 = arith.subf %142, %145 : vector<8x128xf32>
    %147 = math.exp %146 : vector<8x128xf32>
    %cst_92 = arith.constant 0.000000e+00 : f32
    %148 = vector.broadcast %cst_92 : f32 to vector<8x128xf32>
    %149 = arith.select %140, %147, %148 : vector<8x128xi1>, vector<8x128xf32>
    %cst_93 = arith.constant dense<0.000000e+00> : vector<8xf32>
    %150 = vector.multi_reduction <add>, %149, %cst_93 [1] : vector<8x128xf32> to vector<8xf32>
    %151 = vector.shape_cast %150 : vector<8xf32> to vector<8x1xf32>
    %152 = math.log %151 : vector<8x1xf32>
    %153 = vector.broadcast %144 : vector<8x1xf32> to vector<8x128xf32>
    %154 = arith.subf %142, %153 : vector<8x128xf32>
    %155 = vector.broadcast %152 : vector<8x1xf32> to vector<8x128xf32>
    %156 = arith.subf %154, %155 : vector<8x128xf32>
    %c0_94 = arith.constant 0 : index
    %c0_95 = arith.constant 0 : index
    %157 = vector.load %arg9[%c0_94, %c0_95] : memref<8x128xf32, #tpu.memory_space<vmem>>, vector<8x128xf32>
    tpu.vector_store %arg9[%c0_94, %c0_95], %156 {strides = array<i32>} : memref<8x128xf32, #tpu.memory_space<vmem>>, vector<8x128xf32>,
    return
  }
}

</mosaic_0001>

<llo_original>
// kernel: tpu_custom_call.1
$region0: #{tpu_custom_call.1}
  #allocation0 [shape = 'u32[]', space=smem, size = 0x4, offset = 0x4, fixed_abs, tag = 'smem constant byte address 0x4 - core index']
  #allocation1 [shape = 'u32[72,128]{1,0:T(1,128)}', space=vmem, size = 0x9000, scoped, tag = 'internal scratch']
  %s0 = inlined_call_operand.hbm [shape: bf16[128,128], index: 0, kind: input, shape index: {}]
  %s1 = inlined_call_operand.hbm [shape: bf16[128,128], index: 1, kind: input, shape index: {}]
  %s2 = inlined_call_operand.hbm [shape: bf16[5,128,128], index: 2, kind: input, shape index: {}]
  %s3 = inlined_call_operand.vmem [shape: f32[1,128], index: 3, kind: input, shape index: {}]
  %s4 = inlined_call_operand.hbm [shape: bf16[5,128,128], index: 4, kind: input, shape index: {}]
  %s5 = inlined_call_operand.vmem [shape: f32[1,128], index: 5, kind: input, shape index: {}]
  %s6 = inlined_call_operand.hbm [shape: bf16[5,128,128], index: 6, kind: input, shape index: {}]
  %s7 = inlined_call_operand.vmem [shape: f32[1,128], index: 7, kind: input, shape index: {}]
  %s8 = inlined_call_operand.hbm [shape: f32[8,128], index: 8, kind: input, shape index: {}]
  %s9 = inlined_call_operand.hbm [shape: f32[8,128], index: 9, kind: output, shape index: {}]
  %s10 = sld [smem:[#allocation0]]
  $region70: #{tpu_custom_call.1} parent=0
    _
  %s12 = ssub.s32 1, %s10
  %s13 = scalar_select 0, %s12, %s10
  $region1: #{tpu_custom_call.1} parent=0
    #allocation2 [shape = 'u8[32768]{0}', space=vmem, size = 0x8000, scoped, tag = 'input window, operand 0, single buffered']
    #allocation3 [shape = 's32[1]{0}', space=sflag, size = 0x4, scoped, tag = 'scoped memory for tpu_custom_call.1']
    #allocation4 [shape = 's32[1]{0}', space=sflag, size = 0x4, scoped, tag = 'scoped memory for tpu_custom_call.1']
    #allocation5 [shape = 'u8[32768]{0}', space=vmem, size = 0x8000, scoped, tag = 'input window, operand 1, single buffered']
    #allocation6 [shape = 's32[1]{0}', space=sflag, size = 0x4, scoped, tag = 'scoped memory for tpu_custom_call.1']
    #allocation7 [shape = 'u8[163840]{0}', space=vmem, size = 0x28000, scoped, tag = 'input window, operand 2, single buffered']
    #allocation8 [shape = 'u8[163840]{0}', space=vmem, size = 0x28000, scoped, tag = 'input window, operand 4, single buffered']
    #allocation9 [shape = 's32[1]{0}', space=sflag, size = 0x4, scoped, tag = 'scoped memory for tpu_custom_call.1']
    #allocation10 [shape = 'u8[163840]{0}', space=vmem, size = 0x28000, scoped, tag = 'input window, operand 6, single buffered']
    #allocation11 [shape = 'u8[4096]{0}', space=vmem, size = 0x1000, scoped, tag = 'input window, operand 8, single buffered']
    #allocation12 [shape = 's32[1]{0}', space=sflag, size = 0x4, scoped, tag = 'scoped memory for tpu_custom_call.1']
    #allocation13 [shape = 'u8[4096]{0}', space=vmem, size = 0x1000, scoped, tag = 'output window, operand 0, single buffered']
    %14 = vsyncpa [#allocation3], 0
    %15 = vsyncpa [#allocation6], 0
    %16 = vsyncpa [#allocation9], 0
    %17 = vsyncpa [#allocation12], 0
    %18 = vsyncpa [#allocation4], 0
    // Predicated region
    $region2: #{tpu_custom_call.1} parent=1 // pred_check
      _
    $region3: #{tpu_custom_call.1} parent=1 // pred_check_branch
      %20 = sbr.rel (0) target = $region5
    $region4: #{tpu_custom_call.1} parent=1 // pred_region
      %22 = vsyncadd [#allocation3], 0
      %s23 = sshll.u32 %s0, 4
      %s24 = int_to_ptr.hbm [resolvable:$true] %s23
      %s25 = sshll.u32 [#allocation2], 4
      %s26 = int_to_ptr.vmem [resolvable:$true] %s25
      %31 = dma.hbm_to_vmem [thread:$0]  %s24, 1024, %s26, [#allocation3], 64, 64, 4
    $region5: #{tpu_custom_call.1} parent=1 // pred_fallthru
      _
    // Predicated region
    $region6: #{tpu_custom_call.1} parent=1 // pred_check
      _
    $region7: #{tpu_custom_call.1} parent=1 // pred_check_branch
      %33 = sbr.rel (0) target = $region9
    $region8: #{tpu_custom_call.1} parent=1 // pred_region
      %35 = vsyncadd [#allocation6], 0
      %s36 = sshll.u32 %s1, 4
      %s37 = int_to_ptr.hbm [resolvable:$true] %s36
      %s38 = sshll.u32 [#allocation5], 4
      %s39 = int_to_ptr.vmem [resolvable:$true] %s38
      %44 = dma.hbm_to_vmem [thread:$0]  %s37, 1024, %s39, [#allocation6], 64, 64, 4
    $region9: #{tpu_custom_call.1} parent=1 // pred_fallthru
      _
    // Predicated region
    $region10: #{tpu_custom_call.1} parent=1 // pred_check
      _
    $region11: #{tpu_custom_call.1} parent=1 // pred_check_branch
      %46 = sbr.rel (0) target = $region13
    $region12: #{tpu_custom_call.1} parent=1 // pred_region
      %48 = vsyncadd [#allocation6], 0
      %s49 = sshll.u32 %s2, 4
      %s50 = int_to_ptr.hbm [resolvable:$true] %s49
      %s51 = sshll.u32 [#allocation7], 4
      %s52 = int_to_ptr.vmem [resolvable:$true] %s51
      %57 = dma.hbm_to_vmem [thread:$0]  %s50, 5120, %s52, [#allocation6], 64, 64, 4
    $region13: #{tpu_custom_call.1} parent=1 // pred_fallthru
      _
    // Predicated region
    $region14: #{tpu_custom_call.1} parent=1 // pred_check
      _
    $region15: #{tpu_custom_call.1} parent=1 // pred_check_branch
      %59 = sbr.rel (0) target = $region17
    $region16: #{tpu_custom_call.1} parent=1 // pred_region
      _
    $region17: #{tpu_custom_call.1} parent=1 // pred_fallthru
      _
    // Predicated region
    $region18: #{tpu_custom_call.1} parent=1 // pred_check
      _
    $region19: #{tpu_custom_call.1} parent=1 // pred_check_branch
      %61 = sbr.rel (0) target = $region21
    $region20: #{tpu_custom_call.1} parent=1 // pred_region
      %63 = vsyncadd [#allocation9], 0
      %s64 = sshll.u32 %s4, 4
      %s65 = int_to_ptr.hbm [resolvable:$true] %s64
      %s66 = sshll.u32 [#allocation8], 4
      %s67 = int_to_ptr.vmem [resolvable:$true] %s66
      %72 = dma.hbm_to_vmem [thread:$0]  %s65, 5120, %s67, [#allocation9], 64, 64, 4
    $region21: #{tpu_custom_call.1} parent=1 // pred_fallthru
      _
    // Predicated region
    $region22: #{tpu_custom_call.1} parent=1 // pred_check
      _
    $region23: #{tpu_custom_call.1} parent=1 // pred_check_branch
      %74 = sbr.rel (0) target = $region25
    $region24: #{tpu_custom_call.1} parent=1 // pred_region
      _
    $region25: #{tpu_custom_call.1} parent=1 // pred_fallthru
      _
    // Predicated region
    $region26: #{tpu_custom_call.1} parent=1 // pred_check
      _
    $region27: #{tpu_custom_call.1} parent=1 // pred_check_branch
      %76 = sbr.rel (0) target = $region29
    $region28: #{tpu_custom_call.1} parent=1 // pred_region
      %78 = vsyncadd [#allocation9], 0
      %s79 = sshll.u32 %s6, 4
      %s80 = int_to_ptr.hbm [resolvable:$true] %s79
      %s81 = sshll.u32 [#allocation10], 4
      %s82 = int_to_ptr.vmem [resolvable:$true] %s81
      %87 = dma.hbm_to_vmem [thread:$0]  %s80, 5120, %s82, [#allocation9], 64, 64, 4
    $region29: #{tpu_custom_call.1} parent=1 // pred_fallthru
      _
    // Predicated region
    $region30: #{tpu_custom_call.1} parent=1 // pred_check
      _
    $region31: #{tpu_custom_call.1} parent=1 // pred_check_branch
      %89 = sbr.rel (0) target = $region33
    $region32: #{tpu_custom_call.1} parent=1 // pred_region
      _
    $region33: #{tpu_custom_call.1} parent=1 // pred_fallthru
      _
    // Predicated region
    $region34: #{tpu_custom_call.1} parent=1 // pred_check
      _
    $region35: #{tpu_custom_call.1} parent=1 // pred_check_branch
      %91 = sbr.rel (0) target = $region37
    $region36: #{tpu_custom_call.1} parent=1 // pred_region
      %93 = vsyncadd [#allocation12], 0
      %s95 = sshll.u32 %s8, 4
      %s96 = int_to_ptr.hbm [resolvable:$true] %s95
      %s97 = sshll.u32 [#allocation11], 4
      %s98 = int_to_ptr.vmem [resolvable:$true] %s97
      %100 = dma.hbm_to_vmem [thread:$0]  %s96, 128, %s98, [#allocation12]
    $region37: #{tpu_custom_call.1} parent=1 // pred_fallthru
      _
    // Predicated region
    $region38: #{tpu_custom_call.1} parent=1 // pred_check
      _
    $region39: #{tpu_custom_call.1} parent=1 // pred_check_branch
      %102 = sbr.rel (0) target = $region41
    $region40: #{tpu_custom_call.1} parent=1 // pred_region
      %104 = dma.done [#allocation3], 1024
    $region41: #{tpu_custom_call.1} parent=1 // pred_fallthru
      _
    // Predicated region
    $region42: #{tpu_custom_call.1} parent=1 // pred_check
      _
    $region43: #{tpu_custom_call.1} parent=1 // pred_check_branch
      %106 = sbr.rel (0) target = $region45
    $region44: #{tpu_custom_call.1} parent=1 // pred_region
      %108 = dma.done [#allocation6], 1024
    $region45: #{tpu_custom_call.1} parent=1 // pred_fallthru
      _
    // Predicated region
    $region46: #{tpu_custom_call.1} parent=1 // pred_check
      _
    $region47: #{tpu_custom_call.1} parent=1 // pred_check_branch
      %110 = sbr.rel (0) target = $region49
    $region48: #{tpu_custom_call.1} parent=1 // pred_region
      %112 = dma.done [#allocation6], 5120
    $region49: #{tpu_custom_call.1} parent=1 // pred_fallthru
      _
    // Predicated region
    $region50: #{tpu_custom_call.1} parent=1 // pred_check
      _
    $region51: #{tpu_custom_call.1} parent=1 // pred_check_branch
      %114 = sbr.rel (0) target = $region53
    $region52: #{tpu_custom_call.1} parent=1 // pred_region
      %116 = dma.done [#allocation9], 5120
    $region53: #{tpu_custom_call.1} parent=1 // pred_fallthru
      _
    // Predicated region
    $region54: #{tpu_custom_call.1} parent=1 // pred_check
      _
    $region55: #{tpu_custom_call.1} parent=1 // pred_check_branch
      %118 = sbr.rel (0) target = $region57
    $region56: #{tpu_custom_call.1} parent=1 // pred_region
      %120 = dma.done [#allocation9], 5120
    $region57: #{tpu_custom_call.1} parent=1 // pred_fallthru
      _
    // Predicated region
    $region58: #{tpu_custom_call.1} parent=1 // pred_check
      _
    $region59: #{tpu_custom_call.1} parent=1 // pred_check_branch
      %122 = sbr.rel (0) target = $region61
    $region60: #{tpu_custom_call.1} parent=1 // pred_region
      %124 = dma.done [#allocation12], 128
    $region61: #{tpu_custom_call.1} parent=1 // pred_fallthru
      _
    %v125 = vld [vmem:[#allocation2] sm:$0xf]
    %v126 = vld [vmem:[#allocation2 + $0x4] sm:$0xf]
    %v127 = vld [vmem:[#allocation2 + $0x8] sm:$0xf]
    %v128 = vld [vmem:[#allocation2 + $0xc] sm:$0xf]
    %v129 = vld [vmem:[#allocation2 + $0x10] sm:$0xf]
    %v130 = vld [vmem:[#allocation2 + $0x14] sm:$0xf]
    %v131 = vld [vmem:[#allocation2 + $0x18] sm:$0xf]
    %v132 = vld [vmem:[#allocation2 + $0x1c] sm:$0xf]
    %v133 = vld [vmem:[#allocation2 + $0x20] sm:$0xf]
    %v134 = vld [vmem:[#allocation2 + $0x24] sm:$0xf]
    %v135 = vld [vmem:[#allocation2 + $0x28] sm:$0xf]
    %v136 = vld [vmem:[#allocation2 + $0x2c] sm:$0xf]
    %v137 = vld [vmem:[#allocation2 + $0x30] sm:$0xf]
    %v138 = vld [vmem:[#allocation2 + $0x34] sm:$0xf]
    %v139 = vld [vmem:[#allocation2 + $0x38] sm:$0xf]
    %v140 = vld [vmem:[#allocation2 + $0x3c] sm:$0xf]
    %v141 = vld [vmem:[#allocation5] sm:$0xf]
    %v142 = vld [vmem:[#allocation5 + $0x4] sm:$0xf]
    %v143 = vld [vmem:[#allocation5 + $0x8] sm:$0xf]
    %v144 = vld [vmem:[#allocation5 + $0xc] sm:$0xf]
    %v145 = vld [vmem:[#allocation5 + $0x10] sm:$0xf]
    %v146 = vld [vmem:[#allocation5 + $0x14] sm:$0xf]
    %v147 = vld [vmem:[#allocation5 + $0x18] sm:$0xf]
    %v148 = vld [vmem:[#allocation5 + $0x1c] sm:$0xf]
    %v149 = vld [vmem:[#allocation5 + $0x20] sm:$0xf]
    %v150 = vld [vmem:[#allocation5 + $0x24] sm:$0xf]
    %v151 = vld [vmem:[#allocation5 + $0x28] sm:$0xf]
    %v152 = vld [vmem:[#allocation5 + $0x2c] sm:$0xf]
    %v153 = vld [vmem:[#allocation5 + $0x30] sm:$0xf]
    %v154 = vld [vmem:[#allocation5 + $0x34] sm:$0xf]
    %v155 = vld [vmem:[#allocation5 + $0x38] sm:$0xf]
    %v156 = vld [vmem:[#allocation5 + $0x3c] sm:$0xf]
    %v157 = vld [vmem:[#allocation7] sm:$0xf]
    %v158 = vld [vmem:[#allocation7 + $0x4] sm:$0xf]
    %v159 = vld [vmem:[#allocation7 + $0x8] sm:$0xf]
    %v160 = vld [vmem:[#allocation7 + $0xc] sm:$0xf]
    %v161 = vld [vmem:[#allocation7 + $0x10] sm:$0xf]
    %v162 = vld [vmem:[#allocation7 + $0x14] sm:$0xf]
    %v163 = vld [vmem:[#allocation7 + $0x18] sm:$0xf]
    %v164 = vld [vmem:[#allocation7 + $0x1c] sm:$0xf]
    %v165 = vld [vmem:[#allocation7 + $0x20] sm:$0xf]
    %v166 = vld [vmem:[#allocation7 + $0x24] sm:$0xf]
    %v167 = vld [vmem:[#allocation7 + $0x28] sm:$0xf]
    %v168 = vld [vmem:[#allocation7 + $0x2c] sm:$0xf]
    %v169 = vld [vmem:[#allocation7 + $0x30] sm:$0xf]
    %v170 = vld [vmem:[#allocation7 + $0x34] sm:$0xf]
    %v171 = vld [vmem:[#allocation7 + $0x38] sm:$0xf]
    %v172 = vld [vmem:[#allocation7 + $0x3c] sm:$0xf]
    %v189 = vunpack.c.l.b16 %v125
    %v190 = vunpack.c.l.b16 %v126
    %v191 = vunpack.c.l.b16 %v127
    %v192 = vunpack.c.l.b16 %v128
    %v193 = vunpack.c.l.b16 %v129
    %v194 = vunpack.c.l.b16 %v130
    %v195 = vunpack.c.l.b16 %v131
    %v196 = vunpack.c.l.b16 %v132
    %v197 = vunpack.c.l.b16 %v133
    %v198 = vunpack.c.l.b16 %v134
    %v199 = vunpack.c.l.b16 %v135
    %v200 = vunpack.c.l.b16 %v136
    %v201 = vunpack.c.l.b16 %v137
    %v202 = vunpack.c.l.b16 %v138
    %v203 = vunpack.c.l.b16 %v139
    %v204 = vunpack.c.l.b16 %v140
    %v205 = vpack.c.b16 %v190, %v189
    %v206 = vpack.c.b16 %v192, %v191
    %v207 = vpack.c.b16 %v194, %v193
    %v208 = vpack.c.b16 %v196, %v195
    %v209 = vpack.c.b16 %v198, %v197
    %v210 = vpack.c.b16 %v200, %v199
    %v211 = vpack.c.b16 %v202, %v201
    %v212 = vpack.c.b16 %v204, %v203
    %v237 = vunpack.c.l.b16 %v141
    %v238 = vunpack.c.l.b16 %v142
    %v239 = vunpack.c.l.b16 %v143
    %v240 = vunpack.c.l.b16 %v144
    %v241 = vunpack.c.l.b16 %v145
    %v242 = vunpack.c.l.b16 %v146
    %v243 = vunpack.c.l.b16 %v147
    %v244 = vunpack.c.l.b16 %v148
    %v245 = vunpack.c.l.b16 %v149
    %v246 = vunpack.c.l.b16 %v150
    %v247 = vunpack.c.l.b16 %v151
    %v248 = vunpack.c.l.b16 %v152
    %v249 = vunpack.c.l.b16 %v153
    %v250 = vunpack.c.l.b16 %v154
    %v251 = vunpack.c.l.b16 %v155
    %v252 = vunpack.c.l.b16 %v156
    %v253 = vpack.c.b16 %v238, %v237
    %v254 = vpack.c.b16 %v240, %v239
    %v255 = vpack.c.b16 %v242, %v241
    %v256 = vpack.c.b16 %v244, %v243
    %v257 = vpack.c.b16 %v246, %v245
    %v258 = vpack.c.b16 %v248, %v247
    %v259 = vpack.c.b16 %v250, %v249
    %v260 = vpack.c.b16 %v252, %v251
    %269 = vmatpush.bf16.msra.mxu0 %v260
    %270 = vmatpush.bf16.msra.mxu0 %v259
    %271 = vmatpush.bf16.msra.mxu0 %v258
    %272 = vmatpush.bf16.msra.mxu0 %v257
    %273 = vmatpush.bf16.msra.mxu0 %v256
    %274 = vmatpush.bf16.msra.mxu0 %v255
    %275 = vmatpush.bf16.msra.mxu0 %v254
    %276 = vmatpush.bf16.msra.mxu0 %v253
    %277 = vmatmul.bf16.gmra.mxu0 %v205
    %v278 = vpop.f32.mrf.mxu0
    %v279 = vadd.f32 0.0, %v278
    %v280 = vpop.f32.mrf.mxu0
    %v281 = vadd.f32 0.0, %v280
    %282 = vmatmul.bf16.gmra.mxu0 %v206
    %v283 = vpop.f32.mrf.mxu0
    %v284 = vadd.f32 0.0, %v283
    %v285 = vpop.f32.mrf.mxu0
    %v286 = vadd.f32 0.0, %v285
    %287 = vmatmul.bf16.gmra.mxu0 %v207
    %v288 = vpop.f32.mrf.mxu0
    %v289 = vadd.f32 0.0, %v288
    %v290 = vpop.f32.mrf.mxu0
    %v291 = vadd.f32 0.0, %v290
    %292 = vmatmul.bf16.gmra.mxu0 %v208
    %v293 = vpop.f32.mrf.mxu0
    %v294 = vadd.f32 0.0, %v293
    %v295 = vpop.f32.mrf.mxu0
    %v296 = vadd.f32 0.0, %v295
    %297 = vmatmul.bf16.gmra.mxu0 %v209
    %v298 = vpop.f32.mrf.mxu0
    %v299 = vadd.f32 0.0, %v298
    %v300 = vpop.f32.mrf.mxu0
    %v301 = vadd.f32 0.0, %v300
    %302 = vmatmul.bf16.gmra.mxu0 %v210
    %v303 = vpop.f32.mrf.mxu0
    %v304 = vadd.f32 0.0, %v303
    %v305 = vpop.f32.mrf.mxu0
    %v306 = vadd.f32 0.0, %v305
    %307 = vmatmul.bf16.gmra.mxu0 %v211
    %v308 = vpop.f32.mrf.mxu0
    %v309 = vadd.f32 0.0, %v308
    %v310 = vpop.f32.mrf.mxu0
    %v311 = vadd.f32 0.0, %v310
    %312 = vmatmul.bf16.gmra.mxu0 %v212
    %v313 = vpop.f32.mrf.mxu0
    %v314 = vadd.f32 0.0, %v313
    %v315 = vpop.f32.mrf.mxu0
    %v316 = vadd.f32 0.0, %v315
    %317 = vdwg.mxu0
    %v318 = vpack.c.bf16 %v279, %v279
    %v319 = vpack.c.bf16 %v281, %v281
    %v320 = vpack.c.bf16 %v284, %v284
    %v321 = vpack.c.bf16 %v286, %v286
    %v322 = vpack.c.bf16 %v289, %v289
    %v323 = vpack.c.bf16 %v291, %v291
    %v324 = vpack.c.bf16 %v294, %v294
    %v325 = vpack.c.bf16 %v296, %v296
    %v326 = vpack.c.bf16 %v299, %v299
    %v327 = vpack.c.bf16 %v301, %v301
    %v328 = vpack.c.bf16 %v304, %v304
    %v329 = vpack.c.bf16 %v306, %v306
    %v330 = vpack.c.bf16 %v309, %v309
    %v331 = vpack.c.bf16 %v311, %v311
    %v332 = vpack.c.bf16 %v314, %v314
    %v333 = vpack.c.bf16 %v316, %v316
    %s334 = scalar_lea.vmem [#allocation7], 64
    %v335 = vld [vmem:[%s334] sm:$0xf]
    %v336 = vld [vmem:[%s334 + $0x4] sm:$0xf]
    %v337 = vld [vmem:[%s334 + $0x8] sm:$0xf]
    %v338 = vld [vmem:[%s334 + $0xc] sm:$0xf]
    %v339 = vld [vmem:[%s334 + $0x10] sm:$0xf]
    %v340 = vld [vmem:[%s334 + $0x14] sm:$0xf]
    %v341 = vld [vmem:[%s334 + $0x18] sm:$0xf]
    %v342 = vld [vmem:[%s334 + $0x1c] sm:$0xf]
    %v343 = vld [vmem:[%s334 + $0x20] sm:$0xf]
    %v344 = vld [vmem:[%s334 + $0x24] sm:$0xf]
    %v345 = vld [vmem:[%s334 + $0x28] sm:$0xf]
    %v346 = vld [vmem:[%s334 + $0x2c] sm:$0xf]
    %v347 = vld [vmem:[%s334 + $0x30] sm:$0xf]
    %v348 = vld [vmem:[%s334 + $0x34] sm:$0xf]
    %v349 = vld [vmem:[%s334 + $0x38] sm:$0xf]
    %v350 = vld [vmem:[%s334 + $0x3c] sm:$0xf]
    %v367 = vunpack.c.l.b16 %v318
    %v368 = vunpack.c.l.b16 %v319
    %v369 = vunpack.c.l.b16 %v320
    %v370 = vunpack.c.l.b16 %v321
    %v371 = vunpack.c.l.b16 %v322
    %v372 = vunpack.c.l.b16 %v323
    %v373 = vunpack.c.l.b16 %v324
    %v374 = vunpack.c.l.b16 %v325
    %v375 = vunpack.c.l.b16 %v326
    %v376 = vunpack.c.l.b16 %v327
    %v377 = vunpack.c.l.b16 %v328
    %v378 = vunpack.c.l.b16 %v329
    %v379 = vunpack.c.l.b16 %v330
    %v380 = vunpack.c.l.b16 %v331
    %v381 = vunpack.c.l.b16 %v332
    %v382 = vunpack.c.l.b16 %v333
    %v383 = vpack.c.b16 %v368, %v367
    %v384 = vpack.c.b16 %v370, %v369
    %v385 = vpack.c.b16 %v372, %v371
    %v386 = vpack.c.b16 %v374, %v373
    %v387 = vpack.c.b16 %v376, %v375
    %v388 = vpack.c.b16 %v378, %v377
    %v389 = vpack.c.b16 %v380, %v379
    %v390 = vpack.c.b16 %v382, %v381
    %v415 = vunpack.c.l.b16 %v335
    %v416 = vunpack.c.l.b16 %v336
    %v417 = vunpack.c.l.b16 %v337
    %v418 = vunpack.c.l.b16 %v338
    %v419 = vunpack.c.l.b16 %v339
    %v420 = vunpack.c.l.b16 %v340
    %v421 = vunpack.c.l.b16 %v341
    %v422 = vunpack.c.l.b16 %v342
    %v423 = vunpack.c.l.b16 %v343
    %v424 = vunpack.c.l.b16 %v344
    %v425 = vunpack.c.l.b16 %v345
    %v426 = vunpack.c.l.b16 %v346
    %v427 = vunpack.c.l.b16 %v347
    %v428 = vunpack.c.l.b16 %v348
    %v429 = vunpack.c.l.b16 %v349
    %v430 = vunpack.c.l.b16 %v350
    %v431 = vpack.c.b16 %v416, %v415
    %v432 = vpack.c.b16 %v418, %v417
    %v433 = vpack.c.b16 %v420, %v419
    %v434 = vpack.c.b16 %v422, %v421
    %v435 = vpack.c.b16 %v424, %v423
    %v436 = vpack.c.b16 %v426, %v425
    %v437 = vpack.c.b16 %v428, %v427
    %v438 = vpack.c.b16 %v430, %v429
    %447 = vmatpush.bf16.msra.mxu0 %v438
    %448 = vmatpush.bf16.msra.mxu0 %v437
    %449 = vmatpush.bf16.msra.mxu0 %v436
    %450 = vmatpush.bf16.msra.mxu0 %v435
    %451 = vmatpush.bf16.msra.mxu0 %v434
    %452 = vmatpush.bf16.msra.mxu0 %v433
    %453 = vmatpush.bf16.msra.mxu0 %v432
    %454 = vmatpush.bf16.msra.mxu0 %v431
    %455 = vmatmul.bf16.gmra.mxu0 %v383
    %v456 = vpop.f32.mrf.mxu0
    %v457 = vadd.f32 0.0, %v456
    %v458 = vpop.f32.mrf.mxu0
    %v459 = vadd.f32 0.0, %v458
    %460 = vmatmul.bf16.gmra.mxu0 %v384
    %v461 = vpop.f32.mrf.mxu0
    %v462 = vadd.f32 0.0, %v461
    %v463 = vpop.f32.mrf.mxu0
    %v464 = vadd.f32 0.0, %v463
    %465 = vmatmul.bf16.gmra.mxu0 %v385
    %v466 = vpop.f32.mrf.mxu0
    %v467 = vadd.f32 0.0, %v466
    %v468 = vpop.f32.mrf.mxu0
    %v469 = vadd.f32 0.0, %v468
    %470 = vmatmul.bf16.gmra.mxu0 %v386
    %v471 = vpop.f32.mrf.mxu0
    %v472 = vadd.f32 0.0, %v471
    %v473 = vpop.f32.mrf.mxu0
    %v474 = vadd.f32 0.0, %v473
    %475 = vmatmul.bf16.gmra.mxu0 %v387
    %v476 = vpop.f32.mrf.mxu0
    %v477 = vadd.f32 0.0, %v476
    %v478 = vpop.f32.mrf.mxu0
    %v479 = vadd.f32 0.0, %v478
    %480 = vmatmul.bf16.gmra.mxu0 %v388
    %v481 = vpop.f32.mrf.mxu0
    %v482 = vadd.f32 0.0, %v481
    %v483 = vpop.f32.mrf.mxu0
    %v484 = vadd.f32 0.0, %v483
    %485 = vmatmul.bf16.gmra.mxu0 %v389
    %v486 = vpop.f32.mrf.mxu0
    %v487 = vadd.f32 0.0, %v486
    %v488 = vpop.f32.mrf.mxu0
    %v489 = vadd.f32 0.0, %v488
    %490 = vmatmul.bf16.gmra.mxu0 %v390
    %v491 = vpop.f32.mrf.mxu0
    %v492 = vadd.f32 0.0, %v491
    %v493 = vpop.f32.mrf.mxu0
    %v494 = vadd.f32 0.0, %v493
    %495 = vdwg.mxu0
    %v512 = vunpack.c.l.b16 %v157
    %v513 = vunpack.c.l.b16 %v158
    %v514 = vunpack.c.l.b16 %v159
    %v515 = vunpack.c.l.b16 %v160
    %v516 = vunpack.c.l.b16 %v161
    %v517 = vunpack.c.l.b16 %v162
    %v518 = vunpack.c.l.b16 %v163
    %v519 = vunpack.c.l.b16 %v164
    %v520 = vunpack.c.l.b16 %v165
    %v521 = vunpack.c.l.b16 %v166
    %v522 = vunpack.c.l.b16 %v167
    %v523 = vunpack.c.l.b16 %v168
    %v524 = vunpack.c.l.b16 %v169
    %v525 = vunpack.c.l.b16 %v170
    %v526 = vunpack.c.l.b16 %v171
    %v527 = vunpack.c.l.b16 %v172
    %v528 = vpack.c.b16 %v513, %v512
    %v529 = vpack.c.b16 %v515, %v514
    %v530 = vpack.c.b16 %v517, %v516
    %v531 = vpack.c.b16 %v519, %v518
    %v532 = vpack.c.b16 %v521, %v520
    %v533 = vpack.c.b16 %v523, %v522
    %v534 = vpack.c.b16 %v525, %v524
    %v535 = vpack.c.b16 %v527, %v526
    %544 = vmatpush.bf16.msra.mxu0 %v535
    %545 = vmatpush.bf16.msra.mxu0 %v534
    %546 = vmatpush.bf16.msra.mxu0 %v533
    %547 = vmatpush.bf16.msra.mxu0 %v532
    %548 = vmatpush.bf16.msra.mxu0 %v531
    %549 = vmatpush.bf16.msra.mxu0 %v530
    %550 = vmatpush.bf16.msra.mxu0 %v529
    %551 = vmatpush.bf16.msra.mxu0 %v528
    %552 = vmatmul.bf16.gmra.mxu0 %v253
    %v553 = vpop.f32.mrf.mxu0
    %v554 = vadd.f32 %v457, %v553
    %v555 = vpop.f32.mrf.mxu0
    %v556 = vadd.f32 %v459, %v555
    %557 = vmatmul.bf16.gmra.mxu0 %v254
    %v558 = vpop.f32.mrf.mxu0
    %v559 = vadd.f32 %v462, %v558
    %v560 = vpop.f32.mrf.mxu0
    %v561 = vadd.f32 %v464, %v560
    %562 = vmatmul.bf16.gmra.mxu0 %v255
    %v563 = vpop.f32.mrf.mxu0
    %v564 = vadd.f32 %v467, %v563
    %v565 = vpop.f32.mrf.mxu0
    %v566 = vadd.f32 %v469, %v565
    %567 = vmatmul.bf16.gmra.mxu0 %v256
    %v568 = vpop.f32.mrf.mxu0
    %v569 = vadd.f32 %v472, %v568
    %v570 = vpop.f32.mrf.mxu0
    %v571 = vadd.f32 %v474, %v570
    %572 = vmatmul.bf16.gmra.mxu0 %v257
    %v573 = vpop.f32.mrf.mxu0
    %v574 = vadd.f32 %v477, %v573
    %v575 = vpop.f32.mrf.mxu0
    %v576 = vadd.f32 %v479, %v575
    %577 = vmatmul.bf16.gmra.mxu0 %v258
    %v578 = vpop.f32.mrf.mxu0
    %v579 = vadd.f32 %v482, %v578
    %v580 = vpop.f32.mrf.mxu0
    %v581 = vadd.f32 %v484, %v580
    %582 = vmatmul.bf16.gmra.mxu0 %v259
    %v583 = vpop.f32.mrf.mxu0
    %v584 = vadd.f32 %v487, %v583
    %v585 = vpop.f32.mrf.mxu0
    %v586 = vadd.f32 %v489, %v585
    %587 = vmatmul.bf16.gmra.mxu0 %v260
    %v588 = vpop.f32.mrf.mxu0
    %v589 = vadd.f32 %v492, %v588
    %v590 = vpop.f32.mrf.mxu0
    %v591 = vadd.f32 %v494, %v590
    %592 = vdwg.mxu0
    %593 = vmatpush.bf16.msra.mxu0 %v390
    %594 = vmatpush.bf16.msra.mxu0 %v389
    %595 = vmatpush.bf16.msra.mxu0 %v388
    %596 = vmatpush.bf16.msra.mxu0 %v387
    %597 = vmatpush.bf16.msra.mxu0 %v386
    %598 = vmatpush.bf16.msra.mxu0 %v385
    %599 = vmatpush.bf16.msra.mxu0 %v384
    %600 = vmatpush.bf16.msra.mxu0 %v383
    %601 = vmatmul.bf16.gmra.mxu0 %v205
    %v602 = vpop.f32.mrf.mxu0
    %v603 = vadd.f32 0.0, %v602
    %v604 = vpop.f32.mrf.mxu0
    %v605 = vadd.f32 0.0, %v604
    %606 = vmatmul.bf16.gmra.mxu0 %v206
    %v607 = vpop.f32.mrf.mxu0
    %v608 = vadd.f32 0.0, %v607
    %v609 = vpop.f32.mrf.mxu0
    %v610 = vadd.f32 0.0, %v609
    %611 = vmatmul.bf16.gmra.mxu0 %v207
    %v612 = vpop.f32.mrf.mxu0
    %v613 = vadd.f32 0.0, %v612
    %v614 = vpop.f32.mrf.mxu0
    %v615 = vadd.f32 0.0, %v614
    %616 = vmatmul.bf16.gmra.mxu0 %v208
    %v617 = vpop.f32.mrf.mxu0
    %v618 = vadd.f32 0.0, %v617
    %v619 = vpop.f32.mrf.mxu0
    %v620 = vadd.f32 0.0, %v619
    %621 = vmatmul.bf16.gmra.mxu0 %v209
    %v622 = vpop.f32.mrf.mxu0
    %v623 = vadd.f32 0.0, %v622
    %v624 = vpop.f32.mrf.mxu0
    %v625 = vadd.f32 0.0, %v624
    %626 = vmatmul.bf16.gmra.mxu0 %v210
    %v627 = vpop.f32.mrf.mxu0
    %v628 = vadd.f32 0.0, %v627
    %v629 = vpop.f32.mrf.mxu0
    %v630 = vadd.f32 0.0, %v629
    %631 = vmatmul.bf16.gmra.mxu0 %v211
    %v632 = vpop.f32.mrf.mxu0
    %v633 = vadd.f32 0.0, %v632
    %v634 = vpop.f32.mrf.mxu0
    %v635 = vadd.f32 0.0, %v634
    %636 = vmatmul.bf16.gmra.mxu0 %v212
    %v637 = vpop.f32.mrf.mxu0
    %v638 = vadd.f32 0.0, %v637
    %v639 = vpop.f32.mrf.mxu0
    %v640 = vadd.f32 0.0, %v639
    %641 = vdwg.mxu0
    %v642 = vmul.f32 %v603, 2.0
    %v643 = vmul.f32 %v605, 2.0
    %v644 = vmul.f32 %v608, 2.0
    %v645 = vmul.f32 %v610, 2.0
    %v646 = vmul.f32 %v613, 2.0
    %v647 = vmul.f32 %v615, 2.0
    %v648 = vmul.f32 %v618, 2.0
    %v649 = vmul.f32 %v620, 2.0
    %v650 = vmul.f32 %v623, 2.0
    %v651 = vmul.f32 %v625, 2.0
    %v652 = vmul.f32 %v628, 2.0
    %v653 = vmul.f32 %v630, 2.0
    %v654 = vmul.f32 %v633, 2.0
    %v655 = vmul.f32 %v635, 2.0
    %v656 = vmul.f32 %v638, 2.0
    %v657 = vmul.f32 %v640, 2.0
    %v658 = vunpack.c.l.bf16 %v141
    %v659 = vunpack.c.l.bf16 %v142
    %v660 = vunpack.c.l.bf16 %v143
    %v661 = vunpack.c.l.bf16 %v144
    %v662 = vunpack.c.l.bf16 %v145
    %v663 = vunpack.c.l.bf16 %v146
    %v664 = vunpack.c.l.bf16 %v147
    %v665 = vunpack.c.l.bf16 %v148
    %v666 = vunpack.c.l.bf16 %v149
    %v667 = vunpack.c.l.bf16 %v150
    %v668 = vunpack.c.l.bf16 %v151
    %v669 = vunpack.c.l.bf16 %v152
    %v670 = vunpack.c.l.bf16 %v153
    %v671 = vunpack.c.l.bf16 %v154
    %v672 = vunpack.c.l.bf16 %v155
    %v673 = vunpack.c.l.bf16 %v156
    %v674 = vsub.f32 %v642, %v658
    %v675 = vsub.f32 %v643, %v659
    %v676 = vsub.f32 %v644, %v660
    %v677 = vsub.f32 %v645, %v661
    %v678 = vsub.f32 %v646, %v662
    %v679 = vsub.f32 %v647, %v663
    %v680 = vsub.f32 %v648, %v664
    %v681 = vsub.f32 %v649, %v665
    %v682 = vsub.f32 %v650, %v666
    %v683 = vsub.f32 %v651, %v667
    %v684 = vsub.f32 %v652, %v668
    %v685 = vsub.f32 %v653, %v669
    %v686 = vsub.f32 %v654, %v670
    %v687 = vsub.f32 %v655, %v671
    %v688 = vsub.f32 %v656, %v672
    %v689 = vsub.f32 %v657, %v673
    %v690 = vpack.c.bf16 %v674, %v674
    %v691 = vpack.c.bf16 %v675, %v675
    %v692 = vpack.c.bf16 %v676, %v676
    %v693 = vpack.c.bf16 %v677, %v677
    %v694 = vpack.c.bf16 %v678, %v678
    %v695 = vpack.c.bf16 %v679, %v679
    %v696 = vpack.c.bf16 %v680, %v680
    %v697 = vpack.c.bf16 %v681, %v681
    %v698 = vpack.c.bf16 %v682, %v682
    %v699 = vpack.c.bf16 %v683, %v683
    %v700 = vpack.c.bf16 %v684, %v684
    %v701 = vpack.c.bf16 %v685, %v685
    %v702 = vpack.c.bf16 %v686, %v686
    %v703 = vpack.c.bf16 %v687, %v687
    %v704 = vpack.c.bf16 %v688, %v688
    %v705 = vpack.c.bf16 %v689, %v689
    %s706 = scalar_lea.vmem [#allocation7], 128
    %v707 = vld [vmem:[%s706] sm:$0xf]
    %v708 = vld [vmem:[%s706 + $0x4] sm:$0xf]
    %v709 = vld [vmem:[%s706 + $0x8] sm:$0xf]
    %v710 = vld [vmem:[%s706 + $0xc] sm:$0xf]
    %v711 = vld [vmem:[%s706 + $0x10] sm:$0xf]
    %v712 = vld [vmem:[%s706 + $0x14] sm:$0xf]
    %v713 = vld [vmem:[%s706 + $0x18] sm:$0xf]
    %v714 = vld [vmem:[%s706 + $0x1c] sm:$0xf]
    %v715 = vld [vmem:[%s706 + $0x20] sm:$0xf]
    %v716 = vld [vmem:[%s706 + $0x24] sm:$0xf]
    %v717 = vld [vmem:[%s706 + $0x28] sm:$0xf]
    %v718 = vld [vmem:[%s706 + $0x2c] sm:$0xf]
    %v719 = vld [vmem:[%s706 + $0x30] sm:$0xf]
    %v720 = vld [vmem:[%s706 + $0x34] sm:$0xf]
    %v721 = vld [vmem:[%s706 + $0x38] sm:$0xf]
    %v722 = vld [vmem:[%s706 + $0x3c] sm:$0xf]
    %v739 = vunpack.c.l.b16 %v690
    %v740 = vunpack.c.l.b16 %v691
    %v741 = vunpack.c.l.b16 %v692
    %v742 = vunpack.c.l.b16 %v693
    %v743 = vunpack.c.l.b16 %v694
    %v744 = vunpack.c.l.b16 %v695
    %v745 = vunpack.c.l.b16 %v696
    %v746 = vunpack.c.l.b16 %v697
    %v747 = vunpack.c.l.b16 %v698
    %v748 = vunpack.c.l.b16 %v699
    %v749 = vunpack.c.l.b16 %v700
    %v750 = vunpack.c.l.b16 %v701
    %v751 = vunpack.c.l.b16 %v702
    %v752 = vunpack.c.l.b16 %v703
    %v753 = vunpack.c.l.b16 %v704
    %v754 = vunpack.c.l.b16 %v705
    %v755 = vpack.c.b16 %v740, %v739
    %v756 = vpack.c.b16 %v742, %v741
    %v757 = vpack.c.b16 %v744, %v743
    %v758 = vpack.c.b16 %v746, %v745
    %v759 = vpack.c.b16 %v748, %v747
    %v760 = vpack.c.b16 %v750, %v749
    %v761 = vpack.c.b16 %v752, %v751
    %v762 = vpack.c.b16 %v754, %v753
    %v787 = vunpack.c.l.b16 %v707
    %v788 = vunpack.c.l.b16 %v708
    %v789 = vunpack.c.l.b16 %v709
    %v790 = vunpack.c.l.b16 %v710
    %v791 = vunpack.c.l.b16 %v711
    %v792 = vunpack.c.l.b16 %v712
    %v793 = vunpack.c.l.b16 %v713
    %v794 = vunpack.c.l.b16 %v714
    %v795 = vunpack.c.l.b16 %v715
    %v796 = vunpack.c.l.b16 %v716
    %v797 = vunpack.c.l.b16 %v717
    %v798 = vunpack.c.l.b16 %v718
    %v799 = vunpack.c.l.b16 %v719
    %v800 = vunpack.c.l.b16 %v720
    %v801 = vunpack.c.l.b16 %v721
    %v802 = vunpack.c.l.b16 %v722
    %v803 = vpack.c.b16 %v788, %v787
    %v804 = vpack.c.b16 %v790, %v789
    %v805 = vpack.c.b16 %v792, %v791
    %v806 = vpack.c.b16 %v794, %v793
    %v807 = vpack.c.b16 %v796, %v795
    %v808 = vpack.c.b16 %v798, %v797
    %v809 = vpack.c.b16 %v800, %v799
    %v810 = vpack.c.b16 %v802, %v801
    %819 = vmatpush.bf16.msra.mxu0 %v810
    %820 = vmatpush.bf16.msra.mxu0 %v809
    %821 = vmatpush.bf16.msra.mxu0 %v808
    %822 = vmatpush.bf16.msra.mxu0 %v807
    %823 = vmatpush.bf16.msra.mxu0 %v806
    %824 = vmatpush.bf16.msra.mxu0 %v805
    %825 = vmatpush.bf16.msra.mxu0 %v804
    %826 = vmatpush.bf16.msra.mxu0 %v803
    %827 = vmatmul.bf16.gmra.mxu0 %v755
    %v828 = vpop.f32.mrf.mxu0
    %v829 = vadd.f32 0.0, %v828
    %v830 = vpop.f32.mrf.mxu0
    %v831 = vadd.f32 0.0, %v830
    %832 = vmatmul.bf16.gmra.mxu0 %v756
    %v833 = vpop.f32.mrf.mxu0
    %v834 = vadd.f32 0.0, %v833
    %v835 = vpop.f32.mrf.mxu0
    %v836 = vadd.f32 0.0, %v835
    %837 = vmatmul.bf16.gmra.mxu0 %v757
    %v838 = vpop.f32.mrf.mxu0
    %v839 = vadd.f32 0.0, %v838
    %v840 = vpop.f32.mrf.mxu0
    %v841 = vadd.f32 0.0, %v840
    %842 = vmatmul.bf16.gmra.mxu0 %v758
    %v843 = vpop.f32.mrf.mxu0
    %v844 = vadd.f32 0.0, %v843
    %v845 = vpop.f32.mrf.mxu0
    %v846 = vadd.f32 0.0, %v845
    %847 = vmatmul.bf16.gmra.mxu0 %v759
    %v848 = vpop.f32.mrf.mxu0
    %v849 = vadd.f32 0.0, %v848
    %v850 = vpop.f32.mrf.mxu0
    %v851 = vadd.f32 0.0, %v850
    %852 = vmatmul.bf16.gmra.mxu0 %v760
    %v853 = vpop.f32.mrf.mxu0
    %v854 = vadd.f32 0.0, %v853
    %v855 = vpop.f32.mrf.mxu0
    %v856 = vadd.f32 0.0, %v855
    %857 = vmatmul.bf16.gmra.mxu0 %v761
    %v858 = vpop.f32.mrf.mxu0
    %v859 = vadd.f32 0.0, %v858
    %v860 = vpop.f32.mrf.mxu0
    %v861 = vadd.f32 0.0, %v860
    %862 = vmatmul.bf16.gmra.mxu0 %v762
    %v863 = vpop.f32.mrf.mxu0
    %v864 = vadd.f32 0.0, %v863
    %v865 = vpop.f32.mrf.mxu0
    %v866 = vadd.f32 0.0, %v865
    %867 = vdwg.mxu0
    %v868 = vadd.f32 %v554, %v829
    %v869 = vadd.f32 %v556, %v831
    %v870 = vadd.f32 %v559, %v834
    %v871 = vadd.f32 %v561, %v836
    %v872 = vadd.f32 %v564, %v839
    %v873 = vadd.f32 %v566, %v841
    %v874 = vadd.f32 %v569, %v844
    %v875 = vadd.f32 %v571, %v846
    %v876 = vadd.f32 %v574, %v849
    %v877 = vadd.f32 %v576, %v851
    %v878 = vadd.f32 %v579, %v854
    %v879 = vadd.f32 %v581, %v856
    %v880 = vadd.f32 %v584, %v859
    %v881 = vadd.f32 %v586, %v861
    %v882 = vadd.f32 %v589, %v864
    %v883 = vadd.f32 %v591, %v866
    %884 = vmatpush.bf16.msra.mxu0 %v762
    %885 = vmatpush.bf16.msra.mxu0 %v761
    %886 = vmatpush.bf16.msra.mxu0 %v760
    %887 = vmatpush.bf16.msra.mxu0 %v759
    %888 = vmatpush.bf16.msra.mxu0 %v758
    %889 = vmatpush.bf16.msra.mxu0 %v757
    %890 = vmatpush.bf16.msra.mxu0 %v756
    %891 = vmatpush.bf16.msra.mxu0 %v755
    %892 = vmatmul.bf16.gmra.mxu0 %v205
    %v893 = vpop.f32.mrf.mxu0
    %v894 = vadd.f32 0.0, %v893
    %v895 = vpop.f32.mrf.mxu0
    %v896 = vadd.f32 0.0, %v895
    %897 = vmatmul.bf16.gmra.mxu0 %v206
    %v898 = vpop.f32.mrf.mxu0
    %v899 = vadd.f32 0.0, %v898
    %v900 = vpop.f32.mrf.mxu0
    %v901 = vadd.f32 0.0, %v900
    %902 = vmatmul.bf16.gmra.mxu0 %v207
    %v903 = vpop.f32.mrf.mxu0
    %v904 = vadd.f32 0.0, %v903
    %v905 = vpop.f32.mrf.mxu0
    %v906 = vadd.f32 0.0, %v905
    %907 = vmatmul.bf16.gmra.mxu0 %v208
    %v908 = vpop.f32.mrf.mxu0
    %v909 = vadd.f32 0.0, %v908
    %v910 = vpop.f32.mrf.mxu0
    %v911 = vadd.f32 0.0, %v910
    %912 = vmatmul.bf16.gmra.mxu0 %v209
    %v913 = vpop.f32.mrf.mxu0
    %v914 = vadd.f32 0.0, %v913
    %v915 = vpop.f32.mrf.mxu0
    %v916 = vadd.f32 0.0, %v915
    %917 = vmatmul.bf16.gmra.mxu0 %v210
    %v918 = vpop.f32.mrf.mxu0
    %v919 = vadd.f32 0.0, %v918
    %v920 = vpop.f32.mrf.mxu0
    %v921 = vadd.f32 0.0, %v920
    %922 = vmatmul.bf16.gmra.mxu0 %v211
    %v923 = vpop.f32.mrf.mxu0
    %v924 = vadd.f32 0.0, %v923
    %v925 = vpop.f32.mrf.mxu0
    %v926 = vadd.f32 0.0, %v925
    %927 = vmatmul.bf16.gmra.mxu0 %v212
    %v928 = vpop.f32.mrf.mxu0
    %v929 = vadd.f32 0.0, %v928
    %v930 = vpop.f32.mrf.mxu0
    %v931 = vadd.f32 0.0, %v930
    %932 = vdwg.mxu0
    %v933 = vmul.f32 %v894, 2.0
    %v934 = vmul.f32 %v896, 2.0
    %v935 = vmul.f32 %v899, 2.0
    %v936 = vmul.f32 %v901, 2.0
    %v937 = vmul.f32 %v904, 2.0
    %v938 = vmul.f32 %v906, 2.0
    %v939 = vmul.f32 %v909, 2.0
    %v940 = vmul.f32 %v911, 2.0
    %v941 = vmul.f32 %v914, 2.0
    %v942 = vmul.f32 %v916, 2.0
    %v943 = vmul.f32 %v919, 2.0
    %v944 = vmul.f32 %v921, 2.0
    %v945 = vmul.f32 %v924, 2.0
    %v946 = vmul.f32 %v926, 2.0
    %v947 = vmul.f32 %v929, 2.0
    %v948 = vmul.f32 %v931, 2.0
    %v949 = vunpack.c.l.bf16 %v318
    %v950 = vunpack.c.l.bf16 %v319
    %v951 = vunpack.c.l.bf16 %v320
    %v952 = vunpack.c.l.bf16 %v321
    %v953 = vunpack.c.l.bf16 %v322
    %v954 = vunpack.c.l.bf16 %v323
    %v955 = vunpack.c.l.bf16 %v324
    %v956 = vunpack.c.l.bf16 %v325
    %v957 = vunpack.c.l.bf16 %v326
    %v958 = vunpack.c.l.bf16 %v327
    %v959 = vunpack.c.l.bf16 %v328
    %v960 = vunpack.c.l.bf16 %v329
    %v961 = vunpack.c.l.bf16 %v330
    %v962 = vunpack.c.l.bf16 %v331
    %v963 = vunpack.c.l.bf16 %v332
    %v964 = vunpack.c.l.bf16 %v333
    %v965 = vsub.f32 %v933, %v949
    %v966 = vsub.f32 %v934, %v950
    %v967 = vsub.f32 %v935, %v951
    %v968 = vsub.f32 %v936, %v952
    %v969 = vsub.f32 %v937, %v953
    %v970 = vsub.f32 %v938, %v954
    %v971 = vsub.f32 %v939, %v955
    %v972 = vsub.f32 %v940, %v956
    %v973 = vsub.f32 %v941, %v957
    %v974 = vsub.f32 %v942, %v958
    %v975 = vsub.f32 %v943, %v959
    %v976 = vsub.f32 %v944, %v960
    %v977 = vsub.f32 %v945, %v961
    %v978 = vsub.f32 %v946, %v962
    %v979 = vsub.f32 %v947, %v963
    %v980 = vsub.f32 %v948, %v964
    %v981 = vpack.c.bf16 %v966, %v965
    %v982 = vpack.c.bf16 %v968, %v967
    %v983 = vpack.c.bf16 %v970, %v969
    %v984 = vpack.c.bf16 %v972, %v971
    %v985 = vpack.c.bf16 %v974, %v973
    %v986 = vpack.c.bf16 %v976, %v975
    %v987 = vpack.c.bf16 %v978, %v977
    %v988 = vpack.c.bf16 %v980, %v979
    %s989 = scalar_lea.vmem [#allocation7], 192
    %v990 = vld [vmem:[%s989] sm:$0xf]
    %v991 = vld [vmem:[%s989 + $0x4] sm:$0xf]
    %v992 = vld [vmem:[%s989 + $0x8] sm:$0xf]
    %v993 = vld [vmem:[%s989 + $0xc] sm:$0xf]
    %v994 = vld [vmem:[%s989 + $0x10] sm:$0xf]
    %v995 = vld [vmem:[%s989 + $0x14] sm:$0xf]
    %v996 = vld [vmem:[%s989 + $0x18] sm:$0xf]
    %v997 = vld [vmem:[%s989 + $0x1c] sm:$0xf]
    %v998 = vld [vmem:[%s989 + $0x20] sm:$0xf]
    %v999 = vld [vmem:[%s989 + $0x24] sm:$0xf]
    %v1000 = vld [vmem:[%s989 + $0x28] sm:$0xf]
    %v1001 = vld [vmem:[%s989 + $0x2c] sm:$0xf]
    %v1002 = vld [vmem:[%s989 + $0x30] sm:$0xf]
    %v1003 = vld [vmem:[%s989 + $0x34] sm:$0xf]
    %v1004 = vld [vmem:[%s989 + $0x38] sm:$0xf]
    %v1005 = vld [vmem:[%s989 + $0x3c] sm:$0xf]
    %v1022 = vunpack.c.l.b16 %v990
    %v1023 = vunpack.c.l.b16 %v991
    %v1024 = vunpack.c.l.b16 %v992
    %v1025 = vunpack.c.l.b16 %v993
    %v1026 = vunpack.c.l.b16 %v994
    %v1027 = vunpack.c.l.b16 %v995
    %v1028 = vunpack.c.l.b16 %v996
    %v1029 = vunpack.c.l.b16 %v997
    %v1030 = vunpack.c.l.b16 %v998
    %v1031 = vunpack.c.l.b16 %v999
    %v1032 = vunpack.c.l.b16 %v1000
    %v1033 = vunpack.c.l.b16 %v1001
    %v1034 = vunpack.c.l.b16 %v1002
    %v1035 = vunpack.c.l.b16 %v1003
    %v1036 = vunpack.c.l.b16 %v1004
    %v1037 = vunpack.c.l.b16 %v1005
    %v1038 = vpack.c.b16 %v1023, %v1022
    %v1039 = vpack.c.b16 %v1025, %v1024
    %v1040 = vpack.c.b16 %v1027, %v1026
    %v1041 = vpack.c.b16 %v1029, %v1028
    %v1042 = vpack.c.b16 %v1031, %v1030
    %v1043 = vpack.c.b16 %v1033, %v1032
    %v1044 = vpack.c.b16 %v1035, %v1034
    %v1045 = vpack.c.b16 %v1037, %v1036
    %1054 = vmatpush.bf16.msra.mxu0 %v1045
    %1055 = vmatpush.bf16.msra.mxu0 %v1044
    %1056 = vmatpush.bf16.msra.mxu0 %v1043
    %1057 = vmatpush.bf16.msra.mxu0 %v1042
    %1058 = vmatpush.bf16.msra.mxu0 %v1041
    %1059 = vmatpush.bf16.msra.mxu0 %v1040
    %1060 = vmatpush.bf16.msra.mxu0 %v1039
    %1061 = vmatpush.bf16.msra.mxu0 %v1038
    %1062 = vmatmul.bf16.gmra.mxu0 %v981
    %v1063 = vpop.f32.mrf.mxu0
    %v1064 = vadd.f32 0.0, %v1063
    %v1065 = vpop.f32.mrf.mxu0
    %v1066 = vadd.f32 0.0, %v1065
    %1067 = vmatmul.bf16.gmra.mxu0 %v982
    %v1068 = vpop.f32.mrf.mxu0
    %v1069 = vadd.f32 0.0, %v1068
    %v1070 = vpop.f32.mrf.mxu0
    %v1071 = vadd.f32 0.0, %v1070
    %1072 = vmatmul.bf16.gmra.mxu0 %v983
    %v1073 = vpop.f32.mrf.mxu0
    %v1074 = vadd.f32 0.0, %v1073
    %v1075 = vpop.f32.mrf.mxu0
    %v1076 = vadd.f32 0.0, %v1075
    %1077 = vmatmul.bf16.gmra.mxu0 %v984
    %v1078 = vpop.f32.mrf.mxu0
    %v1079 = vadd.f32 0.0, %v1078
    %v1080 = vpop.f32.mrf.mxu0
    %v1081 = vadd.f32 0.0, %v1080
    %1082 = vmatmul.bf16.gmra.mxu0 %v985
    %v1083 = vpop.f32.mrf.mxu0
    %v1084 = vadd.f32 0.0, %v1083
    %v1085 = vpop.f32.mrf.mxu0
    %v1086 = vadd.f32 0.0, %v1085
    %1087 = vmatmul.bf16.gmra.mxu0 %v986
    %v1088 = vpop.f32.mrf.mxu0
    %v1089 = vadd.f32 0.0, %v1088
    %v1090 = vpop.f32.mrf.mxu0
    %v1091 = vadd.f32 0.0, %v1090
    %1092 = vmatmul.bf16.gmra.mxu0 %v987
    %v1093 = vpop.f32.mrf.mxu0
    %v1094 = vadd.f32 0.0, %v1093
    %v1095 = vpop.f32.mrf.mxu0
    %v1096 = vadd.f32 0.0, %v1095
    %1097 = vmatmul.bf16.gmra.mxu0 %v988
    %v1098 = vpop.f32.mrf.mxu0
    %v1099 = vadd.f32 0.0, %v1098
    %v1100 = vpop.f32.mrf.mxu0
    %v1101 = vadd.f32 0.0, %v1100
    %1102 = vdwg.mxu0
    %v1103 = vadd.f32 %v868, %v1064
    %v1104 = vadd.f32 %v869, %v1066
    %v1105 = vadd.f32 %v870, %v1069
    %v1106 = vadd.f32 %v871, %v1071
    %v1107 = vadd.f32 %v872, %v1074
    %v1108 = vadd.f32 %v873, %v1076
    %v1109 = vadd.f32 %v874, %v1079
    %v1110 = vadd.f32 %v875, %v1081
    %v1111 = vadd.f32 %v876, %v1084
    %v1112 = vadd.f32 %v877, %v1086
    %v1113 = vadd.f32 %v878, %v1089
    %v1114 = vadd.f32 %v879, %v1091
    %v1115 = vadd.f32 %v880, %v1094
    %v1116 = vadd.f32 %v881, %v1096
    %v1117 = vadd.f32 %v882, %v1099
    %v1118 = vadd.f32 %v883, %v1101
    %1119 = vmatpush.bf16.msra.mxu0 %v988
    %1120 = vmatpush.bf16.msra.mxu0 %v987
    %1121 = vmatpush.bf16.msra.mxu0 %v986
    %1122 = vmatpush.bf16.msra.mxu0 %v985
    %1123 = vmatpush.bf16.msra.mxu0 %v984
    %1124 = vmatpush.bf16.msra.mxu0 %v983
    %1125 = vmatpush.bf16.msra.mxu0 %v982
    %1126 = vmatpush.bf16.msra.mxu0 %v981
    %1127 = vmatmul.bf16.gmra.mxu0 %v205
    %v1128 = vpop.f32.mrf.mxu0
    %v1129 = vadd.f32 0.0, %v1128
    %v1130 = vpop.f32.mrf.mxu0
    %v1131 = vadd.f32 0.0, %v1130
    %1132 = vmatmul.bf16.gmra.mxu0 %v206
    %v1133 = vpop.f32.mrf.mxu0
    %v1134 = vadd.f32 0.0, %v1133
    %v1135 = vpop.f32.mrf.mxu0
    %v1136 = vadd.f32 0.0, %v1135
    %1137 = vmatmul.bf16.gmra.mxu0 %v207
    %v1138 = vpop.f32.mrf.mxu0
    %v1139 = vadd.f32 0.0, %v1138
    %v1140 = vpop.f32.mrf.mxu0
    %v1141 = vadd.f32 0.0, %v1140
    %1142 = vmatmul.bf16.gmra.mxu0 %v208
    %v1143 = vpop.f32.mrf.mxu0
    %v1144 = vadd.f32 0.0, %v1143
    %v1145 = vpop.f32.mrf.mxu0
    %v1146 = vadd.f32 0.0, %v1145
    %1147 = vmatmul.bf16.gmra.mxu0 %v209
    %v1148 = vpop.f32.mrf.mxu0
    %v1149 = vadd.f32 0.0, %v1148
    %v1150 = vpop.f32.mrf.mxu0
    %v1151 = vadd.f32 0.0, %v1150
    %1152 = vmatmul.bf16.gmra.mxu0 %v210
    %v1153 = vpop.f32.mrf.mxu0
    %v1154 = vadd.f32 0.0, %v1153
    %v1155 = vpop.f32.mrf.mxu0
    %v1156 = vadd.f32 0.0, %v1155
    %1157 = vmatmul.bf16.gmra.mxu0 %v211
    %v1158 = vpop.f32.mrf.mxu0
    %v1159 = vadd.f32 0.0, %v1158
    %v1160 = vpop.f32.mrf.mxu0
    %v1161 = vadd.f32 0.0, %v1160
    %1162 = vmatmul.bf16.gmra.mxu0 %v212
    %v1163 = vpop.f32.mrf.mxu0
    %v1164 = vadd.f32 0.0, %v1163
    %v1165 = vpop.f32.mrf.mxu0
    %v1166 = vadd.f32 0.0, %v1165
    %1167 = vdwg.mxu0
    %v1168 = vmul.f32 %v1129, 2.0
    %v1169 = vmul.f32 %v1131, 2.0
    %v1170 = vmul.f32 %v1134, 2.0
    %v1171 = vmul.f32 %v1136, 2.0
    %v1172 = vmul.f32 %v1139, 2.0
    %v1173 = vmul.f32 %v1141, 2.0
    %v1174 = vmul.f32 %v1144, 2.0
    %v1175 = vmul.f32 %v1146, 2.0
    %v1176 = vmul.f32 %v1149, 2.0
    %v1177 = vmul.f32 %v1151, 2.0
    %v1178 = vmul.f32 %v1154, 2.0
    %v1179 = vmul.f32 %v1156, 2.0
    %v1180 = vmul.f32 %v1159, 2.0
    %v1181 = vmul.f32 %v1161, 2.0
    %v1182 = vmul.f32 %v1164, 2.0
    %v1183 = vmul.f32 %v1166, 2.0
    %v1184 = vunpack.c.l.bf16 %v690
    %v1185 = vunpack.c.l.bf16 %v691
    %v1186 = vunpack.c.l.bf16 %v692
    %v1187 = vunpack.c.l.bf16 %v693
    %v1188 = vunpack.c.l.bf16 %v694
    %v1189 = vunpack.c.l.bf16 %v695
    %v1190 = vunpack.c.l.bf16 %v696
    %v1191 = vunpack.c.l.bf16 %v697
    %v1192 = vunpack.c.l.bf16 %v698
    %v1193 = vunpack.c.l.bf16 %v699
    %v1194 = vunpack.c.l.bf16 %v700
    %v1195 = vunpack.c.l.bf16 %v701
    %v1196 = vunpack.c.l.bf16 %v702
    %v1197 = vunpack.c.l.bf16 %v703
    %v1198 = vunpack.c.l.bf16 %v704
    %v1199 = vunpack.c.l.bf16 %v705
    %v1200 = vsub.f32 %v1168, %v1184
    %v1201 = vsub.f32 %v1169, %v1185
    %v1202 = vsub.f32 %v1170, %v1186
    %v1203 = vsub.f32 %v1171, %v1187
    %v1204 = vsub.f32 %v1172, %v1188
    %v1205 = vsub.f32 %v1173, %v1189
    %v1206 = vsub.f32 %v1174, %v1190
    %v1207 = vsub.f32 %v1175, %v1191
    %v1208 = vsub.f32 %v1176, %v1192
    %v1209 = vsub.f32 %v1177, %v1193
    %v1210 = vsub.f32 %v1178, %v1194
    %v1211 = vsub.f32 %v1179, %v1195
    %v1212 = vsub.f32 %v1180, %v1196
    %v1213 = vsub.f32 %v1181, %v1197
    %v1214 = vsub.f32 %v1182, %v1198
    %v1215 = vsub.f32 %v1183, %v1199
    %v1216 = vpack.c.bf16 %v1201, %v1200
    %v1217 = vpack.c.bf16 %v1203, %v1202
    %v1218 = vpack.c.bf16 %v1205, %v1204
    %v1219 = vpack.c.bf16 %v1207, %v1206
    %v1220 = vpack.c.bf16 %v1209, %v1208
    %v1221 = vpack.c.bf16 %v1211, %v1210
    %v1222 = vpack.c.bf16 %v1213, %v1212
    %v1223 = vpack.c.bf16 %v1215, %v1214
    %s1224 = scalar_lea.vmem [#allocation7], 256
    %v1225 = vld [vmem:[%s1224] sm:$0xf]
    %v1226 = vld [vmem:[%s1224 + $0x4] sm:$0xf]
    %v1227 = vld [vmem:[%s1224 + $0x8] sm:$0xf]
    %v1228 = vld [vmem:[%s1224 + $0xc] sm:$0xf]
    %v1229 = vld [vmem:[%s1224 + $0x10] sm:$0xf]
    %v1230 = vld [vmem:[%s1224 + $0x14] sm:$0xf]
    %v1231 = vld [vmem:[%s1224 + $0x18] sm:$0xf]
    %v1232 = vld [vmem:[%s1224 + $0x1c] sm:$0xf]
    %v1233 = vld [vmem:[%s1224 + $0x20] sm:$0xf]
    %v1234 = vld [vmem:[%s1224 + $0x24] sm:$0xf]
    %v1235 = vld [vmem:[%s1224 + $0x28] sm:$0xf]
    %v1236 = vld [vmem:[%s1224 + $0x2c] sm:$0xf]
    %v1237 = vld [vmem:[%s1224 + $0x30] sm:$0xf]
    %v1238 = vld [vmem:[%s1224 + $0x34] sm:$0xf]
    %v1239 = vld [vmem:[%s1224 + $0x38] sm:$0xf]
    %v1240 = vld [vmem:[%s1224 + $0x3c] sm:$0xf]
    %v1257 = vunpack.c.l.b16 %v1225
    %v1258 = vunpack.c.l.b16 %v1226
    %v1259 = vunpack.c.l.b16 %v1227
    %v1260 = vunpack.c.l.b16 %v1228
    %v1261 = vunpack.c.l.b16 %v1229
    %v1262 = vunpack.c.l.b16 %v1230
    %v1263 = vunpack.c.l.b16 %v1231
    %v1264 = vunpack.c.l.b16 %v1232
    %v1265 = vunpack.c.l.b16 %v1233
    %v1266 = vunpack.c.l.b16 %v1234
    %v1267 = vunpack.c.l.b16 %v1235
    %v1268 = vunpack.c.l.b16 %v1236
    %v1269 = vunpack.c.l.b16 %v1237
    %v1270 = vunpack.c.l.b16 %v1238
    %v1271 = vunpack.c.l.b16 %v1239
    %v1272 = vunpack.c.l.b16 %v1240
    %v1273 = vpack.c.b16 %v1258, %v1257
    %v1274 = vpack.c.b16 %v1260, %v1259
    %v1275 = vpack.c.b16 %v1262, %v1261
    %v1276 = vpack.c.b16 %v1264, %v1263
    %v1277 = vpack.c.b16 %v1266, %v1265
    %v1278 = vpack.c.b16 %v1268, %v1267
    %v1279 = vpack.c.b16 %v1270, %v1269
    %v1280 = vpack.c.b16 %v1272, %v1271
    %1289 = vmatpush.bf16.msra.mxu0 %v1280
    %1290 = vmatpush.bf16.msra.mxu0 %v1279
    %1291 = vmatpush.bf16.msra.mxu0 %v1278
    %1292 = vmatpush.bf16.msra.mxu0 %v1277
    %1293 = vmatpush.bf16.msra.mxu0 %v1276
    %1294 = vmatpush.bf16.msra.mxu0 %v1275
    %1295 = vmatpush.bf16.msra.mxu0 %v1274
    %1296 = vmatpush.bf16.msra.mxu0 %v1273
    %1297 = vmatmul.bf16.gmra.mxu0 %v1216
    %v1298 = vpop.f32.mrf.mxu0
    %v1299 = vadd.f32 0.0, %v1298
    %v1300 = vpop.f32.mrf.mxu0
    %v1301 = vadd.f32 0.0, %v1300
    %1302 = vmatmul.bf16.gmra.mxu0 %v1217
    %v1303 = vpop.f32.mrf.mxu0
    %v1304 = vadd.f32 0.0, %v1303
    %v1305 = vpop.f32.mrf.mxu0
    %v1306 = vadd.f32 0.0, %v1305
    %1307 = vmatmul.bf16.gmra.mxu0 %v1218
    %v1308 = vpop.f32.mrf.mxu0
    %v1309 = vadd.f32 0.0, %v1308
    %v1310 = vpop.f32.mrf.mxu0
    %v1311 = vadd.f32 0.0, %v1310
    %1312 = vmatmul.bf16.gmra.mxu0 %v1219
    %v1313 = vpop.f32.mrf.mxu0
    %v1314 = vadd.f32 0.0, %v1313
    %v1315 = vpop.f32.mrf.mxu0
    %v1316 = vadd.f32 0.0, %v1315
    %1317 = vmatmul.bf16.gmra.mxu0 %v1220
    %v1318 = vpop.f32.mrf.mxu0
    %v1319 = vadd.f32 0.0, %v1318
    %v1320 = vpop.f32.mrf.mxu0
    %v1321 = vadd.f32 0.0, %v1320
    %1322 = vmatmul.bf16.gmra.mxu0 %v1221
    %v1323 = vpop.f32.mrf.mxu0
    %v1324 = vadd.f32 0.0, %v1323
    %v1325 = vpop.f32.mrf.mxu0
    %v1326 = vadd.f32 0.0, %v1325
    %1327 = vmatmul.bf16.gmra.mxu0 %v1222
    %v1328 = vpop.f32.mrf.mxu0
    %v1329 = vadd.f32 0.0, %v1328
    %v1330 = vpop.f32.mrf.mxu0
    %v1331 = vadd.f32 0.0, %v1330
    %1332 = vmatmul.bf16.gmra.mxu0 %v1223
    %v1333 = vpop.f32.mrf.mxu0
    %v1334 = vadd.f32 0.0, %v1333
    %v1335 = vpop.f32.mrf.mxu0
    %v1336 = vadd.f32 0.0, %v1335
    %1337 = vdwg.mxu0
    %v1338 = vadd.f32 %v1103, %v1299
    %v1339 = vadd.f32 %v1104, %v1301
    %v1340 = vadd.f32 %v1105, %v1304
    %v1341 = vadd.f32 %v1106, %v1306
    %v1342 = vadd.f32 %v1107, %v1309
    %v1343 = vadd.f32 %v1108, %v1311
    %v1344 = vadd.f32 %v1109, %v1314
    %v1345 = vadd.f32 %v1110, %v1316
    %v1346 = vadd.f32 %v1111, %v1319
    %v1347 = vadd.f32 %v1112, %v1321
    %v1348 = vadd.f32 %v1113, %v1324
    %v1349 = vadd.f32 %v1114, %v1326
    %v1350 = vadd.f32 %v1115, %v1329
    %v1351 = vadd.f32 %v1116, %v1331
    %v1352 = vadd.f32 %v1117, %v1334
    %v1353 = vadd.f32 %v1118, %v1336
    %v1354 = vld [vmem:[%s3] sm:$0x1]
    %v1356 = vperm.slane %v1354, 0
    %v1358 = vadd.f32 %v1338, %v1356
    %v1359 = vadd.f32 %v1339, %v1356
    %v1360 = vadd.f32 %v1340, %v1356
    %v1361 = vadd.f32 %v1341, %v1356
    %v1362 = vadd.f32 %v1342, %v1356
    %v1363 = vadd.f32 %v1343, %v1356
    %v1364 = vadd.f32 %v1344, %v1356
    %v1365 = vadd.f32 %v1345, %v1356
    %v1366 = vadd.f32 %v1346, %v1356
    %v1367 = vadd.f32 %v1347, %v1356
    %v1368 = vadd.f32 %v1348, %v1356
    %v1369 = vadd.f32 %v1349, %v1356
    %v1370 = vadd.f32 %v1350, %v1356
    %v1371 = vadd.f32 %v1351, %v1356
    %v1372 = vadd.f32 %v1352, %v1356
    %v1373 = vadd.f32 %v1353, %v1356
    %v1374 = vmax.f32 %v1358, 0.0
    %v1375 = vmax.f32 %v1359, 0.0
    %v1376 = vmax.f32 %v1360, 0.0
    %v1377 = vmax.f32 %v1361, 0.0
    %v1378 = vmax.f32 %v1362, 0.0
    %v1379 = vmax.f32 %v1363, 0.0
    %v1380 = vmax.f32 %v1364, 0.0
    %v1381 = vmax.f32 %v1365, 0.0
    %v1382 = vmax.f32 %v1366, 0.0
    %v1383 = vmax.f32 %v1367, 0.0
    %v1384 = vmax.f32 %v1368, 0.0
    %v1385 = vmax.f32 %v1369, 0.0
    %v1386 = vmax.f32 %v1370, 0.0
    %v1387 = vmax.f32 %v1371, 0.0
    %v1388 = vmax.f32 %v1372, 0.0
    %v1389 = vmax.f32 %v1373, 0.0
    %v1390 = vpack.c.bf16 %v1374, %v1374
    %v1391 = vpack.c.bf16 %v1375, %v1375
    %v1392 = vpack.c.bf16 %v1376, %v1376
    %v1393 = vpack.c.bf16 %v1377, %v1377
    %v1394 = vpack.c.bf16 %v1378, %v1378
    %v1395 = vpack.c.bf16 %v1379, %v1379
    %v1396 = vpack.c.bf16 %v1380, %v1380
    %v1397 = vpack.c.bf16 %v1381, %v1381
    %v1398 = vpack.c.bf16 %v1382, %v1382
    %v1399 = vpack.c.bf16 %v1383, %v1383
    %v1400 = vpack.c.bf16 %v1384, %v1384
    %v1401 = vpack.c.bf16 %v1385, %v1385
    %v1402 = vpack.c.bf16 %v1386, %v1386
    %v1403 = vpack.c.bf16 %v1387, %v1387
    %v1404 = vpack.c.bf16 %v1388, %v1388
    %v1405 = vpack.c.bf16 %v1389, %v1389
    %v1406 = vld [vmem:[#allocation8] sm:$0xf]
    %v1407 = vld [vmem:[#allocation8 + $0x4] sm:$0xf]
    %v1408 = vld [vmem:[#allocation8 + $0x8] sm:$0xf]
    %v1409 = vld [vmem:[#allocation8 + $0xc] sm:$0xf]
    %v1410 = vld [vmem:[#allocation8 + $0x10] sm:$0xf]
    %v1411 = vld [vmem:[#allocation8 + $0x14] sm:$0xf]
    %v1412 = vld [vmem:[#allocation8 + $0x18] sm:$0xf]
    %v1413 = vld [vmem:[#allocation8 + $0x1c] sm:$0xf]
    %v1414 = vld [vmem:[#allocation8 + $0x20] sm:$0xf]
    %v1415 = vld [vmem:[#allocation8 + $0x24] sm:$0xf]
    %v1416 = vld [vmem:[#allocation8 + $0x28] sm:$0xf]
    %v1417 = vld [vmem:[#allocation8 + $0x2c] sm:$0xf]
    %v1418 = vld [vmem:[#allocation8 + $0x30] sm:$0xf]
    %v1419 = vld [vmem:[#allocation8 + $0x34] sm:$0xf]
    %v1420 = vld [vmem:[#allocation8 + $0x38] sm:$0xf]
    %v1421 = vld [vmem:[#allocation8 + $0x3c] sm:$0xf]
    %v1438 = vunpack.c.l.b16 %v1390
    %v1439 = vunpack.c.l.b16 %v1391
    %v1440 = vunpack.c.l.b16 %v1392
    %v1441 = vunpack.c.l.b16 %v1393
    %v1442 = vunpack.c.l.b16 %v1394
    %v1443 = vunpack.c.l.b16 %v1395
    %v1444 = vunpack.c.l.b16 %v1396
    %v1445 = vunpack.c.l.b16 %v1397
    %v1446 = vunpack.c.l.b16 %v1398
    %v1447 = vunpack.c.l.b16 %v1399
    %v1448 = vunpack.c.l.b16 %v1400
    %v1449 = vunpack.c.l.b16 %v1401
    %v1450 = vunpack.c.l.b16 %v1402
    %v1451 = vunpack.c.l.b16 %v1403
    %v1452 = vunpack.c.l.b16 %v1404
    %v1453 = vunpack.c.l.b16 %v1405
    %v1454 = vpack.c.b16 %v1439, %v1438
    %v1455 = vpack.c.b16 %v1441, %v1440
    %v1456 = vpack.c.b16 %v1443, %v1442
    %v1457 = vpack.c.b16 %v1445, %v1444
    %v1458 = vpack.c.b16 %v1447, %v1446
    %v1459 = vpack.c.b16 %v1449, %v1448
    %v1460 = vpack.c.b16 %v1451, %v1450
    %v1461 = vpack.c.b16 %v1453, %v1452
    %1470 = vmatpush.bf16.msra.mxu0 %v1461
    %1471 = vmatpush.bf16.msra.mxu0 %v1460
    %1472 = vmatpush.bf16.msra.mxu0 %v1459
    %1473 = vmatpush.bf16.msra.mxu0 %v1458
    %1474 = vmatpush.bf16.msra.mxu0 %v1457
    %1475 = vmatpush.bf16.msra.mxu0 %v1456
    %1476 = vmatpush.bf16.msra.mxu0 %v1455
    %1477 = vmatpush.bf16.msra.mxu0 %v1454
    %1478 = vmatmul.bf16.gmra.mxu0 %v205
    %v1479 = vpop.f32.mrf.mxu0
    %v1480 = vadd.f32 0.0, %v1479
    %v1481 = vpop.f32.mrf.mxu0
    %v1482 = vadd.f32 0.0, %v1481
    %1483 = vmatmul.bf16.gmra.mxu0 %v206
    %v1484 = vpop.f32.mrf.mxu0
    %v1485 = vadd.f32 0.0, %v1484
    %v1486 = vpop.f32.mrf.mxu0
    %v1487 = vadd.f32 0.0, %v1486
    %1488 = vmatmul.bf16.gmra.mxu0 %v207
    %v1489 = vpop.f32.mrf.mxu0
    %v1490 = vadd.f32 0.0, %v1489
    %v1491 = vpop.f32.mrf.mxu0
    %v1492 = vadd.f32 0.0, %v1491
    %1493 = vmatmul.bf16.gmra.mxu0 %v208
    %v1494 = vpop.f32.mrf.mxu0
    %v1495 = vadd.f32 0.0, %v1494
    %v1496 = vpop.f32.mrf.mxu0
    %v1497 = vadd.f32 0.0, %v1496
    %1498 = vmatmul.bf16.gmra.mxu0 %v209
    %v1499 = vpop.f32.mrf.mxu0
    %v1500 = vadd.f32 0.0, %v1499
    %v1501 = vpop.f32.mrf.mxu0
    %v1502 = vadd.f32 0.0, %v1501
    %1503 = vmatmul.bf16.gmra.mxu0 %v210
    %v1504 = vpop.f32.mrf.mxu0
    %v1505 = vadd.f32 0.0, %v1504
    %v1506 = vpop.f32.mrf.mxu0
    %v1507 = vadd.f32 0.0, %v1506
    %1508 = vmatmul.bf16.gmra.mxu0 %v211
    %v1509 = vpop.f32.mrf.mxu0
    %v1510 = vadd.f32 0.0, %v1509
    %v1511 = vpop.f32.mrf.mxu0
    %v1512 = vadd.f32 0.0, %v1511
    %1513 = vmatmul.bf16.gmra.mxu0 %v212
    %v1514 = vpop.f32.mrf.mxu0
    %v1515 = vadd.f32 0.0, %v1514
    %v1516 = vpop.f32.mrf.mxu0
    %v1517 = vadd.f32 0.0, %v1516
    %1518 = vdwg.mxu0
    %v1519 = vpack.c.bf16 %v1480, %v1480
    %v1520 = vpack.c.bf16 %v1482, %v1482
    %v1521 = vpack.c.bf16 %v1485, %v1485
    %v1522 = vpack.c.bf16 %v1487, %v1487
    %v1523 = vpack.c.bf16 %v1490, %v1490
    %v1524 = vpack.c.bf16 %v1492, %v1492
    %v1525 = vpack.c.bf16 %v1495, %v1495
    %v1526 = vpack.c.bf16 %v1497, %v1497
    %v1527 = vpack.c.bf16 %v1500, %v1500
    %v1528 = vpack.c.bf16 %v1502, %v1502
    %v1529 = vpack.c.bf16 %v1505, %v1505
    %v1530 = vpack.c.bf16 %v1507, %v1507
    %v1531 = vpack.c.bf16 %v1510, %v1510
    %v1532 = vpack.c.bf16 %v1512, %v1512
    %v1533 = vpack.c.bf16 %v1515, %v1515
    %v1534 = vpack.c.bf16 %v1517, %v1517
    %s1535 = scalar_lea.vmem [#allocation8], 64
    %v1536 = vld [vmem:[%s1535] sm:$0xf]
    %v1537 = vld [vmem:[%s1535 + $0x4] sm:$0xf]
    %v1538 = vld [vmem:[%s1535 + $0x8] sm:$0xf]
    %v1539 = vld [vmem:[%s1535 + $0xc] sm:$0xf]
    %v1540 = vld [vmem:[%s1535 + $0x10] sm:$0xf]
    %v1541 = vld [vmem:[%s1535 + $0x14] sm:$0xf]
    %v1542 = vld [vmem:[%s1535 + $0x18] sm:$0xf]
    %v1543 = vld [vmem:[%s1535 + $0x1c] sm:$0xf]
    %v1544 = vld [vmem:[%s1535 + $0x20] sm:$0xf]
    %v1545 = vld [vmem:[%s1535 + $0x24] sm:$0xf]
    %v1546 = vld [vmem:[%s1535 + $0x28] sm:$0xf]
    %v1547 = vld [vmem:[%s1535 + $0x2c] sm:$0xf]
    %v1548 = vld [vmem:[%s1535 + $0x30] sm:$0xf]
    %v1549 = vld [vmem:[%s1535 + $0x34] sm:$0xf]
    %v1550 = vld [vmem:[%s1535 + $0x38] sm:$0xf]
    %v1551 = vld [vmem:[%s1535 + $0x3c] sm:$0xf]
    %v1568 = vunpack.c.l.b16 %v1519
    %v1569 = vunpack.c.l.b16 %v1520
    %v1570 = vunpack.c.l.b16 %v1521
    %v1571 = vunpack.c.l.b16 %v1522
    %v1572 = vunpack.c.l.b16 %v1523
    %v1573 = vunpack.c.l.b16 %v1524
    %v1574 = vunpack.c.l.b16 %v1525
    %v1575 = vunpack.c.l.b16 %v1526
    %v1576 = vunpack.c.l.b16 %v1527
    %v1577 = vunpack.c.l.b16 %v1528
    %v1578 = vunpack.c.l.b16 %v1529
    %v1579 = vunpack.c.l.b16 %v1530
    %v1580 = vunpack.c.l.b16 %v1531
    %v1581 = vunpack.c.l.b16 %v1532
    %v1582 = vunpack.c.l.b16 %v1533
    %v1583 = vunpack.c.l.b16 %v1534
    %v1584 = vpack.c.b16 %v1569, %v1568
    %v1585 = vpack.c.b16 %v1571, %v1570
    %v1586 = vpack.c.b16 %v1573, %v1572
    %v1587 = vpack.c.b16 %v1575, %v1574
    %v1588 = vpack.c.b16 %v1577, %v1576
    %v1589 = vpack.c.b16 %v1579, %v1578
    %v1590 = vpack.c.b16 %v1581, %v1580
    %v1591 = vpack.c.b16 %v1583, %v1582
    %v1616 = vunpack.c.l.b16 %v1536
    %v1617 = vunpack.c.l.b16 %v1537
    %v1618 = vunpack.c.l.b16 %v1538
    %v1619 = vunpack.c.l.b16 %v1539
    %v1620 = vunpack.c.l.b16 %v1540
    %v1621 = vunpack.c.l.b16 %v1541
    %v1622 = vunpack.c.l.b16 %v1542
    %v1623 = vunpack.c.l.b16 %v1543
    %v1624 = vunpack.c.l.b16 %v1544
    %v1625 = vunpack.c.l.b16 %v1545
    %v1626 = vunpack.c.l.b16 %v1546
    %v1627 = vunpack.c.l.b16 %v1547
    %v1628 = vunpack.c.l.b16 %v1548
    %v1629 = vunpack.c.l.b16 %v1549
    %v1630 = vunpack.c.l.b16 %v1550
    %v1631 = vunpack.c.l.b16 %v1551
    %v1632 = vpack.c.b16 %v1617, %v1616
    %v1633 = vpack.c.b16 %v1619, %v1618
    %v1634 = vpack.c.b16 %v1621, %v1620
    %v1635 = vpack.c.b16 %v1623, %v1622
    %v1636 = vpack.c.b16 %v1625, %v1624
    %v1637 = vpack.c.b16 %v1627, %v1626
    %v1638 = vpack.c.b16 %v1629, %v1628
    %v1639 = vpack.c.b16 %v1631, %v1630
    %1648 = vmatpush.bf16.msra.mxu0 %v1639
    %1649 = vmatpush.bf16.msra.mxu0 %v1638
    %1650 = vmatpush.bf16.msra.mxu0 %v1637
    %1651 = vmatpush.bf16.msra.mxu0 %v1636
    %1652 = vmatpush.bf16.msra.mxu0 %v1635
    %1653 = vmatpush.bf16.msra.mxu0 %v1634
    %1654 = vmatpush.bf16.msra.mxu0 %v1633
    %1655 = vmatpush.bf16.msra.mxu0 %v1632
    %1656 = vmatmul.bf16.gmra.mxu0 %v1584
    %v1657 = vpop.f32.mrf.mxu0
    %v1658 = vadd.f32 0.0, %v1657
    %v1659 = vpop.f32.mrf.mxu0
    %v1660 = vadd.f32 0.0, %v1659
    %1661 = vmatmul.bf16.gmra.mxu0 %v1585
    %v1662 = vpop.f32.mrf.mxu0
    %v1663 = vadd.f32 0.0, %v1662
    %v1664 = vpop.f32.mrf.mxu0
    %v1665 = vadd.f32 0.0, %v1664
    %1666 = vmatmul.bf16.gmra.mxu0 %v1586
    %v1667 = vpop.f32.mrf.mxu0
    %v1668 = vadd.f32 0.0, %v1667
    %v1669 = vpop.f32.mrf.mxu0
    %v1670 = vadd.f32 0.0, %v1669
    %1671 = vmatmul.bf16.gmra.mxu0 %v1587
    %v1672 = vpop.f32.mrf.mxu0
    %v1673 = vadd.f32 0.0, %v1672
    %v1674 = vpop.f32.mrf.mxu0
    %v1675 = vadd.f32 0.0, %v1674
    %1676 = vmatmul.bf16.gmra.mxu0 %v1588
    %v1677 = vpop.f32.mrf.mxu0
    %v1678 = vadd.f32 0.0, %v1677
    %v1679 = vpop.f32.mrf.mxu0
    %v1680 = vadd.f32 0.0, %v1679
    %1681 = vmatmul.bf16.gmra.mxu0 %v1589
    %v1682 = vpop.f32.mrf.mxu0
    %v1683 = vadd.f32 0.0, %v1682
    %v1684 = vpop.f32.mrf.mxu0
    %v1685 = vadd.f32 0.0, %v1684
    %1686 = vmatmul.bf16.gmra.mxu0 %v1590
    %v1687 = vpop.f32.mrf.mxu0
    %v1688 = vadd.f32 0.0, %v1687
    %v1689 = vpop.f32.mrf.mxu0
    %v1690 = vadd.f32 0.0, %v1689
    %1691 = vmatmul.bf16.gmra.mxu0 %v1591
    %v1692 = vpop.f32.mrf.mxu0
    %v1693 = vadd.f32 0.0, %v1692
    %v1694 = vpop.f32.mrf.mxu0
    %v1695 = vadd.f32 0.0, %v1694
    %1696 = vdwg.mxu0
    %v1713 = vunpack.c.l.b16 %v1406
    %v1714 = vunpack.c.l.b16 %v1407
    %v1715 = vunpack.c.l.b16 %v1408
    %v1716 = vunpack.c.l.b16 %v1409
    %v1717 = vunpack.c.l.b16 %v1410
    %v1718 = vunpack.c.l.b16 %v1411
    %v1719 = vunpack.c.l.b16 %v1412
    %v1720 = vunpack.c.l.b16 %v1413
    %v1721 = vunpack.c.l.b16 %v1414
    %v1722 = vunpack.c.l.b16 %v1415
    %v1723 = vunpack.c.l.b16 %v1416
    %v1724 = vunpack.c.l.b16 %v1417
    %v1725 = vunpack.c.l.b16 %v1418
    %v1726 = vunpack.c.l.b16 %v1419
    %v1727 = vunpack.c.l.b16 %v1420
    %v1728 = vunpack.c.l.b16 %v1421
    %v1729 = vpack.c.b16 %v1714, %v1713
    %v1730 = vpack.c.b16 %v1716, %v1715
    %v1731 = vpack.c.b16 %v1718, %v1717
    %v1732 = vpack.c.b16 %v1720, %v1719
    %v1733 = vpack.c.b16 %v1722, %v1721
    %v1734 = vpack.c.b16 %v1724, %v1723
    %v1735 = vpack.c.b16 %v1726, %v1725
    %v1736 = vpack.c.b16 %v1728, %v1727
    %1745 = vmatpush.bf16.msra.mxu0 %v1736
    %1746 = vmatpush.bf16.msra.mxu0 %v1735
    %1747 = vmatpush.bf16.msra.mxu0 %v1734
    %1748 = vmatpush.bf16.msra.mxu0 %v1733
    %1749 = vmatpush.bf16.msra.mxu0 %v1732
    %1750 = vmatpush.bf16.msra.mxu0 %v1731
    %1751 = vmatpush.bf16.msra.mxu0 %v1730
    %1752 = vmatpush.bf16.msra.mxu0 %v1729
    %1753 = vmatmul.bf16.gmra.mxu0 %v1454
    %v1754 = vpop.f32.mrf.mxu0
    %v1755 = vadd.f32 %v1658, %v1754
    %v1756 = vpop.f32.mrf.mxu0
    %v1757 = vadd.f32 %v1660, %v1756
    %1758 = vmatmul.bf16.gmra.mxu0 %v1455
    %v1759 = vpop.f32.mrf.mxu0
    %v1760 = vadd.f32 %v1663, %v1759
    %v1761 = vpop.f32.mrf.mxu0
    %v1762 = vadd.f32 %v1665, %v1761
    %1763 = vmatmul.bf16.gmra.mxu0 %v1456
    %v1764 = vpop.f32.mrf.mxu0
    %v1765 = vadd.f32 %v1668, %v1764
    %v1766 = vpop.f32.mrf.mxu0
    %v1767 = vadd.f32 %v1670, %v1766
    %1768 = vmatmul.bf16.gmra.mxu0 %v1457
    %v1769 = vpop.f32.mrf.mxu0
    %v1770 = vadd.f32 %v1673, %v1769
    %v1771 = vpop.f32.mrf.mxu0
    %v1772 = vadd.f32 %v1675, %v1771
    %1773 = vmatmul.bf16.gmra.mxu0 %v1458
    %v1774 = vpop.f32.mrf.mxu0
    %v1775 = vadd.f32 %v1678, %v1774
    %v1776 = vpop.f32.mrf.mxu0
    %v1777 = vadd.f32 %v1680, %v1776
    %1778 = vmatmul.bf16.gmra.mxu0 %v1459
    %v1779 = vpop.f32.mrf.mxu0
    %v1780 = vadd.f32 %v1683, %v1779
    %v1781 = vpop.f32.mrf.mxu0
    %v1782 = vadd.f32 %v1685, %v1781
    %1783 = vmatmul.bf16.gmra.mxu0 %v1460
    %v1784 = vpop.f32.mrf.mxu0
    %v1785 = vadd.f32 %v1688, %v1784
    %v1786 = vpop.f32.mrf.mxu0
    %v1787 = vadd.f32 %v1690, %v1786
    %1788 = vmatmul.bf16.gmra.mxu0 %v1461
    %v1789 = vpop.f32.mrf.mxu0
    %v1790 = vadd.f32 %v1693, %v1789
    %v1791 = vpop.f32.mrf.mxu0
    %v1792 = vadd.f32 %v1695, %v1791
    %1793 = vdwg.mxu0
    %1794 = vmatpush.bf16.msra.mxu0 %v1591
    %1795 = vmatpush.bf16.msra.mxu0 %v1590
    %1796 = vmatpush.bf16.msra.mxu0 %v1589
    %1797 = vmatpush.bf16.msra.mxu0 %v1588
    %1798 = vmatpush.bf16.msra.mxu0 %v1587
    %1799 = vmatpush.bf16.msra.mxu0 %v1586
    %1800 = vmatpush.bf16.msra.mxu0 %v1585
    %1801 = vmatpush.bf16.msra.mxu0 %v1584
    %1802 = vmatmul.bf16.gmra.mxu0 %v205
    %v1803 = vpop.f32.mrf.mxu0
    %v1804 = vadd.f32 0.0, %v1803
    %v1805 = vpop.f32.mrf.mxu0
    %v1806 = vadd.f32 0.0, %v1805
    %1807 = vmatmul.bf16.gmra.mxu0 %v206
    %v1808 = vpop.f32.mrf.mxu0
    %v1809 = vadd.f32 0.0, %v1808
    %v1810 = vpop.f32.mrf.mxu0
    %v1811 = vadd.f32 0.0, %v1810
    %1812 = vmatmul.bf16.gmra.mxu0 %v207
    %v1813 = vpop.f32.mrf.mxu0
    %v1814 = vadd.f32 0.0, %v1813
    %v1815 = vpop.f32.mrf.mxu0
    %v1816 = vadd.f32 0.0, %v1815
    %1817 = vmatmul.bf16.gmra.mxu0 %v208
    %v1818 = vpop.f32.mrf.mxu0
    %v1819 = vadd.f32 0.0, %v1818
    %v1820 = vpop.f32.mrf.mxu0
    %v1821 = vadd.f32 0.0, %v1820
    %1822 = vmatmul.bf16.gmra.mxu0 %v209
    %v1823 = vpop.f32.mrf.mxu0
    %v1824 = vadd.f32 0.0, %v1823
    %v1825 = vpop.f32.mrf.mxu0
    %v1826 = vadd.f32 0.0, %v1825
    %1827 = vmatmul.bf16.gmra.mxu0 %v210
    %v1828 = vpop.f32.mrf.mxu0
    %v1829 = vadd.f32 0.0, %v1828
    %v1830 = vpop.f32.mrf.mxu0
    %v1831 = vadd.f32 0.0, %v1830
    %1832 = vmatmul.bf16.gmra.mxu0 %v211
    %v1833 = vpop.f32.mrf.mxu0
    %v1834 = vadd.f32 0.0, %v1833
    %v1835 = vpop.f32.mrf.mxu0
    %v1836 = vadd.f32 0.0, %v1835
    %1837 = vmatmul.bf16.gmra.mxu0 %v212
    %v1838 = vpop.f32.mrf.mxu0
    %v1839 = vadd.f32 0.0, %v1838
    %v1840 = vpop.f32.mrf.mxu0
    %v1841 = vadd.f32 0.0, %v1840
    %1842 = vdwg.mxu0
    %v1843 = vmul.f32 %v1804, 2.0
    %v1844 = vmul.f32 %v1806, 2.0
    %v1845 = vmul.f32 %v1809, 2.0
    %v1846 = vmul.f32 %v1811, 2.0
    %v1847 = vmul.f32 %v1814, 2.0
    %v1848 = vmul.f32 %v1816, 2.0
    %v1849 = vmul.f32 %v1819, 2.0
    %v1850 = vmul.f32 %v1821, 2.0
    %v1851 = vmul.f32 %v1824, 2.0
    %v1852 = vmul.f32 %v1826, 2.0
    %v1853 = vmul.f32 %v1829, 2.0
    %v1854 = vmul.f32 %v1831, 2.0
    %v1855 = vmul.f32 %v1834, 2.0
    %v1856 = vmul.f32 %v1836, 2.0
    %v1857 = vmul.f32 %v1839, 2.0
    %v1858 = vmul.f32 %v1841, 2.0
    %v1859 = vunpack.c.l.bf16 %v1390
    %v1860 = vunpack.c.l.bf16 %v1391
    %v1861 = vunpack.c.l.bf16 %v1392
    %v1862 = vunpack.c.l.bf16 %v1393
    %v1863 = vunpack.c.l.bf16 %v1394
    %v1864 = vunpack.c.l.bf16 %v1395
    %v1865 = vunpack.c.l.bf16 %v1396
    %v1866 = vunpack.c.l.bf16 %v1397
    %v1867 = vunpack.c.l.bf16 %v1398
    %v1868 = vunpack.c.l.bf16 %v1399
    %v1869 = vunpack.c.l.bf16 %v1400
    %v1870 = vunpack.c.l.bf16 %v1401
    %v1871 = vunpack.c.l.bf16 %v1402
    %v1872 = vunpack.c.l.bf16 %v1403
    %v1873 = vunpack.c.l.bf16 %v1404
    %v1874 = vunpack.c.l.bf16 %v1405
    %v1875 = vsub.f32 %v1843, %v1859
    %v1876 = vsub.f32 %v1844, %v1860
    %v1877 = vsub.f32 %v1845, %v1861
    %v1878 = vsub.f32 %v1846, %v1862
    %v1879 = vsub.f32 %v1847, %v1863
    %v1880 = vsub.f32 %v1848, %v1864
    %v1881 = vsub.f32 %v1849, %v1865
    %v1882 = vsub.f32 %v1850, %v1866
    %v1883 = vsub.f32 %v1851, %v1867
    %v1884 = vsub.f32 %v1852, %v1868
    %v1885 = vsub.f32 %v1853, %v1869
    %v1886 = vsub.f32 %v1854, %v1870
    %v1887 = vsub.f32 %v1855, %v1871
    %v1888 = vsub.f32 %v1856, %v1872
    %v1889 = vsub.f32 %v1857, %v1873
    %v1890 = vsub.f32 %v1858, %v1874
    %v1891 = vpack.c.bf16 %v1875, %v1875
    %v1892 = vpack.c.bf16 %v1876, %v1876
    %v1893 = vpack.c.bf16 %v1877, %v1877
    %v1894 = vpack.c.bf16 %v1878, %v1878
    %v1895 = vpack.c.bf16 %v1879, %v1879
    %v1896 = vpack.c.bf16 %v1880, %v1880
    %v1897 = vpack.c.bf16 %v1881, %v1881
    %v1898 = vpack.c.bf16 %v1882, %v1882
    %v1899 = vpack.c.bf16 %v1883, %v1883
    %v1900 = vpack.c.bf16 %v1884, %v1884
    %v1901 = vpack.c.bf16 %v1885, %v1885
    %v1902 = vpack.c.bf16 %v1886, %v1886
    %v1903 = vpack.c.bf16 %v1887, %v1887
    %v1904 = vpack.c.bf16 %v1888, %v1888
    %v1905 = vpack.c.bf16 %v1889, %v1889
    %v1906 = vpack.c.bf16 %v1890, %v1890
    %s1907 = scalar_lea.vmem [#allocation8], 128
    %v1908 = vld [vmem:[%s1907] sm:$0xf]
    %v1909 = vld [vmem:[%s1907 + $0x4] sm:$0xf]
    %v1910 = vld [vmem:[%s1907 + $0x8] sm:$0xf]
    %v1911 = vld [vmem:[%s1907 + $0xc] sm:$0xf]
    %v1912 = vld [vmem:[%s1907 + $0x10] sm:$0xf]
    %v1913 = vld [vmem:[%s1907 + $0x14] sm:$0xf]
    %v1914 = vld [vmem:[%s1907 + $0x18] sm:$0xf]
    %v1915 = vld [vmem:[%s1907 + $0x1c] sm:$0xf]
    %v1916 = vld [vmem:[%s1907 + $0x20] sm:$0xf]
    %v1917 = vld [vmem:[%s1907 + $0x24] sm:$0xf]
    %v1918 = vld [vmem:[%s1907 + $0x28] sm:$0xf]
    %v1919 = vld [vmem:[%s1907 + $0x2c] sm:$0xf]
    %v1920 = vld [vmem:[%s1907 + $0x30] sm:$0xf]
    %v1921 = vld [vmem:[%s1907 + $0x34] sm:$0xf]
    %v1922 = vld [vmem:[%s1907 + $0x38] sm:$0xf]
    %v1923 = vld [vmem:[%s1907 + $0x3c] sm:$0xf]
    %v1940 = vunpack.c.l.b16 %v1891
    %v1941 = vunpack.c.l.b16 %v1892
    %v1942 = vunpack.c.l.b16 %v1893
    %v1943 = vunpack.c.l.b16 %v1894
    %v1944 = vunpack.c.l.b16 %v1895
    %v1945 = vunpack.c.l.b16 %v1896
    %v1946 = vunpack.c.l.b16 %v1897
    %v1947 = vunpack.c.l.b16 %v1898
    %v1948 = vunpack.c.l.b16 %v1899
    %v1949 = vunpack.c.l.b16 %v1900
    %v1950 = vunpack.c.l.b16 %v1901
    %v1951 = vunpack.c.l.b16 %v1902
    %v1952 = vunpack.c.l.b16 %v1903
    %v1953 = vunpack.c.l.b16 %v1904
    %v1954 = vunpack.c.l.b16 %v1905
    %v1955 = vunpack.c.l.b16 %v1906
    %v1956 = vpack.c.b16 %v1941, %v1940
    %v1957 = vpack.c.b16 %v1943, %v1942
    %v1958 = vpack.c.b16 %v1945, %v1944
    %v1959 = vpack.c.b16 %v1947, %v1946
    %v1960 = vpack.c.b16 %v1949, %v1948
    %v1961 = vpack.c.b16 %v1951, %v1950
    %v1962 = vpack.c.b16 %v1953, %v1952
    %v1963 = vpack.c.b16 %v1955, %v1954
    %v1988 = vunpack.c.l.b16 %v1908
    %v1989 = vunpack.c.l.b16 %v1909
    %v1990 = vunpack.c.l.b16 %v1910
    %v1991 = vunpack.c.l.b16 %v1911
    %v1992 = vunpack.c.l.b16 %v1912
    %v1993 = vunpack.c.l.b16 %v1913
    %v1994 = vunpack.c.l.b16 %v1914
    %v1995 = vunpack.c.l.b16 %v1915
    %v1996 = vunpack.c.l.b16 %v1916
    %v1997 = vunpack.c.l.b16 %v1917
    %v1998 = vunpack.c.l.b16 %v1918
    %v1999 = vunpack.c.l.b16 %v1919
    %v2000 = vunpack.c.l.b16 %v1920
    %v2001 = vunpack.c.l.b16 %v1921
    %v2002 = vunpack.c.l.b16 %v1922
    %v2003 = vunpack.c.l.b16 %v1923
    %v2004 = vpack.c.b16 %v1989, %v1988
    %v2005 = vpack.c.b16 %v1991, %v1990
    %v2006 = vpack.c.b16 %v1993, %v1992
    %v2007 = vpack.c.b16 %v1995, %v1994
    %v2008 = vpack.c.b16 %v1997, %v1996
    %v2009 = vpack.c.b16 %v1999, %v1998
    %v2010 = vpack.c.b16 %v2001, %v2000
    %v2011 = vpack.c.b16 %v2003, %v2002
    %2020 = vmatpush.bf16.msra.mxu0 %v2011
    %2021 = vmatpush.bf16.msra.mxu0 %v2010
    %2022 = vmatpush.bf16.msra.mxu0 %v2009
    %2023 = vmatpush.bf16.msra.mxu0 %v2008
    %2024 = vmatpush.bf16.msra.mxu0 %v2007
    %2025 = vmatpush.bf16.msra.mxu0 %v2006
    %2026 = vmatpush.bf16.msra.mxu0 %v2005
    %2027 = vmatpush.bf16.msra.mxu0 %v2004
    %2028 = vmatmul.bf16.gmra.mxu0 %v1956
    %v2029 = vpop.f32.mrf.mxu0
    %v2030 = vadd.f32 0.0, %v2029
    %v2031 = vpop.f32.mrf.mxu0
    %v2032 = vadd.f32 0.0, %v2031
    %2033 = vmatmul.bf16.gmra.mxu0 %v1957
    %v2034 = vpop.f32.mrf.mxu0
    %v2035 = vadd.f32 0.0, %v2034
    %v2036 = vpop.f32.mrf.mxu0
    %v2037 = vadd.f32 0.0, %v2036
    %2038 = vmatmul.bf16.gmra.mxu0 %v1958
    %v2039 = vpop.f32.mrf.mxu0
    %v2040 = vadd.f32 0.0, %v2039
    %v2041 = vpop.f32.mrf.mxu0
    %v2042 = vadd.f32 0.0, %v2041
    %2043 = vmatmul.bf16.gmra.mxu0 %v1959
    %v2044 = vpop.f32.mrf.mxu0
    %v2045 = vadd.f32 0.0, %v2044
    %v2046 = vpop.f32.mrf.mxu0
    %v2047 = vadd.f32 0.0, %v2046
    %2048 = vmatmul.bf16.gmra.mxu0 %v1960
    %v2049 = vpop.f32.mrf.mxu0
    %v2050 = vadd.f32 0.0, %v2049
    %v2051 = vpop.f32.mrf.mxu0
    %v2052 = vadd.f32 0.0, %v2051
    %2053 = vmatmul.bf16.gmra.mxu0 %v1961
    %v2054 = vpop.f32.mrf.mxu0
    %v2055 = vadd.f32 0.0, %v2054
    %v2056 = vpop.f32.mrf.mxu0
    %v2057 = vadd.f32 0.0, %v2056
    %2058 = vmatmul.bf16.gmra.mxu0 %v1962
    %v2059 = vpop.f32.mrf.mxu0
    %v2060 = vadd.f32 0.0, %v2059
    %v2061 = vpop.f32.mrf.mxu0
    %v2062 = vadd.f32 0.0, %v2061
    %2063 = vmatmul.bf16.gmra.mxu0 %v1963
    %v2064 = vpop.f32.mrf.mxu0
    %v2065 = vadd.f32 0.0, %v2064
    %v2066 = vpop.f32.mrf.mxu0
    %v2067 = vadd.f32 0.0, %v2066
    %2068 = vdwg.mxu0
    %v2069 = vadd.f32 %v1755, %v2030
    %v2070 = vadd.f32 %v1757, %v2032
    %v2071 = vadd.f32 %v1760, %v2035
    %v2072 = vadd.f32 %v1762, %v2037
    %v2073 = vadd.f32 %v1765, %v2040
    %v2074 = vadd.f32 %v1767, %v2042
    %v2075 = vadd.f32 %v1770, %v2045
    %v2076 = vadd.f32 %v1772, %v2047
    %v2077 = vadd.f32 %v1775, %v2050
    %v2078 = vadd.f32 %v1777, %v2052
    %v2079 = vadd.f32 %v1780, %v2055
    %v2080 = vadd.f32 %v1782, %v2057
    %v2081 = vadd.f32 %v1785, %v2060
    %v2082 = vadd.f32 %v1787, %v2062
    %v2083 = vadd.f32 %v1790, %v2065
    %v2084 = vadd.f32 %v1792, %v2067
    %2085 = vmatpush.bf16.msra.mxu0 %v1963
    %2086 = vmatpush.bf16.msra.mxu0 %v1962
    %2087 = vmatpush.bf16.msra.mxu0 %v1961
    %2088 = vmatpush.bf16.msra.mxu0 %v1960
    %2089 = vmatpush.bf16.msra.mxu0 %v1959
    %2090 = vmatpush.bf16.msra.mxu0 %v1958
    %2091 = vmatpush.bf16.msra.mxu0 %v1957
    %2092 = vmatpush.bf16.msra.mxu0 %v1956
    %2093 = vmatmul.bf16.gmra.mxu0 %v205
    %v2094 = vpop.f32.mrf.mxu0
    %v2095 = vadd.f32 0.0, %v2094
    %v2096 = vpop.f32.mrf.mxu0
    %v2097 = vadd.f32 0.0, %v2096
    %2098 = vmatmul.bf16.gmra.mxu0 %v206
    %v2099 = vpop.f32.mrf.mxu0
    %v2100 = vadd.f32 0.0, %v2099
    %v2101 = vpop.f32.mrf.mxu0
    %v2102 = vadd.f32 0.0, %v2101
    %2103 = vmatmul.bf16.gmra.mxu0 %v207
    %v2104 = vpop.f32.mrf.mxu0
    %v2105 = vadd.f32 0.0, %v2104
    %v2106 = vpop.f32.mrf.mxu0
    %v2107 = vadd.f32 0.0, %v2106
    %2108 = vmatmul.bf16.gmra.mxu0 %v208
    %v2109 = vpop.f32.mrf.mxu0
    %v2110 = vadd.f32 0.0, %v2109
    %v2111 = vpop.f32.mrf.mxu0
    %v2112 = vadd.f32 0.0, %v2111
    %2113 = vmatmul.bf16.gmra.mxu0 %v209
    %v2114 = vpop.f32.mrf.mxu0
    %v2115 = vadd.f32 0.0, %v2114
    %v2116 = vpop.f32.mrf.mxu0
    %v2117 = vadd.f32 0.0, %v2116
    %2118 = vmatmul.bf16.gmra.mxu0 %v210
    %v2119 = vpop.f32.mrf.mxu0
    %v2120 = vadd.f32 0.0, %v2119
    %v2121 = vpop.f32.mrf.mxu0
    %v2122 = vadd.f32 0.0, %v2121
    %2123 = vmatmul.bf16.gmra.mxu0 %v211
    %v2124 = vpop.f32.mrf.mxu0
    %v2125 = vadd.f32 0.0, %v2124
    %v2126 = vpop.f32.mrf.mxu0
    %v2127 = vadd.f32 0.0, %v2126
    %2128 = vmatmul.bf16.gmra.mxu0 %v212
    %v2129 = vpop.f32.mrf.mxu0
    %v2130 = vadd.f32 0.0, %v2129
    %v2131 = vpop.f32.mrf.mxu0
    %v2132 = vadd.f32 0.0, %v2131
    %2133 = vdwg.mxu0
    %v2134 = vmul.f32 %v2095, 2.0
    %v2135 = vmul.f32 %v2097, 2.0
    %v2136 = vmul.f32 %v2100, 2.0
    %v2137 = vmul.f32 %v2102, 2.0
    %v2138 = vmul.f32 %v2105, 2.0
    %v2139 = vmul.f32 %v2107, 2.0
    %v2140 = vmul.f32 %v2110, 2.0
    %v2141 = vmul.f32 %v2112, 2.0
    %v2142 = vmul.f32 %v2115, 2.0
    %v2143 = vmul.f32 %v2117, 2.0
    %v2144 = vmul.f32 %v2120, 2.0
    %v2145 = vmul.f32 %v2122, 2.0
    %v2146 = vmul.f32 %v2125, 2.0
    %v2147 = vmul.f32 %v2127, 2.0
    %v2148 = vmul.f32 %v2130, 2.0
    %v2149 = vmul.f32 %v2132, 2.0
    %v2150 = vunpack.c.l.bf16 %v1519
    %v2151 = vunpack.c.l.bf16 %v1520
    %v2152 = vunpack.c.l.bf16 %v1521
    %v2153 = vunpack.c.l.bf16 %v1522
    %v2154 = vunpack.c.l.bf16 %v1523
    %v2155 = vunpack.c.l.bf16 %v1524
    %v2156 = vunpack.c.l.bf16 %v1525
    %v2157 = vunpack.c.l.bf16 %v1526
    %v2158 = vunpack.c.l.bf16 %v1527
    %v2159 = vunpack.c.l.bf16 %v1528
    %v2160 = vunpack.c.l.bf16 %v1529
    %v2161 = vunpack.c.l.bf16 %v1530
    %v2162 = vunpack.c.l.bf16 %v1531
    %v2163 = vunpack.c.l.bf16 %v1532
    %v2164 = vunpack.c.l.bf16 %v1533
    %v2165 = vunpack.c.l.bf16 %v1534
    %v2166 = vsub.f32 %v2134, %v2150
    %v2167 = vsub.f32 %v2135, %v2151
    %v2168 = vsub.f32 %v2136, %v2152
    %v2169 = vsub.f32 %v2137, %v2153
    %v2170 = vsub.f32 %v2138, %v2154
    %v2171 = vsub.f32 %v2139, %v2155
    %v2172 = vsub.f32 %v2140, %v2156
    %v2173 = vsub.f32 %v2141, %v2157
    %v2174 = vsub.f32 %v2142, %v2158
    %v2175 = vsub.f32 %v2143, %v2159
    %v2176 = vsub.f32 %v2144, %v2160
    %v2177 = vsub.f32 %v2145, %v2161
    %v2178 = vsub.f32 %v2146, %v2162
    %v2179 = vsub.f32 %v2147, %v2163
    %v2180 = vsub.f32 %v2148, %v2164
    %v2181 = vsub.f32 %v2149, %v2165
    %v2182 = vpack.c.bf16 %v2167, %v2166
    %v2183 = vpack.c.bf16 %v2169, %v2168
    %v2184 = vpack.c.bf16 %v2171, %v2170
    %v2185 = vpack.c.bf16 %v2173, %v2172
    %v2186 = vpack.c.bf16 %v2175, %v2174
    %v2187 = vpack.c.bf16 %v2177, %v2176
    %v2188 = vpack.c.bf16 %v2179, %v2178
    %v2189 = vpack.c.bf16 %v2181, %v2180
    %s2190 = scalar_lea.vmem [#allocation8], 192
    %v2191 = vld [vmem:[%s2190] sm:$0xf]
    %v2192 = vld [vmem:[%s2190 + $0x4] sm:$0xf]
    %v2193 = vld [vmem:[%s2190 + $0x8] sm:$0xf]
    %v2194 = vld [vmem:[%s2190 + $0xc] sm:$0xf]
    %v2195 = vld [vmem:[%s2190 + $0x10] sm:$0xf]
    %v2196 = vld [vmem:[%s2190 + $0x14] sm:$0xf]
    %v2197 = vld [vmem:[%s2190 + $0x18] sm:$0xf]
    %v2198 = vld [vmem:[%s2190 + $0x1c] sm:$0xf]
    %v2199 = vld [vmem:[%s2190 + $0x20] sm:$0xf]
    %v2200 = vld [vmem:[%s2190 + $0x24] sm:$0xf]
    %v2201 = vld [vmem:[%s2190 + $0x28] sm:$0xf]
    %v2202 = vld [vmem:[%s2190 + $0x2c] sm:$0xf]
    %v2203 = vld [vmem:[%s2190 + $0x30] sm:$0xf]
    %v2204 = vld [vmem:[%s2190 + $0x34] sm:$0xf]
    %v2205 = vld [vmem:[%s2190 + $0x38] sm:$0xf]
    %v2206 = vld [vmem:[%s2190 + $0x3c] sm:$0xf]
    %v2223 = vunpack.c.l.b16 %v2191
    %v2224 = vunpack.c.l.b16 %v2192
    %v2225 = vunpack.c.l.b16 %v2193
    %v2226 = vunpack.c.l.b16 %v2194
    %v2227 = vunpack.c.l.b16 %v2195
    %v2228 = vunpack.c.l.b16 %v2196
    %v2229 = vunpack.c.l.b16 %v2197
    %v2230 = vunpack.c.l.b16 %v2198
    %v2231 = vunpack.c.l.b16 %v2199
    %v2232 = vunpack.c.l.b16 %v2200
    %v2233 = vunpack.c.l.b16 %v2201
    %v2234 = vunpack.c.l.b16 %v2202
    %v2235 = vunpack.c.l.b16 %v2203
    %v2236 = vunpack.c.l.b16 %v2204
    %v2237 = vunpack.c.l.b16 %v2205
    %v2238 = vunpack.c.l.b16 %v2206
    %v2239 = vpack.c.b16 %v2224, %v2223
    %v2240 = vpack.c.b16 %v2226, %v2225
    %v2241 = vpack.c.b16 %v2228, %v2227
    %v2242 = vpack.c.b16 %v2230, %v2229
    %v2243 = vpack.c.b16 %v2232, %v2231
    %v2244 = vpack.c.b16 %v2234, %v2233
    %v2245 = vpack.c.b16 %v2236, %v2235
    %v2246 = vpack.c.b16 %v2238, %v2237
    %2255 = vmatpush.bf16.msra.mxu0 %v2246
    %2256 = vmatpush.bf16.msra.mxu0 %v2245
    %2257 = vmatpush.bf16.msra.mxu0 %v2244
    %2258 = vmatpush.bf16.msra.mxu0 %v2243
    %2259 = vmatpush.bf16.msra.mxu0 %v2242
    %2260 = vmatpush.bf16.msra.mxu0 %v2241
    %2261 = vmatpush.bf16.msra.mxu0 %v2240
    %2262 = vmatpush.bf16.msra.mxu0 %v2239
    %2263 = vmatmul.bf16.gmra.mxu0 %v2182
    %v2264 = vpop.f32.mrf.mxu0
    %v2265 = vadd.f32 0.0, %v2264
    %v2266 = vpop.f32.mrf.mxu0
    %v2267 = vadd.f32 0.0, %v2266
    %2268 = vmatmul.bf16.gmra.mxu0 %v2183
    %v2269 = vpop.f32.mrf.mxu0
    %v2270 = vadd.f32 0.0, %v2269
    %v2271 = vpop.f32.mrf.mxu0
    %v2272 = vadd.f32 0.0, %v2271
    %2273 = vmatmul.bf16.gmra.mxu0 %v2184
    %v2274 = vpop.f32.mrf.mxu0
    %v2275 = vadd.f32 0.0, %v2274
    %v2276 = vpop.f32.mrf.mxu0
    %v2277 = vadd.f32 0.0, %v2276
    %2278 = vmatmul.bf16.gmra.mxu0 %v2185
    %v2279 = vpop.f32.mrf.mxu0
    %v2280 = vadd.f32 0.0, %v2279
    %v2281 = vpop.f32.mrf.mxu0
    %v2282 = vadd.f32 0.0, %v2281
    %2283 = vmatmul.bf16.gmra.mxu0 %v2186
    %v2284 = vpop.f32.mrf.mxu0
    %v2285 = vadd.f32 0.0, %v2284
    %v2286 = vpop.f32.mrf.mxu0
    %v2287 = vadd.f32 0.0, %v2286
    %2288 = vmatmul.bf16.gmra.mxu0 %v2187
    %v2289 = vpop.f32.mrf.mxu0
    %v2290 = vadd.f32 0.0, %v2289
    %v2291 = vpop.f32.mrf.mxu0
    %v2292 = vadd.f32 0.0, %v2291
    %2293 = vmatmul.bf16.gmra.mxu0 %v2188
    %v2294 = vpop.f32.mrf.mxu0
    %v2295 = vadd.f32 0.0, %v2294
    %v2296 = vpop.f32.mrf.mxu0
    %v2297 = vadd.f32 0.0, %v2296
    %2298 = vmatmul.bf16.gmra.mxu0 %v2189
    %v2299 = vpop.f32.mrf.mxu0
    %v2300 = vadd.f32 0.0, %v2299
    %v2301 = vpop.f32.mrf.mxu0
    %v2302 = vadd.f32 0.0, %v2301
    %2303 = vdwg.mxu0
    %v2304 = vadd.f32 %v2069, %v2265
    %v2305 = vadd.f32 %v2070, %v2267
    %v2306 = vadd.f32 %v2071, %v2270
    %v2307 = vadd.f32 %v2072, %v2272
    %v2308 = vadd.f32 %v2073, %v2275
    %v2309 = vadd.f32 %v2074, %v2277
    %v2310 = vadd.f32 %v2075, %v2280
    %v2311 = vadd.f32 %v2076, %v2282
    %v2312 = vadd.f32 %v2077, %v2285
    %v2313 = vadd.f32 %v2078, %v2287
    %v2314 = vadd.f32 %v2079, %v2290
    %v2315 = vadd.f32 %v2080, %v2292
    %v2316 = vadd.f32 %v2081, %v2295
    %v2317 = vadd.f32 %v2082, %v2297
    %v2318 = vadd.f32 %v2083, %v2300
    %v2319 = vadd.f32 %v2084, %v2302
    %2320 = vmatpush.bf16.msra.mxu0 %v2189
    %2321 = vmatpush.bf16.msra.mxu0 %v2188
    %2322 = vmatpush.bf16.msra.mxu0 %v2187
    %2323 = vmatpush.bf16.msra.mxu0 %v2186
    %2324 = vmatpush.bf16.msra.mxu0 %v2185
    %2325 = vmatpush.bf16.msra.mxu0 %v2184
    %2326 = vmatpush.bf16.msra.mxu0 %v2183
    %2327 = vmatpush.bf16.msra.mxu0 %v2182
    %2328 = vmatmul.bf16.gmra.mxu0 %v205
    %v2329 = vpop.f32.mrf.mxu0
    %v2330 = vadd.f32 0.0, %v2329
    %v2331 = vpop.f32.mrf.mxu0
    %v2332 = vadd.f32 0.0, %v2331
    %2333 = vmatmul.bf16.gmra.mxu0 %v206
    %v2334 = vpop.f32.mrf.mxu0
    %v2335 = vadd.f32 0.0, %v2334
    %v2336 = vpop.f32.mrf.mxu0
    %v2337 = vadd.f32 0.0, %v2336
    %2338 = vmatmul.bf16.gmra.mxu0 %v207
    %v2339 = vpop.f32.mrf.mxu0
    %v2340 = vadd.f32 0.0, %v2339
    %v2341 = vpop.f32.mrf.mxu0
    %v2342 = vadd.f32 0.0, %v2341
    %2343 = vmatmul.bf16.gmra.mxu0 %v208
    %v2344 = vpop.f32.mrf.mxu0
    %v2345 = vadd.f32 0.0, %v2344
    %v2346 = vpop.f32.mrf.mxu0
    %v2347 = vadd.f32 0.0, %v2346
    %2348 = vmatmul.bf16.gmra.mxu0 %v209
    %v2349 = vpop.f32.mrf.mxu0
    %v2350 = vadd.f32 0.0, %v2349
    %v2351 = vpop.f32.mrf.mxu0
    %v2352 = vadd.f32 0.0, %v2351
    %2353 = vmatmul.bf16.gmra.mxu0 %v210
    %v2354 = vpop.f32.mrf.mxu0
    %v2355 = vadd.f32 0.0, %v2354
    %v2356 = vpop.f32.mrf.mxu0
    %v2357 = vadd.f32 0.0, %v2356
    %2358 = vmatmul.bf16.gmra.mxu0 %v211
    %v2359 = vpop.f32.mrf.mxu0
    %v2360 = vadd.f32 0.0, %v2359
    %v2361 = vpop.f32.mrf.mxu0
    %v2362 = vadd.f32 0.0, %v2361
    %2363 = vmatmul.bf16.gmra.mxu0 %v212
    %v2364 = vpop.f32.mrf.mxu0
    %v2365 = vadd.f32 0.0, %v2364
    %v2366 = vpop.f32.mrf.mxu0
    %v2367 = vadd.f32 0.0, %v2366
    %2368 = vdwg.mxu0
    %v2369 = vmul.f32 %v2330, 2.0
    %v2370 = vmul.f32 %v2332, 2.0
    %v2371 = vmul.f32 %v2335, 2.0
    %v2372 = vmul.f32 %v2337, 2.0
    %v2373 = vmul.f32 %v2340, 2.0
    %v2374 = vmul.f32 %v2342, 2.0
    %v2375 = vmul.f32 %v2345, 2.0
    %v2376 = vmul.f32 %v2347, 2.0
    %v2377 = vmul.f32 %v2350, 2.0
    %v2378 = vmul.f32 %v2352, 2.0
    %v2379 = vmul.f32 %v2355, 2.0
    %v2380 = vmul.f32 %v2357, 2.0
    %v2381 = vmul.f32 %v2360, 2.0
    %v2382 = vmul.f32 %v2362, 2.0
    %v2383 = vmul.f32 %v2365, 2.0
    %v2384 = vmul.f32 %v2367, 2.0
    %v2385 = vunpack.c.l.bf16 %v1891
    %v2386 = vunpack.c.l.bf16 %v1892
    %v2387 = vunpack.c.l.bf16 %v1893
    %v2388 = vunpack.c.l.bf16 %v1894
    %v2389 = vunpack.c.l.bf16 %v1895
    %v2390 = vunpack.c.l.bf16 %v1896
    %v2391 = vunpack.c.l.bf16 %v1897
    %v2392 = vunpack.c.l.bf16 %v1898
    %v2393 = vunpack.c.l.bf16 %v1899
    %v2394 = vunpack.c.l.bf16 %v1900
    %v2395 = vunpack.c.l.bf16 %v1901
    %v2396 = vunpack.c.l.bf16 %v1902
    %v2397 = vunpack.c.l.bf16 %v1903
    %v2398 = vunpack.c.l.bf16 %v1904
    %v2399 = vunpack.c.l.bf16 %v1905
    %v2400 = vunpack.c.l.bf16 %v1906
    %v2401 = vsub.f32 %v2369, %v2385
    %v2402 = vsub.f32 %v2370, %v2386
    %v2403 = vsub.f32 %v2371, %v2387
    %v2404 = vsub.f32 %v2372, %v2388
    %v2405 = vsub.f32 %v2373, %v2389
    %v2406 = vsub.f32 %v2374, %v2390
    %v2407 = vsub.f32 %v2375, %v2391
    %v2408 = vsub.f32 %v2376, %v2392
    %v2409 = vsub.f32 %v2377, %v2393
    %v2410 = vsub.f32 %v2378, %v2394
    %v2411 = vsub.f32 %v2379, %v2395
    %v2412 = vsub.f32 %v2380, %v2396
    %v2413 = vsub.f32 %v2381, %v2397
    %v2414 = vsub.f32 %v2382, %v2398
    %v2415 = vsub.f32 %v2383, %v2399
    %v2416 = vsub.f32 %v2384, %v2400
    %v2417 = vpack.c.bf16 %v2402, %v2401
    %v2418 = vpack.c.bf16 %v2404, %v2403
    %v2419 = vpack.c.bf16 %v2406, %v2405
    %v2420 = vpack.c.bf16 %v2408, %v2407
    %v2421 = vpack.c.bf16 %v2410, %v2409
    %v2422 = vpack.c.bf16 %v2412, %v2411
    %v2423 = vpack.c.bf16 %v2414, %v2413
    %v2424 = vpack.c.bf16 %v2416, %v2415
    %s2425 = scalar_lea.vmem [#allocation8], 256
    %v2426 = vld [vmem:[%s2425] sm:$0xf]
    %v2427 = vld [vmem:[%s2425 + $0x4] sm:$0xf]
    %v2428 = vld [vmem:[%s2425 + $0x8] sm:$0xf]
    %v2429 = vld [vmem:[%s2425 + $0xc] sm:$0xf]
    %v2430 = vld [vmem:[%s2425 + $0x10] sm:$0xf]
    %v2431 = vld [vmem:[%s2425 + $0x14] sm:$0xf]
    %v2432 = vld [vmem:[%s2425 + $0x18] sm:$0xf]
    %v2433 = vld [vmem:[%s2425 + $0x1c] sm:$0xf]
    %v2434 = vld [vmem:[%s2425 + $0x20] sm:$0xf]
    %v2435 = vld [vmem:[%s2425 + $0x24] sm:$0xf]
    %v2436 = vld [vmem:[%s2425 + $0x28] sm:$0xf]
    %v2437 = vld [vmem:[%s2425 + $0x2c] sm:$0xf]
    %v2438 = vld [vmem:[%s2425 + $0x30] sm:$0xf]
    %v2439 = vld [vmem:[%s2425 + $0x34] sm:$0xf]
    %v2440 = vld [vmem:[%s2425 + $0x38] sm:$0xf]
    %v2441 = vld [vmem:[%s2425 + $0x3c] sm:$0xf]
    %v2458 = vunpack.c.l.b16 %v2426
    %v2459 = vunpack.c.l.b16 %v2427
    %v2460 = vunpack.c.l.b16 %v2428
    %v2461 = vunpack.c.l.b16 %v2429
    %v2462 = vunpack.c.l.b16 %v2430
    %v2463 = vunpack.c.l.b16 %v2431
    %v2464 = vunpack.c.l.b16 %v2432
    %v2465 = vunpack.c.l.b16 %v2433
    %v2466 = vunpack.c.l.b16 %v2434
    %v2467 = vunpack.c.l.b16 %v2435
    %v2468 = vunpack.c.l.b16 %v2436
    %v2469 = vunpack.c.l.b16 %v2437
    %v2470 = vunpack.c.l.b16 %v2438
    %v2471 = vunpack.c.l.b16 %v2439
    %v2472 = vunpack.c.l.b16 %v2440
    %v2473 = vunpack.c.l.b16 %v2441
    %v2474 = vpack.c.b16 %v2459, %v2458
    %v2475 = vpack.c.b16 %v2461, %v2460
    %v2476 = vpack.c.b16 %v2463, %v2462
    %v2477 = vpack.c.b16 %v2465, %v2464
    %v2478 = vpack.c.b16 %v2467, %v2466
    %v2479 = vpack.c.b16 %v2469, %v2468
    %v2480 = vpack.c.b16 %v2471, %v2470
    %v2481 = vpack.c.b16 %v2473, %v2472
    %2490 = vmatpush.bf16.msra.mxu0 %v2481
    %2491 = vmatpush.bf16.msra.mxu0 %v2480
    %2492 = vmatpush.bf16.msra.mxu0 %v2479
    %2493 = vmatpush.bf16.msra.mxu0 %v2478
    %2494 = vmatpush.bf16.msra.mxu0 %v2477
    %2495 = vmatpush.bf16.msra.mxu0 %v2476
    %2496 = vmatpush.bf16.msra.mxu0 %v2475
    %2497 = vmatpush.bf16.msra.mxu0 %v2474
    %2498 = vmatmul.bf16.gmra.mxu0 %v2417
    %v2499 = vpop.f32.mrf.mxu0
    %v2500 = vadd.f32 0.0, %v2499
    %v2501 = vpop.f32.mrf.mxu0
    %v2502 = vadd.f32 0.0, %v2501
    %2503 = vmatmul.bf16.gmra.mxu0 %v2418
    %v2504 = vpop.f32.mrf.mxu0
    %v2505 = vadd.f32 0.0, %v2504
    %v2506 = vpop.f32.mrf.mxu0
    %v2507 = vadd.f32 0.0, %v2506
    %2508 = vmatmul.bf16.gmra.mxu0 %v2419
    %v2509 = vpop.f32.mrf.mxu0
    %v2510 = vadd.f32 0.0, %v2509
    %v2511 = vpop.f32.mrf.mxu0
    %v2512 = vadd.f32 0.0, %v2511
    %2513 = vmatmul.bf16.gmra.mxu0 %v2420
    %v2514 = vpop.f32.mrf.mxu0
    %v2515 = vadd.f32 0.0, %v2514
    %v2516 = vpop.f32.mrf.mxu0
    %v2517 = vadd.f32 0.0, %v2516
    %2518 = vmatmul.bf16.gmra.mxu0 %v2421
    %v2519 = vpop.f32.mrf.mxu0
    %v2520 = vadd.f32 0.0, %v2519
    %v2521 = vpop.f32.mrf.mxu0
    %v2522 = vadd.f32 0.0, %v2521
    %2523 = vmatmul.bf16.gmra.mxu0 %v2422
    %v2524 = vpop.f32.mrf.mxu0
    %v2525 = vadd.f32 0.0, %v2524
    %v2526 = vpop.f32.mrf.mxu0
    %v2527 = vadd.f32 0.0, %v2526
    %2528 = vmatmul.bf16.gmra.mxu0 %v2423
    %v2529 = vpop.f32.mrf.mxu0
    %v2530 = vadd.f32 0.0, %v2529
    %v2531 = vpop.f32.mrf.mxu0
    %v2532 = vadd.f32 0.0, %v2531
    %2533 = vmatmul.bf16.gmra.mxu0 %v2424
    %v2534 = vpop.f32.mrf.mxu0
    %v2535 = vadd.f32 0.0, %v2534
    %v2536 = vpop.f32.mrf.mxu0
    %v2537 = vadd.f32 0.0, %v2536
    %2538 = vdwg.mxu0
    %v2539 = vadd.f32 %v2304, %v2500
    %v2540 = vadd.f32 %v2305, %v2502
    %v2541 = vadd.f32 %v2306, %v2505
    %v2542 = vadd.f32 %v2307, %v2507
    %v2543 = vadd.f32 %v2308, %v2510
    %v2544 = vadd.f32 %v2309, %v2512
    %v2545 = vadd.f32 %v2310, %v2515
    %v2546 = vadd.f32 %v2311, %v2517
    %v2547 = vadd.f32 %v2312, %v2520
    %v2548 = vadd.f32 %v2313, %v2522
    %v2549 = vadd.f32 %v2314, %v2525
    %v2550 = vadd.f32 %v2315, %v2527
    %v2551 = vadd.f32 %v2316, %v2530
    %v2552 = vadd.f32 %v2317, %v2532
    %v2553 = vadd.f32 %v2318, %v2535
    %v2554 = vadd.f32 %v2319, %v2537
    %v2555 = vld [vmem:[%s5] sm:$0x1]
    %v2557 = vperm.slane %v2555, 0
    %v2559 = vadd.f32 %v2539, %v2557
    %v2560 = vadd.f32 %v2540, %v2557
    %v2561 = vadd.f32 %v2541, %v2557
    %v2562 = vadd.f32 %v2542, %v2557
    %v2563 = vadd.f32 %v2543, %v2557
    %v2564 = vadd.f32 %v2544, %v2557
    %v2565 = vadd.f32 %v2545, %v2557
    %v2566 = vadd.f32 %v2546, %v2557
    %v2567 = vadd.f32 %v2547, %v2557
    %v2568 = vadd.f32 %v2548, %v2557
    %v2569 = vadd.f32 %v2549, %v2557
    %v2570 = vadd.f32 %v2550, %v2557
    %v2571 = vadd.f32 %v2551, %v2557
    %v2572 = vadd.f32 %v2552, %v2557
    %v2573 = vadd.f32 %v2553, %v2557
    %v2574 = vadd.f32 %v2554, %v2557
    %v2575 = vmax.f32 %v2559, 0.0
    %v2576 = vmax.f32 %v2560, 0.0
    %v2577 = vmax.f32 %v2561, 0.0
    %v2578 = vmax.f32 %v2562, 0.0
    %v2579 = vmax.f32 %v2563, 0.0
    %v2580 = vmax.f32 %v2564, 0.0
    %v2581 = vmax.f32 %v2565, 0.0
    %v2582 = vmax.f32 %v2566, 0.0
    %v2583 = vmax.f32 %v2567, 0.0
    %v2584 = vmax.f32 %v2568, 0.0
    %v2585 = vmax.f32 %v2569, 0.0
    %v2586 = vmax.f32 %v2570, 0.0
    %v2587 = vmax.f32 %v2571, 0.0
    %v2588 = vmax.f32 %v2572, 0.0
    %v2589 = vmax.f32 %v2573, 0.0
    %v2590 = vmax.f32 %v2574, 0.0
    %v2591 = vpack.c.bf16 %v2575, %v2575
    %v2592 = vpack.c.bf16 %v2576, %v2576
    %v2593 = vpack.c.bf16 %v2577, %v2577
    %v2594 = vpack.c.bf16 %v2578, %v2578
    %v2595 = vpack.c.bf16 %v2579, %v2579
    %v2596 = vpack.c.bf16 %v2580, %v2580
    %v2597 = vpack.c.bf16 %v2581, %v2581
    %v2598 = vpack.c.bf16 %v2582, %v2582
    %v2599 = vpack.c.bf16 %v2583, %v2583
    %v2600 = vpack.c.bf16 %v2584, %v2584
    %v2601 = vpack.c.bf16 %v2585, %v2585
    %v2602 = vpack.c.bf16 %v2586, %v2586
    %v2603 = vpack.c.bf16 %v2587, %v2587
    %v2604 = vpack.c.bf16 %v2588, %v2588
    %v2605 = vpack.c.bf16 %v2589, %v2589
    %v2606 = vpack.c.bf16 %v2590, %v2590
    %v2607 = vld [vmem:[#allocation10] sm:$0xf]
    %v2608 = vld [vmem:[#allocation10 + $0x4] sm:$0xf]
    %v2609 = vld [vmem:[#allocation10 + $0x8] sm:$0xf]
    %v2610 = vld [vmem:[#allocation10 + $0xc] sm:$0xf]
    %v2611 = vld [vmem:[#allocation10 + $0x10] sm:$0xf]
    %v2612 = vld [vmem:[#allocation10 + $0x14] sm:$0xf]
    %v2613 = vld [vmem:[#allocation10 + $0x18] sm:$0xf]
    %v2614 = vld [vmem:[#allocation10 + $0x1c] sm:$0xf]
    %v2615 = vld [vmem:[#allocation10 + $0x20] sm:$0xf]
    %v2616 = vld [vmem:[#allocation10 + $0x24] sm:$0xf]
    %v2617 = vld [vmem:[#allocation10 + $0x28] sm:$0xf]
    %v2618 = vld [vmem:[#allocation10 + $0x2c] sm:$0xf]
    %v2619 = vld [vmem:[#allocation10 + $0x30] sm:$0xf]
    %v2620 = vld [vmem:[#allocation10 + $0x34] sm:$0xf]
    %v2621 = vld [vmem:[#allocation10 + $0x38] sm:$0xf]
    %v2622 = vld [vmem:[#allocation10 + $0x3c] sm:$0xf]
    %v2639 = vunpack.c.l.b16 %v2591
    %v2640 = vunpack.c.l.b16 %v2592
    %v2641 = vunpack.c.l.b16 %v2593
    %v2642 = vunpack.c.l.b16 %v2594
    %v2643 = vunpack.c.l.b16 %v2595
    %v2644 = vunpack.c.l.b16 %v2596
    %v2645 = vunpack.c.l.b16 %v2597
    %v2646 = vunpack.c.l.b16 %v2598
    %v2647 = vunpack.c.l.b16 %v2599
    %v2648 = vunpack.c.l.b16 %v2600
    %v2649 = vunpack.c.l.b16 %v2601
    %v2650 = vunpack.c.l.b16 %v2602
    %v2651 = vunpack.c.l.b16 %v2603
    %v2652 = vunpack.c.l.b16 %v2604
    %v2653 = vunpack.c.l.b16 %v2605
    %v2654 = vunpack.c.l.b16 %v2606
    %v2655 = vpack.c.b16 %v2640, %v2639
    %v2656 = vpack.c.b16 %v2642, %v2641
    %v2657 = vpack.c.b16 %v2644, %v2643
    %v2658 = vpack.c.b16 %v2646, %v2645
    %v2659 = vpack.c.b16 %v2648, %v2647
    %v2660 = vpack.c.b16 %v2650, %v2649
    %v2661 = vpack.c.b16 %v2652, %v2651
    %v2662 = vpack.c.b16 %v2654, %v2653
    %2671 = vmatpush.bf16.msra.mxu0 %v2662
    %2672 = vmatpush.bf16.msra.mxu0 %v2661
    %2673 = vmatpush.bf16.msra.mxu0 %v2660
    %2674 = vmatpush.bf16.msra.mxu0 %v2659
    %2675 = vmatpush.bf16.msra.mxu0 %v2658
    %2676 = vmatpush.bf16.msra.mxu0 %v2657
    %2677 = vmatpush.bf16.msra.mxu0 %v2656
    %2678 = vmatpush.bf16.msra.mxu0 %v2655
    %2679 = vmatmul.bf16.gmra.mxu0 %v205
    %v2680 = vpop.f32.mrf.mxu0
    %v2681 = vadd.f32 0.0, %v2680
    %v2682 = vpop.f32.mrf.mxu0
    %v2683 = vadd.f32 0.0, %v2682
    %2684 = vmatmul.bf16.gmra.mxu0 %v206
    %v2685 = vpop.f32.mrf.mxu0
    %v2686 = vadd.f32 0.0, %v2685
    %v2687 = vpop.f32.mrf.mxu0
    %v2688 = vadd.f32 0.0, %v2687
    %2689 = vmatmul.bf16.gmra.mxu0 %v207
    %v2690 = vpop.f32.mrf.mxu0
    %v2691 = vadd.f32 0.0, %v2690
    %v2692 = vpop.f32.mrf.mxu0
    %v2693 = vadd.f32 0.0, %v2692
    %2694 = vmatmul.bf16.gmra.mxu0 %v208
    %v2695 = vpop.f32.mrf.mxu0
    %v2696 = vadd.f32 0.0, %v2695
    %v2697 = vpop.f32.mrf.mxu0
    %v2698 = vadd.f32 0.0, %v2697
    %2699 = vmatmul.bf16.gmra.mxu0 %v209
    %v2700 = vpop.f32.mrf.mxu0
    %v2701 = vadd.f32 0.0, %v2700
    %v2702 = vpop.f32.mrf.mxu0
    %v2703 = vadd.f32 0.0, %v2702
    %2704 = vmatmul.bf16.gmra.mxu0 %v210
    %v2705 = vpop.f32.mrf.mxu0
    %v2706 = vadd.f32 0.0, %v2705
    %v2707 = vpop.f32.mrf.mxu0
    %v2708 = vadd.f32 0.0, %v2707
    %2709 = vmatmul.bf16.gmra.mxu0 %v211
    %v2710 = vpop.f32.mrf.mxu0
    %v2711 = vadd.f32 0.0, %v2710
    %v2712 = vpop.f32.mrf.mxu0
    %v2713 = vadd.f32 0.0, %v2712
    %2714 = vmatmul.bf16.gmra.mxu0 %v212
    %v2715 = vpop.f32.mrf.mxu0
    %v2716 = vadd.f32 0.0, %v2715
    %v2717 = vpop.f32.mrf.mxu0
    %v2718 = vadd.f32 0.0, %v2717
    %2719 = vdwg.mxu0
    %v2720 = vpack.c.bf16 %v2681, %v2681
    %v2721 = vpack.c.bf16 %v2683, %v2683
    %v2722 = vpack.c.bf16 %v2686, %v2686
    %v2723 = vpack.c.bf16 %v2688, %v2688
    %v2724 = vpack.c.bf16 %v2691, %v2691
    %v2725 = vpack.c.bf16 %v2693, %v2693
    %v2726 = vpack.c.bf16 %v2696, %v2696
    %v2727 = vpack.c.bf16 %v2698, %v2698
    %v2728 = vpack.c.bf16 %v2701, %v2701
    %v2729 = vpack.c.bf16 %v2703, %v2703
    %v2730 = vpack.c.bf16 %v2706, %v2706
    %v2731 = vpack.c.bf16 %v2708, %v2708
    %v2732 = vpack.c.bf16 %v2711, %v2711
    %v2733 = vpack.c.bf16 %v2713, %v2713
    %v2734 = vpack.c.bf16 %v2716, %v2716
    %v2735 = vpack.c.bf16 %v2718, %v2718
    %s2736 = scalar_lea.vmem [#allocation10], 64
    %v2737 = vld [vmem:[%s2736] sm:$0xf]
    %v2738 = vld [vmem:[%s2736 + $0x4] sm:$0xf]
    %v2739 = vld [vmem:[%s2736 + $0x8] sm:$0xf]
    %v2740 = vld [vmem:[%s2736 + $0xc] sm:$0xf]
    %v2741 = vld [vmem:[%s2736 + $0x10] sm:$0xf]
    %v2742 = vld [vmem:[%s2736 + $0x14] sm:$0xf]
    %v2743 = vld [vmem:[%s2736 + $0x18] sm:$0xf]
    %v2744 = vld [vmem:[%s2736 + $0x1c] sm:$0xf]
    %v2745 = vld [vmem:[%s2736 + $0x20] sm:$0xf]
    %v2746 = vld [vmem:[%s2736 + $0x24] sm:$0xf]
    %v2747 = vld [vmem:[%s2736 + $0x28] sm:$0xf]
    %v2748 = vld [vmem:[%s2736 + $0x2c] sm:$0xf]
    %v2749 = vld [vmem:[%s2736 + $0x30] sm:$0xf]
    %v2750 = vld [vmem:[%s2736 + $0x34] sm:$0xf]
    %v2751 = vld [vmem:[%s2736 + $0x38] sm:$0xf]
    %v2752 = vld [vmem:[%s2736 + $0x3c] sm:$0xf]
    %v2769 = vunpack.c.l.b16 %v2720
    %v2770 = vunpack.c.l.b16 %v2721
    %v2771 = vunpack.c.l.b16 %v2722
    %v2772 = vunpack.c.l.b16 %v2723
    %v2773 = vunpack.c.l.b16 %v2724
    %v2774 = vunpack.c.l.b16 %v2725
    %v2775 = vunpack.c.l.b16 %v2726
    %v2776 = vunpack.c.l.b16 %v2727
    %v2777 = vunpack.c.l.b16 %v2728
    %v2778 = vunpack.c.l.b16 %v2729
    %v2779 = vunpack.c.l.b16 %v2730
    %v2780 = vunpack.c.l.b16 %v2731
    %v2781 = vunpack.c.l.b16 %v2732
    %v2782 = vunpack.c.l.b16 %v2733
    %v2783 = vunpack.c.l.b16 %v2734
    %v2784 = vunpack.c.l.b16 %v2735
    %v2785 = vpack.c.b16 %v2770, %v2769
    %v2786 = vpack.c.b16 %v2772, %v2771
    %v2787 = vpack.c.b16 %v2774, %v2773
    %v2788 = vpack.c.b16 %v2776, %v2775
    %v2789 = vpack.c.b16 %v2778, %v2777
    %v2790 = vpack.c.b16 %v2780, %v2779
    %v2791 = vpack.c.b16 %v2782, %v2781
    %v2792 = vpack.c.b16 %v2784, %v2783
    %v2817 = vunpack.c.l.b16 %v2737
    %v2818 = vunpack.c.l.b16 %v2738
    %v2819 = vunpack.c.l.b16 %v2739
    %v2820 = vunpack.c.l.b16 %v2740
    %v2821 = vunpack.c.l.b16 %v2741
    %v2822 = vunpack.c.l.b16 %v2742
    %v2823 = vunpack.c.l.b16 %v2743
    %v2824 = vunpack.c.l.b16 %v2744
    %v2825 = vunpack.c.l.b16 %v2745
    %v2826 = vunpack.c.l.b16 %v2746
    %v2827 = vunpack.c.l.b16 %v2747
    %v2828 = vunpack.c.l.b16 %v2748
    %v2829 = vunpack.c.l.b16 %v2749
    %v2830 = vunpack.c.l.b16 %v2750
    %v2831 = vunpack.c.l.b16 %v2751
    %v2832 = vunpack.c.l.b16 %v2752
    %v2833 = vpack.c.b16 %v2818, %v2817
    %v2834 = vpack.c.b16 %v2820, %v2819
    %v2835 = vpack.c.b16 %v2822, %v2821
    %v2836 = vpack.c.b16 %v2824, %v2823
    %v2837 = vpack.c.b16 %v2826, %v2825
    %v2838 = vpack.c.b16 %v2828, %v2827
    %v2839 = vpack.c.b16 %v2830, %v2829
    %v2840 = vpack.c.b16 %v2832, %v2831
    %2849 = vmatpush.bf16.msra.mxu0 %v2840
    %2850 = vmatpush.bf16.msra.mxu0 %v2839
    %2851 = vmatpush.bf16.msra.mxu0 %v2838
    %2852 = vmatpush.bf16.msra.mxu0 %v2837
    %2853 = vmatpush.bf16.msra.mxu0 %v2836
    %2854 = vmatpush.bf16.msra.mxu0 %v2835
    %2855 = vmatpush.bf16.msra.mxu0 %v2834
    %2856 = vmatpush.bf16.msra.mxu0 %v2833
    %2857 = vmatmul.bf16.gmra.mxu0 %v2785
    %v2858 = vpop.f32.mrf.mxu0
    %v2859 = vadd.f32 0.0, %v2858
    %v2860 = vpop.f32.mrf.mxu0
    %v2861 = vadd.f32 0.0, %v2860
    %2862 = vmatmul.bf16.gmra.mxu0 %v2786
    %v2863 = vpop.f32.mrf.mxu0
    %v2864 = vadd.f32 0.0, %v2863
    %v2865 = vpop.f32.mrf.mxu0
    %v2866 = vadd.f32 0.0, %v2865
    %2867 = vmatmul.bf16.gmra.mxu0 %v2787
    %v2868 = vpop.f32.mrf.mxu0
    %v2869 = vadd.f32 0.0, %v2868
    %v2870 = vpop.f32.mrf.mxu0
    %v2871 = vadd.f32 0.0, %v2870
    %2872 = vmatmul.bf16.gmra.mxu0 %v2788
    %v2873 = vpop.f32.mrf.mxu0
    %v2874 = vadd.f32 0.0, %v2873
    %v2875 = vpop.f32.mrf.mxu0
    %v2876 = vadd.f32 0.0, %v2875
    %2877 = vmatmul.bf16.gmra.mxu0 %v2789
    %v2878 = vpop.f32.mrf.mxu0
    %v2879 = vadd.f32 0.0, %v2878
    %v2880 = vpop.f32.mrf.mxu0
    %v2881 = vadd.f32 0.0, %v2880
    %2882 = vmatmul.bf16.gmra.mxu0 %v2790
    %v2883 = vpop.f32.mrf.mxu0
    %v2884 = vadd.f32 0.0, %v2883
    %v2885 = vpop.f32.mrf.mxu0
    %v2886 = vadd.f32 0.0, %v2885
    %2887 = vmatmul.bf16.gmra.mxu0 %v2791
    %v2888 = vpop.f32.mrf.mxu0
    %v2889 = vadd.f32 0.0, %v2888
    %v2890 = vpop.f32.mrf.mxu0
    %v2891 = vadd.f32 0.0, %v2890
    %2892 = vmatmul.bf16.gmra.mxu0 %v2792
    %v2893 = vpop.f32.mrf.mxu0
    %v2894 = vadd.f32 0.0, %v2893
    %v2895 = vpop.f32.mrf.mxu0
    %v2896 = vadd.f32 0.0, %v2895
    %2897 = vdwg.mxu0
    %v2914 = vunpack.c.l.b16 %v2607
    %v2915 = vunpack.c.l.b16 %v2608
    %v2916 = vunpack.c.l.b16 %v2609
    %v2917 = vunpack.c.l.b16 %v2610
    %v2918 = vunpack.c.l.b16 %v2611
    %v2919 = vunpack.c.l.b16 %v2612
    %v2920 = vunpack.c.l.b16 %v2613
    %v2921 = vunpack.c.l.b16 %v2614
    %v2922 = vunpack.c.l.b16 %v2615
    %v2923 = vunpack.c.l.b16 %v2616
    %v2924 = vunpack.c.l.b16 %v2617
    %v2925 = vunpack.c.l.b16 %v2618
    %v2926 = vunpack.c.l.b16 %v2619
    %v2927 = vunpack.c.l.b16 %v2620
    %v2928 = vunpack.c.l.b16 %v2621
    %v2929 = vunpack.c.l.b16 %v2622
    %v2930 = vpack.c.b16 %v2915, %v2914
    %v2931 = vpack.c.b16 %v2917, %v2916
    %v2932 = vpack.c.b16 %v2919, %v2918
    %v2933 = vpack.c.b16 %v2921, %v2920
    %v2934 = vpack.c.b16 %v2923, %v2922
    %v2935 = vpack.c.b16 %v2925, %v2924
    %v2936 = vpack.c.b16 %v2927, %v2926
    %v2937 = vpack.c.b16 %v2929, %v2928
    %2946 = vmatpush.bf16.msra.mxu0 %v2937
    %2947 = vmatpush.bf16.msra.mxu0 %v2936
    %2948 = vmatpush.bf16.msra.mxu0 %v2935
    %2949 = vmatpush.bf16.msra.mxu0 %v2934
    %2950 = vmatpush.bf16.msra.mxu0 %v2933
    %2951 = vmatpush.bf16.msra.mxu0 %v2932
    %2952 = vmatpush.bf16.msra.mxu0 %v2931
    %2953 = vmatpush.bf16.msra.mxu0 %v2930
    %2954 = vmatmul.bf16.gmra.mxu0 %v2655
    %v2955 = vpop.f32.mrf.mxu0
    %v2956 = vadd.f32 %v2859, %v2955
    %v2957 = vpop.f32.mrf.mxu0
    %v2958 = vadd.f32 %v2861, %v2957
    %2959 = vmatmul.bf16.gmra.mxu0 %v2656
    %v2960 = vpop.f32.mrf.mxu0
    %v2961 = vadd.f32 %v2864, %v2960
    %v2962 = vpop.f32.mrf.mxu0
    %v2963 = vadd.f32 %v2866, %v2962
    %2964 = vmatmul.bf16.gmra.mxu0 %v2657
    %v2965 = vpop.f32.mrf.mxu0
    %v2966 = vadd.f32 %v2869, %v2965
    %v2967 = vpop.f32.mrf.mxu0
    %v2968 = vadd.f32 %v2871, %v2967
    %2969 = vmatmul.bf16.gmra.mxu0 %v2658
    %v2970 = vpop.f32.mrf.mxu0
    %v2971 = vadd.f32 %v2874, %v2970
    %v2972 = vpop.f32.mrf.mxu0
    %v2973 = vadd.f32 %v2876, %v2972
    %2974 = vmatmul.bf16.gmra.mxu0 %v2659
    %v2975 = vpop.f32.mrf.mxu0
    %v2976 = vadd.f32 %v2879, %v2975
    %v2977 = vpop.f32.mrf.mxu0
    %v2978 = vadd.f32 %v2881, %v2977
    %2979 = vmatmul.bf16.gmra.mxu0 %v2660
    %v2980 = vpop.f32.mrf.mxu0
    %v2981 = vadd.f32 %v2884, %v2980
    %v2982 = vpop.f32.mrf.mxu0
    %v2983 = vadd.f32 %v2886, %v2982
    %2984 = vmatmul.bf16.gmra.mxu0 %v2661
    %v2985 = vpop.f32.mrf.mxu0
    %v2986 = vadd.f32 %v2889, %v2985
    %v2987 = vpop.f32.mrf.mxu0
    %v2988 = vadd.f32 %v2891, %v2987
    %2989 = vmatmul.bf16.gmra.mxu0 %v2662
    %v2990 = vpop.f32.mrf.mxu0
    %v2991 = vadd.f32 %v2894, %v2990
    %v2992 = vpop.f32.mrf.mxu0
    %v2993 = vadd.f32 %v2896, %v2992
    %2994 = vdwg.mxu0
    %2995 = vmatpush.bf16.msra.mxu0 %v2792
    %2996 = vmatpush.bf16.msra.mxu0 %v2791
    %2997 = vmatpush.bf16.msra.mxu0 %v2790
    %2998 = vmatpush.bf16.msra.mxu0 %v2789
    %2999 = vmatpush.bf16.msra.mxu0 %v2788
    %3000 = vmatpush.bf16.msra.mxu0 %v2787
    %3001 = vmatpush.bf16.msra.mxu0 %v2786
    %3002 = vmatpush.bf16.msra.mxu0 %v2785
    %3003 = vmatmul.bf16.gmra.mxu0 %v205
    %v3004 = vpop.f32.mrf.mxu0
    %v3005 = vadd.f32 0.0, %v3004
    %v3006 = vpop.f32.mrf.mxu0
    %v3007 = vadd.f32 0.0, %v3006
    %3008 = vmatmul.bf16.gmra.mxu0 %v206
    %v3009 = vpop.f32.mrf.mxu0
    %v3010 = vadd.f32 0.0, %v3009
    %v3011 = vpop.f32.mrf.mxu0
    %v3012 = vadd.f32 0.0, %v3011
    %3013 = vmatmul.bf16.gmra.mxu0 %v207
    %v3014 = vpop.f32.mrf.mxu0
    %v3015 = vadd.f32 0.0, %v3014
    %v3016 = vpop.f32.mrf.mxu0
    %v3017 = vadd.f32 0.0, %v3016
    %3018 = vmatmul.bf16.gmra.mxu0 %v208
    %v3019 = vpop.f32.mrf.mxu0
    %v3020 = vadd.f32 0.0, %v3019
    %v3021 = vpop.f32.mrf.mxu0
    %v3022 = vadd.f32 0.0, %v3021
    %3023 = vmatmul.bf16.gmra.mxu0 %v209
    %v3024 = vpop.f32.mrf.mxu0
    %v3025 = vadd.f32 0.0, %v3024
    %v3026 = vpop.f32.mrf.mxu0
    %v3027 = vadd.f32 0.0, %v3026
    %3028 = vmatmul.bf16.gmra.mxu0 %v210
    %v3029 = vpop.f32.mrf.mxu0
    %v3030 = vadd.f32 0.0, %v3029
    %v3031 = vpop.f32.mrf.mxu0
    %v3032 = vadd.f32 0.0, %v3031
    %3033 = vmatmul.bf16.gmra.mxu0 %v211
    %v3034 = vpop.f32.mrf.mxu0
    %v3035 = vadd.f32 0.0, %v3034
    %v3036 = vpop.f32.mrf.mxu0
    %v3037 = vadd.f32 0.0, %v3036
    %3038 = vmatmul.bf16.gmra.mxu0 %v212
    %v3039 = vpop.f32.mrf.mxu0
    %v3040 = vadd.f32 0.0, %v3039
    %v3041 = vpop.f32.mrf.mxu0
    %v3042 = vadd.f32 0.0, %v3041
    %3043 = vdwg.mxu0
    %v3044 = vmul.f32 %v3005, 2.0
    %v3045 = vmul.f32 %v3007, 2.0
    %v3046 = vmul.f32 %v3010, 2.0
    %v3047 = vmul.f32 %v3012, 2.0
    %v3048 = vmul.f32 %v3015, 2.0
    %v3049 = vmul.f32 %v3017, 2.0
    %v3050 = vmul.f32 %v3020, 2.0
    %v3051 = vmul.f32 %v3022, 2.0
    %v3052 = vmul.f32 %v3025, 2.0
    %v3053 = vmul.f32 %v3027, 2.0
    %v3054 = vmul.f32 %v3030, 2.0
    %v3055 = vmul.f32 %v3032, 2.0
    %v3056 = vmul.f32 %v3035, 2.0
    %v3057 = vmul.f32 %v3037, 2.0
    %v3058 = vmul.f32 %v3040, 2.0
    %v3059 = vmul.f32 %v3042, 2.0
    %v3060 = vunpack.c.l.bf16 %v2591
    %v3061 = vunpack.c.l.bf16 %v2592
    %v3062 = vunpack.c.l.bf16 %v2593
    %v3063 = vunpack.c.l.bf16 %v2594
    %v3064 = vunpack.c.l.bf16 %v2595
    %v3065 = vunpack.c.l.bf16 %v2596
    %v3066 = vunpack.c.l.bf16 %v2597
    %v3067 = vunpack.c.l.bf16 %v2598
    %v3068 = vunpack.c.l.bf16 %v2599
    %v3069 = vunpack.c.l.bf16 %v2600
    %v3070 = vunpack.c.l.bf16 %v2601
    %v3071 = vunpack.c.l.bf16 %v2602
    %v3072 = vunpack.c.l.bf16 %v2603
    %v3073 = vunpack.c.l.bf16 %v2604
    %v3074 = vunpack.c.l.bf16 %v2605
    %v3075 = vunpack.c.l.bf16 %v2606
    %v3076 = vsub.f32 %v3044, %v3060
    %v3077 = vsub.f32 %v3045, %v3061
    %v3078 = vsub.f32 %v3046, %v3062
    %v3079 = vsub.f32 %v3047, %v3063
    %v3080 = vsub.f32 %v3048, %v3064
    %v3081 = vsub.f32 %v3049, %v3065
    %v3082 = vsub.f32 %v3050, %v3066
    %v3083 = vsub.f32 %v3051, %v3067
    %v3084 = vsub.f32 %v3052, %v3068
    %v3085 = vsub.f32 %v3053, %v3069
    %v3086 = vsub.f32 %v3054, %v3070
    %v3087 = vsub.f32 %v3055, %v3071
    %v3088 = vsub.f32 %v3056, %v3072
    %v3089 = vsub.f32 %v3057, %v3073
    %v3090 = vsub.f32 %v3058, %v3074
    %v3091 = vsub.f32 %v3059, %v3075
    %v3092 = vpack.c.bf16 %v3076, %v3076
    %v3093 = vpack.c.bf16 %v3077, %v3077
    %v3094 = vpack.c.bf16 %v3078, %v3078
    %v3095 = vpack.c.bf16 %v3079, %v3079
    %v3096 = vpack.c.bf16 %v3080, %v3080
    %v3097 = vpack.c.bf16 %v3081, %v3081
    %v3098 = vpack.c.bf16 %v3082, %v3082
    %v3099 = vpack.c.bf16 %v3083, %v3083
    %v3100 = vpack.c.bf16 %v3084, %v3084
    %v3101 = vpack.c.bf16 %v3085, %v3085
    %v3102 = vpack.c.bf16 %v3086, %v3086
    %v3103 = vpack.c.bf16 %v3087, %v3087
    %v3104 = vpack.c.bf16 %v3088, %v3088
    %v3105 = vpack.c.bf16 %v3089, %v3089
    %v3106 = vpack.c.bf16 %v3090, %v3090
    %v3107 = vpack.c.bf16 %v3091, %v3091
    %s3108 = scalar_lea.vmem [#allocation10], 128
    %v3109 = vld [vmem:[%s3108] sm:$0xf]
    %v3110 = vld [vmem:[%s3108 + $0x4] sm:$0xf]
    %v3111 = vld [vmem:[%s3108 + $0x8] sm:$0xf]
    %v3112 = vld [vmem:[%s3108 + $0xc] sm:$0xf]
    %v3113 = vld [vmem:[%s3108 + $0x10] sm:$0xf]
    %v3114 = vld [vmem:[%s3108 + $0x14] sm:$0xf]
    %v3115 = vld [vmem:[%s3108 + $0x18] sm:$0xf]
    %v3116 = vld [vmem:[%s3108 + $0x1c] sm:$0xf]
    %v3117 = vld [vmem:[%s3108 + $0x20] sm:$0xf]
    %v3118 = vld [vmem:[%s3108 + $0x24] sm:$0xf]
    %v3119 = vld [vmem:[%s3108 + $0x28] sm:$0xf]
    %v3120 = vld [vmem:[%s3108 + $0x2c] sm:$0xf]
    %v3121 = vld [vmem:[%s3108 + $0x30] sm:$0xf]
    %v3122 = vld [vmem:[%s3108 + $0x34] sm:$0xf]
    %v3123 = vld [vmem:[%s3108 + $0x38] sm:$0xf]
    %v3124 = vld [vmem:[%s3108 + $0x3c] sm:$0xf]
    %v3141 = vunpack.c.l.b16 %v3092
    %v3142 = vunpack.c.l.b16 %v3093
    %v3143 = vunpack.c.l.b16 %v3094
    %v3144 = vunpack.c.l.b16 %v3095
    %v3145 = vunpack.c.l.b16 %v3096
    %v3146 = vunpack.c.l.b16 %v3097
    %v3147 = vunpack.c.l.b16 %v3098
    %v3148 = vunpack.c.l.b16 %v3099
    %v3149 = vunpack.c.l.b16 %v3100
    %v3150 = vunpack.c.l.b16 %v3101
    %v3151 = vunpack.c.l.b16 %v3102
    %v3152 = vunpack.c.l.b16 %v3103
    %v3153 = vunpack.c.l.b16 %v3104
    %v3154 = vunpack.c.l.b16 %v3105
    %v3155 = vunpack.c.l.b16 %v3106
    %v3156 = vunpack.c.l.b16 %v3107
    %v3157 = vpack.c.b16 %v3142, %v3141
    %v3158 = vpack.c.b16 %v3144, %v3143
    %v3159 = vpack.c.b16 %v3146, %v3145
    %v3160 = vpack.c.b16 %v3148, %v3147
    %v3161 = vpack.c.b16 %v3150, %v3149
    %v3162 = vpack.c.b16 %v3152, %v3151
    %v3163 = vpack.c.b16 %v3154, %v3153
    %v3164 = vpack.c.b16 %v3156, %v3155
    %v3189 = vunpack.c.l.b16 %v3109
    %v3190 = vunpack.c.l.b16 %v3110
    %v3191 = vunpack.c.l.b16 %v3111
    %v3192 = vunpack.c.l.b16 %v3112
    %v3193 = vunpack.c.l.b16 %v3113
    %v3194 = vunpack.c.l.b16 %v3114
    %v3195 = vunpack.c.l.b16 %v3115
    %v3196 = vunpack.c.l.b16 %v3116
    %v3197 = vunpack.c.l.b16 %v3117
    %v3198 = vunpack.c.l.b16 %v3118
    %v3199 = vunpack.c.l.b16 %v3119
    %v3200 = vunpack.c.l.b16 %v3120
    %v3201 = vunpack.c.l.b16 %v3121
    %v3202 = vunpack.c.l.b16 %v3122
    %v3203 = vunpack.c.l.b16 %v3123
    %v3204 = vunpack.c.l.b16 %v3124
    %v3205 = vpack.c.b16 %v3190, %v3189
    %v3206 = vpack.c.b16 %v3192, %v3191
    %v3207 = vpack.c.b16 %v3194, %v3193
    %v3208 = vpack.c.b16 %v3196, %v3195
    %v3209 = vpack.c.b16 %v3198, %v3197
    %v3210 = vpack.c.b16 %v3200, %v3199
    %v3211 = vpack.c.b16 %v3202, %v3201
    %v3212 = vpack.c.b16 %v3204, %v3203
    %3221 = vmatpush.bf16.msra.mxu0 %v3212
    %3222 = vmatpush.bf16.msra.mxu0 %v3211
    %3223 = vmatpush.bf16.msra.mxu0 %v3210
    %3224 = vmatpush.bf16.msra.mxu0 %v3209
    %3225 = vmatpush.bf16.msra.mxu0 %v3208
    %3226 = vmatpush.bf16.msra.mxu0 %v3207
    %3227 = vmatpush.bf16.msra.mxu0 %v3206
    %3228 = vmatpush.bf16.msra.mxu0 %v3205
    %3229 = vmatmul.bf16.gmra.mxu0 %v3157
    %v3230 = vpop.f32.mrf.mxu0
    %v3231 = vadd.f32 0.0, %v3230
    %v3232 = vpop.f32.mrf.mxu0
    %v3233 = vadd.f32 0.0, %v3232
    %3234 = vmatmul.bf16.gmra.mxu0 %v3158
    %v3235 = vpop.f32.mrf.mxu0
    %v3236 = vadd.f32 0.0, %v3235
    %v3237 = vpop.f32.mrf.mxu0
    %v3238 = vadd.f32 0.0, %v3237
    %3239 = vmatmul.bf16.gmra.mxu0 %v3159
    %v3240 = vpop.f32.mrf.mxu0
    %v3241 = vadd.f32 0.0, %v3240
    %v3242 = vpop.f32.mrf.mxu0
    %v3243 = vadd.f32 0.0, %v3242
    %3244 = vmatmul.bf16.gmra.mxu0 %v3160
    %v3245 = vpop.f32.mrf.mxu0
    %v3246 = vadd.f32 0.0, %v3245
    %v3247 = vpop.f32.mrf.mxu0
    %v3248 = vadd.f32 0.0, %v3247
    %3249 = vmatmul.bf16.gmra.mxu0 %v3161
    %v3250 = vpop.f32.mrf.mxu0
    %v3251 = vadd.f32 0.0, %v3250
    %v3252 = vpop.f32.mrf.mxu0
    %v3253 = vadd.f32 0.0, %v3252
    %3254 = vmatmul.bf16.gmra.mxu0 %v3162
    %v3255 = vpop.f32.mrf.mxu0
    %v3256 = vadd.f32 0.0, %v3255
    %v3257 = vpop.f32.mrf.mxu0
    %v3258 = vadd.f32 0.0, %v3257
    %3259 = vmatmul.bf16.gmra.mxu0 %v3163
    %v3260 = vpop.f32.mrf.mxu0
    %v3261 = vadd.f32 0.0, %v3260
    %v3262 = vpop.f32.mrf.mxu0
    %v3263 = vadd.f32 0.0, %v3262
    %3264 = vmatmul.bf16.gmra.mxu0 %v3164
    %v3265 = vpop.f32.mrf.mxu0
    %v3266 = vadd.f32 0.0, %v3265
    %v3267 = vpop.f32.mrf.mxu0
    %v3268 = vadd.f32 0.0, %v3267
    %3269 = vdwg.mxu0
    %v3270 = vadd.f32 %v2956, %v3231
    %v3271 = vadd.f32 %v2958, %v3233
    %v3272 = vadd.f32 %v2961, %v3236
    %v3273 = vadd.f32 %v2963, %v3238
    %v3274 = vadd.f32 %v2966, %v3241
    %v3275 = vadd.f32 %v2968, %v3243
    %v3276 = vadd.f32 %v2971, %v3246
    %v3277 = vadd.f32 %v2973, %v3248
    %v3278 = vadd.f32 %v2976, %v3251
    %v3279 = vadd.f32 %v2978, %v3253
    %v3280 = vadd.f32 %v2981, %v3256
    %v3281 = vadd.f32 %v2983, %v3258
    %v3282 = vadd.f32 %v2986, %v3261
    %v3283 = vadd.f32 %v2988, %v3263
    %v3284 = vadd.f32 %v2991, %v3266
    %v3285 = vadd.f32 %v2993, %v3268
    %3286 = vmatpush.bf16.msra.mxu0 %v3164
    %3287 = vmatpush.bf16.msra.mxu0 %v3163
    %3288 = vmatpush.bf16.msra.mxu0 %v3162
    %3289 = vmatpush.bf16.msra.mxu0 %v3161
    %3290 = vmatpush.bf16.msra.mxu0 %v3160
    %3291 = vmatpush.bf16.msra.mxu0 %v3159
    %3292 = vmatpush.bf16.msra.mxu0 %v3158
    %3293 = vmatpush.bf16.msra.mxu0 %v3157
    %3294 = vmatmul.bf16.gmra.mxu0 %v205
    %v3295 = vpop.f32.mrf.mxu0
    %v3296 = vadd.f32 0.0, %v3295
    %v3297 = vpop.f32.mrf.mxu0
    %v3298 = vadd.f32 0.0, %v3297
    %3299 = vmatmul.bf16.gmra.mxu0 %v206
    %v3300 = vpop.f32.mrf.mxu0
    %v3301 = vadd.f32 0.0, %v3300
    %v3302 = vpop.f32.mrf.mxu0
    %v3303 = vadd.f32 0.0, %v3302
    %3304 = vmatmul.bf16.gmra.mxu0 %v207
    %v3305 = vpop.f32.mrf.mxu0
    %v3306 = vadd.f32 0.0, %v3305
    %v3307 = vpop.f32.mrf.mxu0
    %v3308 = vadd.f32 0.0, %v3307
    %3309 = vmatmul.bf16.gmra.mxu0 %v208
    %v3310 = vpop.f32.mrf.mxu0
    %v3311 = vadd.f32 0.0, %v3310
    %v3312 = vpop.f32.mrf.mxu0
    %v3313 = vadd.f32 0.0, %v3312
    %3314 = vmatmul.bf16.gmra.mxu0 %v209
    %v3315 = vpop.f32.mrf.mxu0
    %v3316 = vadd.f32 0.0, %v3315
    %v3317 = vpop.f32.mrf.mxu0
    %v3318 = vadd.f32 0.0, %v3317
    %3319 = vmatmul.bf16.gmra.mxu0 %v210
    %v3320 = vpop.f32.mrf.mxu0
    %v3321 = vadd.f32 0.0, %v3320
    %v3322 = vpop.f32.mrf.mxu0
    %v3323 = vadd.f32 0.0, %v3322
    %3324 = vmatmul.bf16.gmra.mxu0 %v211
    %v3325 = vpop.f32.mrf.mxu0
    %v3326 = vadd.f32 0.0, %v3325
    %v3327 = vpop.f32.mrf.mxu0
    %v3328 = vadd.f32 0.0, %v3327
    %3329 = vmatmul.bf16.gmra.mxu0 %v212
    %v3330 = vpop.f32.mrf.mxu0
    %v3331 = vadd.f32 0.0, %v3330
    %v3332 = vpop.f32.mrf.mxu0
    %v3333 = vadd.f32 0.0, %v3332
    %3334 = vdwg.mxu0
    %v3335 = vmul.f32 %v3296, 2.0
    %v3336 = vmul.f32 %v3298, 2.0
    %v3337 = vmul.f32 %v3301, 2.0
    %v3338 = vmul.f32 %v3303, 2.0
    %v3339 = vmul.f32 %v3306, 2.0
    %v3340 = vmul.f32 %v3308, 2.0
    %v3341 = vmul.f32 %v3311, 2.0
    %v3342 = vmul.f32 %v3313, 2.0
    %v3343 = vmul.f32 %v3316, 2.0
    %v3344 = vmul.f32 %v3318, 2.0
    %v3345 = vmul.f32 %v3321, 2.0
    %v3346 = vmul.f32 %v3323, 2.0
    %v3347 = vmul.f32 %v3326, 2.0
    %v3348 = vmul.f32 %v3328, 2.0
    %v3349 = vmul.f32 %v3331, 2.0
    %v3350 = vmul.f32 %v3333, 2.0
    %v3351 = vunpack.c.l.bf16 %v2720
    %v3352 = vunpack.c.l.bf16 %v2721
    %v3353 = vunpack.c.l.bf16 %v2722
    %v3354 = vunpack.c.l.bf16 %v2723
    %v3355 = vunpack.c.l.bf16 %v2724
    %v3356 = vunpack.c.l.bf16 %v2725
    %v3357 = vunpack.c.l.bf16 %v2726
    %v3358 = vunpack.c.l.bf16 %v2727
    %v3359 = vunpack.c.l.bf16 %v2728
    %v3360 = vunpack.c.l.bf16 %v2729
    %v3361 = vunpack.c.l.bf16 %v2730
    %v3362 = vunpack.c.l.bf16 %v2731
    %v3363 = vunpack.c.l.bf16 %v2732
    %v3364 = vunpack.c.l.bf16 %v2733
    %v3365 = vunpack.c.l.bf16 %v2734
    %v3366 = vunpack.c.l.bf16 %v2735
    %v3367 = vsub.f32 %v3335, %v3351
    %v3368 = vsub.f32 %v3336, %v3352
    %v3369 = vsub.f32 %v3337, %v3353
    %v3370 = vsub.f32 %v3338, %v3354
    %v3371 = vsub.f32 %v3339, %v3355
    %v3372 = vsub.f32 %v3340, %v3356
    %v3373 = vsub.f32 %v3341, %v3357
    %v3374 = vsub.f32 %v3342, %v3358
    %v3375 = vsub.f32 %v3343, %v3359
    %v3376 = vsub.f32 %v3344, %v3360
    %v3377 = vsub.f32 %v3345, %v3361
    %v3378 = vsub.f32 %v3346, %v3362
    %v3379 = vsub.f32 %v3347, %v3363
    %v3380 = vsub.f32 %v3348, %v3364
    %v3381 = vsub.f32 %v3349, %v3365
    %v3382 = vsub.f32 %v3350, %v3366
    %v3383 = vpack.c.bf16 %v3368, %v3367
    %v3384 = vpack.c.bf16 %v3370, %v3369
    %v3385 = vpack.c.bf16 %v3372, %v3371
    %v3386 = vpack.c.bf16 %v3374, %v3373
    %v3387 = vpack.c.bf16 %v3376, %v3375
    %v3388 = vpack.c.bf16 %v3378, %v3377
    %v3389 = vpack.c.bf16 %v3380, %v3379
    %v3390 = vpack.c.bf16 %v3382, %v3381
    %s3391 = scalar_lea.vmem [#allocation10], 192
    %v3392 = vld [vmem:[%s3391] sm:$0xf]
    %v3393 = vld [vmem:[%s3391 + $0x4] sm:$0xf]
    %v3394 = vld [vmem:[%s3391 + $0x8] sm:$0xf]
    %v3395 = vld [vmem:[%s3391 + $0xc] sm:$0xf]
    %v3396 = vld [vmem:[%s3391 + $0x10] sm:$0xf]
    %v3397 = vld [vmem:[%s3391 + $0x14] sm:$0xf]
    %v3398 = vld [vmem:[%s3391 + $0x18] sm:$0xf]
    %v3399 = vld [vmem:[%s3391 + $0x1c] sm:$0xf]
    %v3400 = vld [vmem:[%s3391 + $0x20] sm:$0xf]
    %v3401 = vld [vmem:[%s3391 + $0x24] sm:$0xf]
    %v3402 = vld [vmem:[%s3391 + $0x28] sm:$0xf]
    %v3403 = vld [vmem:[%s3391 + $0x2c] sm:$0xf]
    %v3404 = vld [vmem:[%s3391 + $0x30] sm:$0xf]
    %v3405 = vld [vmem:[%s3391 + $0x34] sm:$0xf]
    %v3406 = vld [vmem:[%s3391 + $0x38] sm:$0xf]
    %v3407 = vld [vmem:[%s3391 + $0x3c] sm:$0xf]
    %v3424 = vunpack.c.l.b16 %v3392
    %v3425 = vunpack.c.l.b16 %v3393
    %v3426 = vunpack.c.l.b16 %v3394
    %v3427 = vunpack.c.l.b16 %v3395
    %v3428 = vunpack.c.l.b16 %v3396
    %v3429 = vunpack.c.l.b16 %v3397
    %v3430 = vunpack.c.l.b16 %v3398
    %v3431 = vunpack.c.l.b16 %v3399
    %v3432 = vunpack.c.l.b16 %v3400
    %v3433 = vunpack.c.l.b16 %v3401
    %v3434 = vunpack.c.l.b16 %v3402
    %v3435 = vunpack.c.l.b16 %v3403
    %v3436 = vunpack.c.l.b16 %v3404
    %v3437 = vunpack.c.l.b16 %v3405
    %v3438 = vunpack.c.l.b16 %v3406
    %v3439 = vunpack.c.l.b16 %v3407
    %v3440 = vpack.c.b16 %v3425, %v3424
    %v3441 = vpack.c.b16 %v3427, %v3426
    %v3442 = vpack.c.b16 %v3429, %v3428
    %v3443 = vpack.c.b16 %v3431, %v3430
    %v3444 = vpack.c.b16 %v3433, %v3432
    %v3445 = vpack.c.b16 %v3435, %v3434
    %v3446 = vpack.c.b16 %v3437, %v3436
    %v3447 = vpack.c.b16 %v3439, %v3438
    %3456 = vmatpush.bf16.msra.mxu0 %v3447
    %3457 = vmatpush.bf16.msra.mxu0 %v3446
    %3458 = vmatpush.bf16.msra.mxu0 %v3445
    %3459 = vmatpush.bf16.msra.mxu0 %v3444
    %3460 = vmatpush.bf16.msra.mxu0 %v3443
    %3461 = vmatpush.bf16.msra.mxu0 %v3442
    %3462 = vmatpush.bf16.msra.mxu0 %v3441
    %3463 = vmatpush.bf16.msra.mxu0 %v3440
    %3464 = vmatmul.bf16.gmra.mxu0 %v3383
    %v3465 = vpop.f32.mrf.mxu0
    %v3466 = vadd.f32 0.0, %v3465
    %v3467 = vpop.f32.mrf.mxu0
    %v3468 = vadd.f32 0.0, %v3467
    %3469 = vmatmul.bf16.gmra.mxu0 %v3384
    %v3470 = vpop.f32.mrf.mxu0
    %v3471 = vadd.f32 0.0, %v3470
    %v3472 = vpop.f32.mrf.mxu0
    %v3473 = vadd.f32 0.0, %v3472
    %3474 = vmatmul.bf16.gmra.mxu0 %v3385
    %v3475 = vpop.f32.mrf.mxu0
    %v3476 = vadd.f32 0.0, %v3475
    %v3477 = vpop.f32.mrf.mxu0
    %v3478 = vadd.f32 0.0, %v3477
    %3479 = vmatmul.bf16.gmra.mxu0 %v3386
    %v3480 = vpop.f32.mrf.mxu0
    %v3481 = vadd.f32 0.0, %v3480
    %v3482 = vpop.f32.mrf.mxu0
    %v3483 = vadd.f32 0.0, %v3482
    %3484 = vmatmul.bf16.gmra.mxu0 %v3387
    %v3485 = vpop.f32.mrf.mxu0
    %v3486 = vadd.f32 0.0, %v3485
    %v3487 = vpop.f32.mrf.mxu0
    %v3488 = vadd.f32 0.0, %v3487
    %3489 = vmatmul.bf16.gmra.mxu0 %v3388
    %v3490 = vpop.f32.mrf.mxu0
    %v3491 = vadd.f32 0.0, %v3490
    %v3492 = vpop.f32.mrf.mxu0
    %v3493 = vadd.f32 0.0, %v3492
    %3494 = vmatmul.bf16.gmra.mxu0 %v3389
    %v3495 = vpop.f32.mrf.mxu0
    %v3496 = vadd.f32 0.0, %v3495
    %v3497 = vpop.f32.mrf.mxu0
    %v3498 = vadd.f32 0.0, %v3497
    %3499 = vmatmul.bf16.gmra.mxu0 %v3390
    %v3500 = vpop.f32.mrf.mxu0
    %v3501 = vadd.f32 0.0, %v3500
    %v3502 = vpop.f32.mrf.mxu0
    %v3503 = vadd.f32 0.0, %v3502
    %3504 = vdwg.mxu0
    %v3505 = vadd.f32 %v3270, %v3466
    %v3506 = vadd.f32 %v3271, %v3468
    %v3507 = vadd.f32 %v3272, %v3471
    %v3508 = vadd.f32 %v3273, %v3473
    %v3509 = vadd.f32 %v3274, %v3476
    %v3510 = vadd.f32 %v3275, %v3478
    %v3511 = vadd.f32 %v3276, %v3481
    %v3512 = vadd.f32 %v3277, %v3483
    %v3513 = vadd.f32 %v3278, %v3486
    %v3514 = vadd.f32 %v3279, %v3488
    %v3515 = vadd.f32 %v3280, %v3491
    %v3516 = vadd.f32 %v3281, %v3493
    %v3517 = vadd.f32 %v3282, %v3496
    %v3518 = vadd.f32 %v3283, %v3498
    %v3519 = vadd.f32 %v3284, %v3501
    %v3520 = vadd.f32 %v3285, %v3503
    %3521 = vmatpush.bf16.msra.mxu0 %v3390
    %3522 = vmatpush.bf16.msra.mxu0 %v3389
    %3523 = vmatpush.bf16.msra.mxu0 %v3388
    %3524 = vmatpush.bf16.msra.mxu0 %v3387
    %3525 = vmatpush.bf16.msra.mxu0 %v3386
    %3526 = vmatpush.bf16.msra.mxu0 %v3385
    %3527 = vmatpush.bf16.msra.mxu0 %v3384
    %3528 = vmatpush.bf16.msra.mxu0 %v3383
    %3529 = vmatmul.bf16.gmra.mxu0 %v205
    %v3530 = vpop.f32.mrf.mxu0
    %v3531 = vadd.f32 0.0, %v3530
    %v3532 = vpop.f32.mrf.mxu0
    %v3533 = vadd.f32 0.0, %v3532
    %3534 = vmatmul.bf16.gmra.mxu0 %v206
    %v3535 = vpop.f32.mrf.mxu0
    %v3536 = vadd.f32 0.0, %v3535
    %v3537 = vpop.f32.mrf.mxu0
    %v3538 = vadd.f32 0.0, %v3537
    %3539 = vmatmul.bf16.gmra.mxu0 %v207
    %v3540 = vpop.f32.mrf.mxu0
    %v3541 = vadd.f32 0.0, %v3540
    %v3542 = vpop.f32.mrf.mxu0
    %v3543 = vadd.f32 0.0, %v3542
    %3544 = vmatmul.bf16.gmra.mxu0 %v208
    %v3545 = vpop.f32.mrf.mxu0
    %v3546 = vadd.f32 0.0, %v3545
    %v3547 = vpop.f32.mrf.mxu0
    %v3548 = vadd.f32 0.0, %v3547
    %3549 = vmatmul.bf16.gmra.mxu0 %v209
    %v3550 = vpop.f32.mrf.mxu0
    %v3551 = vadd.f32 0.0, %v3550
    %v3552 = vpop.f32.mrf.mxu0
    %v3553 = vadd.f32 0.0, %v3552
    %3554 = vmatmul.bf16.gmra.mxu0 %v210
    %v3555 = vpop.f32.mrf.mxu0
    %v3556 = vadd.f32 0.0, %v3555
    %v3557 = vpop.f32.mrf.mxu0
    %v3558 = vadd.f32 0.0, %v3557
    %3559 = vmatmul.bf16.gmra.mxu0 %v211
    %v3560 = vpop.f32.mrf.mxu0
    %v3561 = vadd.f32 0.0, %v3560
    %v3562 = vpop.f32.mrf.mxu0
    %v3563 = vadd.f32 0.0, %v3562
    %3564 = vmatmul.bf16.gmra.mxu0 %v212
    %v3565 = vpop.f32.mrf.mxu0
    %v3566 = vadd.f32 0.0, %v3565
    %v3567 = vpop.f32.mrf.mxu0
    %v3568 = vadd.f32 0.0, %v3567
    %3569 = vdwg.mxu0
    %v3570 = vmul.f32 %v3531, 2.0
    %v3571 = vmul.f32 %v3533, 2.0
    %v3572 = vmul.f32 %v3536, 2.0
    %v3573 = vmul.f32 %v3538, 2.0
    %v3574 = vmul.f32 %v3541, 2.0
    %v3575 = vmul.f32 %v3543, 2.0
    %v3576 = vmul.f32 %v3546, 2.0
    %v3577 = vmul.f32 %v3548, 2.0
    %v3578 = vmul.f32 %v3551, 2.0
    %v3579 = vmul.f32 %v3553, 2.0
    %v3580 = vmul.f32 %v3556, 2.0
    %v3581 = vmul.f32 %v3558, 2.0
    %v3582 = vmul.f32 %v3561, 2.0
    %v3583 = vmul.f32 %v3563, 2.0
    %v3584 = vmul.f32 %v3566, 2.0
    %v3585 = vmul.f32 %v3568, 2.0
    %v3586 = vunpack.c.l.bf16 %v3092
    %v3587 = vunpack.c.l.bf16 %v3093
    %v3588 = vunpack.c.l.bf16 %v3094
    %v3589 = vunpack.c.l.bf16 %v3095
    %v3590 = vunpack.c.l.bf16 %v3096
    %v3591 = vunpack.c.l.bf16 %v3097
    %v3592 = vunpack.c.l.bf16 %v3098
    %v3593 = vunpack.c.l.bf16 %v3099
    %v3594 = vunpack.c.l.bf16 %v3100
    %v3595 = vunpack.c.l.bf16 %v3101
    %v3596 = vunpack.c.l.bf16 %v3102
    %v3597 = vunpack.c.l.bf16 %v3103
    %v3598 = vunpack.c.l.bf16 %v3104
    %v3599 = vunpack.c.l.bf16 %v3105
    %v3600 = vunpack.c.l.bf16 %v3106
    %v3601 = vunpack.c.l.bf16 %v3107
    %v3602 = vsub.f32 %v3570, %v3586
    %v3603 = vsub.f32 %v3571, %v3587
    %v3604 = vsub.f32 %v3572, %v3588
    %v3605 = vsub.f32 %v3573, %v3589
    %v3606 = vsub.f32 %v3574, %v3590
    %v3607 = vsub.f32 %v3575, %v3591
    %v3608 = vsub.f32 %v3576, %v3592
    %v3609 = vsub.f32 %v3577, %v3593
    %v3610 = vsub.f32 %v3578, %v3594
    %v3611 = vsub.f32 %v3579, %v3595
    %v3612 = vsub.f32 %v3580, %v3596
    %v3613 = vsub.f32 %v3581, %v3597
    %v3614 = vsub.f32 %v3582, %v3598
    %v3615 = vsub.f32 %v3583, %v3599
    %v3616 = vsub.f32 %v3584, %v3600
    %v3617 = vsub.f32 %v3585, %v3601
    %v3618 = vpack.c.bf16 %v3603, %v3602
    %v3619 = vpack.c.bf16 %v3605, %v3604
    %v3620 = vpack.c.bf16 %v3607, %v3606
    %v3621 = vpack.c.bf16 %v3609, %v3608
    %v3622 = vpack.c.bf16 %v3611, %v3610
    %v3623 = vpack.c.bf16 %v3613, %v3612
    %v3624 = vpack.c.bf16 %v3615, %v3614
    %v3625 = vpack.c.bf16 %v3617, %v3616
    %s3626 = scalar_lea.vmem [#allocation10], 256
    %v3627 = vld [vmem:[%s3626] sm:$0xf]
    %v3628 = vld [vmem:[%s3626 + $0x4] sm:$0xf]
    %v3629 = vld [vmem:[%s3626 + $0x8] sm:$0xf]
    %v3630 = vld [vmem:[%s3626 + $0xc] sm:$0xf]
    %v3631 = vld [vmem:[%s3626 + $0x10] sm:$0xf]
    %v3632 = vld [vmem:[%s3626 + $0x14] sm:$0xf]
    %v3633 = vld [vmem:[%s3626 + $0x18] sm:$0xf]
    %v3634 = vld [vmem:[%s3626 + $0x1c] sm:$0xf]
    %v3635 = vld [vmem:[%s3626 + $0x20] sm:$0xf]
    %v3636 = vld [vmem:[%s3626 + $0x24] sm:$0xf]
    %v3637 = vld [vmem:[%s3626 + $0x28] sm:$0xf]
    %v3638 = vld [vmem:[%s3626 + $0x2c] sm:$0xf]
    %v3639 = vld [vmem:[%s3626 + $0x30] sm:$0xf]
    %v3640 = vld [vmem:[%s3626 + $0x34] sm:$0xf]
    %v3641 = vld [vmem:[%s3626 + $0x38] sm:$0xf]
    %v3642 = vld [vmem:[%s3626 + $0x3c] sm:$0xf]
    %v3659 = vunpack.c.l.b16 %v3627
    %v3660 = vunpack.c.l.b16 %v3628
    %v3661 = vunpack.c.l.b16 %v3629
    %v3662 = vunpack.c.l.b16 %v3630
    %v3663 = vunpack.c.l.b16 %v3631
    %v3664 = vunpack.c.l.b16 %v3632
    %v3665 = vunpack.c.l.b16 %v3633
    %v3666 = vunpack.c.l.b16 %v3634
    %v3667 = vunpack.c.l.b16 %v3635
    %v3668 = vunpack.c.l.b16 %v3636
    %v3669 = vunpack.c.l.b16 %v3637
    %v3670 = vunpack.c.l.b16 %v3638
    %v3671 = vunpack.c.l.b16 %v3639
    %v3672 = vunpack.c.l.b16 %v3640
    %v3673 = vunpack.c.l.b16 %v3641
    %v3674 = vunpack.c.l.b16 %v3642
    %v3675 = vpack.c.b16 %v3660, %v3659
    %v3676 = vpack.c.b16 %v3662, %v3661
    %v3677 = vpack.c.b16 %v3664, %v3663
    %v3678 = vpack.c.b16 %v3666, %v3665
    %v3679 = vpack.c.b16 %v3668, %v3667
    %v3680 = vpack.c.b16 %v3670, %v3669
    %v3681 = vpack.c.b16 %v3672, %v3671
    %v3682 = vpack.c.b16 %v3674, %v3673
    %3691 = vmatpush.bf16.msra.mxu0 %v3682
    %3692 = vmatpush.bf16.msra.mxu0 %v3681
    %3693 = vmatpush.bf16.msra.mxu0 %v3680
    %3694 = vmatpush.bf16.msra.mxu0 %v3679
    %3695 = vmatpush.bf16.msra.mxu0 %v3678
    %3696 = vmatpush.bf16.msra.mxu0 %v3677
    %3697 = vmatpush.bf16.msra.mxu0 %v3676
    %3698 = vmatpush.bf16.msra.mxu0 %v3675
    %3699 = vmatmul.bf16.gmra.mxu0 %v3618
    %v3700 = vpop.f32.mrf.mxu0
    %v3701 = vadd.f32 0.0, %v3700
    %v3702 = vpop.f32.mrf.mxu0
    %v3703 = vadd.f32 0.0, %v3702
    %3704 = vmatmul.bf16.gmra.mxu0 %v3619
    %v3705 = vpop.f32.mrf.mxu0
    %v3706 = vadd.f32 0.0, %v3705
    %v3707 = vpop.f32.mrf.mxu0
    %v3708 = vadd.f32 0.0, %v3707
    %3709 = vmatmul.bf16.gmra.mxu0 %v3620
    %v3710 = vpop.f32.mrf.mxu0
    %v3711 = vadd.f32 0.0, %v3710
    %v3712 = vpop.f32.mrf.mxu0
    %v3713 = vadd.f32 0.0, %v3712
    %3714 = vmatmul.bf16.gmra.mxu0 %v3621
    %v3715 = vpop.f32.mrf.mxu0
    %v3716 = vadd.f32 0.0, %v3715
    %v3717 = vpop.f32.mrf.mxu0
    %v3718 = vadd.f32 0.0, %v3717
    %3719 = vmatmul.bf16.gmra.mxu0 %v3622
    %v3720 = vpop.f32.mrf.mxu0
    %v3721 = vadd.f32 0.0, %v3720
    %v3722 = vpop.f32.mrf.mxu0
    %v3723 = vadd.f32 0.0, %v3722
    %3724 = vmatmul.bf16.gmra.mxu0 %v3623
    %v3725 = vpop.f32.mrf.mxu0
    %v3726 = vadd.f32 0.0, %v3725
    %v3727 = vpop.f32.mrf.mxu0
    %v3728 = vadd.f32 0.0, %v3727
    %3729 = vmatmul.bf16.gmra.mxu0 %v3624
    %v3730 = vpop.f32.mrf.mxu0
    %v3731 = vadd.f32 0.0, %v3730
    %v3732 = vpop.f32.mrf.mxu0
    %v3733 = vadd.f32 0.0, %v3732
    %3734 = vmatmul.bf16.gmra.mxu0 %v3625
    %v3735 = vpop.f32.mrf.mxu0
    %v3736 = vadd.f32 0.0, %v3735
    %v3737 = vpop.f32.mrf.mxu0
    %v3738 = vadd.f32 0.0, %v3737
    %3739 = vdwg.mxu0
    %v3740 = vadd.f32 %v3505, %v3701
    %v3741 = vadd.f32 %v3506, %v3703
    %v3742 = vadd.f32 %v3507, %v3706
    %v3743 = vadd.f32 %v3508, %v3708
    %v3744 = vadd.f32 %v3509, %v3711
    %v3745 = vadd.f32 %v3510, %v3713
    %v3746 = vadd.f32 %v3511, %v3716
    %v3747 = vadd.f32 %v3512, %v3718
    %v3748 = vadd.f32 %v3513, %v3721
    %v3749 = vadd.f32 %v3514, %v3723
    %v3750 = vadd.f32 %v3515, %v3726
    %v3751 = vadd.f32 %v3516, %v3728
    %v3752 = vadd.f32 %v3517, %v3731
    %v3753 = vadd.f32 %v3518, %v3733
    %v3754 = vadd.f32 %v3519, %v3736
    %v3755 = vadd.f32 %v3520, %v3738
    %v3756 = vld [vmem:[%s7] sm:$0x1]
    %v3758 = vperm.slane %v3756, 0
    %v3760 = vadd.f32 %v3740, %v3758
    %v3761 = vadd.f32 %v3741, %v3758
    %v3762 = vadd.f32 %v3742, %v3758
    %v3763 = vadd.f32 %v3743, %v3758
    %v3764 = vadd.f32 %v3744, %v3758
    %v3765 = vadd.f32 %v3745, %v3758
    %v3766 = vadd.f32 %v3746, %v3758
    %v3767 = vadd.f32 %v3747, %v3758
    %v3768 = vadd.f32 %v3748, %v3758
    %v3769 = vadd.f32 %v3749, %v3758
    %v3770 = vadd.f32 %v3750, %v3758
    %v3771 = vadd.f32 %v3751, %v3758
    %v3772 = vadd.f32 %v3752, %v3758
    %v3773 = vadd.f32 %v3753, %v3758
    %v3774 = vadd.f32 %v3754, %v3758
    %v3775 = vadd.f32 %v3755, %v3758
    %v3776 = vpack.c.bf16 %v3761, %v3760
    %v3777 = vpack.c.bf16 %v3763, %v3762
    %v3778 = vpack.c.bf16 %v3765, %v3764
    %v3779 = vpack.c.bf16 %v3767, %v3766
    %v3780 = vpack.c.bf16 %v3769, %v3768
    %v3781 = vpack.c.bf16 %v3771, %v3770
    %v3782 = vpack.c.bf16 %v3773, %v3772
    %v3783 = vpack.c.bf16 %v3775, %v3774
    %v3784 = vld [vmem:[#allocation11] sm:$0xff]
    %v3785 = vunpack.c.l.bf16 %v3776
    %v3786 = vunpack.c.h.bf16 %v3776
    %v3787 = vunpack.c.l.bf16 %v3777
    %v3788 = vunpack.c.h.bf16 %v3777
    %v3789 = vunpack.c.l.bf16 %v3778
    %v3790 = vunpack.c.h.bf16 %v3778
    %v3791 = vunpack.c.l.bf16 %v3779
    %v3792 = vunpack.c.h.bf16 %v3779
    %v3793 = vunpack.c.l.bf16 %v3780
    %v3794 = vunpack.c.h.bf16 %v3780
    %v3795 = vunpack.c.l.bf16 %v3781
    %v3796 = vunpack.c.h.bf16 %v3781
    %v3797 = vunpack.c.l.bf16 %v3782
    %v3798 = vunpack.c.h.bf16 %v3782
    %v3799 = vunpack.c.l.bf16 %v3783
    %v3800 = vunpack.c.h.bf16 %v3783
    %3801 = vmatpush.msra.mxu0 %v3800
    %3802 = vmatpush.msra.mxu0 %v3799
    %3803 = vmatpush.msra.mxu0 %v3798
    %3804 = vmatpush.msra.mxu0 %v3797
    %3805 = vmatpush.msra.mxu0 %v3796
    %3806 = vmatpush.msra.mxu0 %v3795
    %3807 = vmatpush.msra.mxu0 %v3794
    %3808 = vmatpush.msra.mxu0 %v3793
    %3809 = vmatpush.msra.mxu0 %v3792
    %3810 = vmatpush.msra.mxu0 %v3791
    %3811 = vmatpush.msra.mxu0 %v3790
    %3812 = vmatpush.msra.mxu0 %v3789
    %3813 = vmatpush.msra.mxu0 %v3788
    %3814 = vmatpush.msra.mxu0 %v3787
    %3815 = vmatpush.msra.mxu0 %v3786
    %3816 = vmatpush.msra.mxu0 %v3785
    %3817 = vmatmul.f32.gmra.mxu0 %v3784
    %v3818 = vpop.f32.mrf.mxu0
    %v3819 = vadd.f32 0.0, %v3818
    %3820 = vdwg.mxu0
    %v3821 = vlaneseq
    %v3822 = vand.u32 %v3821, 127
    %vm3823 = vcmp.lt.s32.totalorder %v3822, 8
    %v3824 = vsel %vm3823, %v3819, -1e+30
    %3825 = vmax.xlane.f32.xlu0 %v3824
    %v3826 = vpop.xlane.xlu0 %3825
    %v3827 = vsub.f32 %v3824, %v3826
    %v3828 = vmul.f32 %v3827, 1.442695
    %v3829 = vpow.pop %v3828
    %v3830 = vsel %vm3823, %v3829, 0.0
    %3831 = vadd.xlane.f32.xlu0 %v3830
    %v3832 = vpop.xlane.xlu0 %3831
    %v3833 = vlog2.pop %v3832
    %v3834 = vmul.f32 %v3833, 0.6931472
    %v3835 = vsub.f32 %v3827, %v3834
    %3836 = vst [vmem:[#allocation13] sm:$0xff] %v3835
    // Predicated region
    $region62: #{tpu_custom_call.1} parent=1 // pred_check
      _
    $region63: #{tpu_custom_call.1} parent=1 // pred_check_branch
      %3838 = sbr.rel (0) target = $region65
    $region64: #{tpu_custom_call.1} parent=1 // pred_region
      %3840 = vsyncadd [#allocation4], 0
      %s3842 = sshll.u32 [#allocation13], 4
      %s3843 = int_to_ptr.vmem [resolvable:$true] %s3842
      %s3844 = sshll.u32 %s9, 4
      %s3845 = int_to_ptr.hbm [resolvable:$true] %s3844
      %3847 = dma.vmem_to_hbm [thread:$0]  %s3843, 128, %s3845, [#allocation4]
    $region65: #{tpu_custom_call.1} parent=1 // pred_fallthru
      _
    // Predicated region
    $region66: #{tpu_custom_call.1} parent=1 // pred_check
      _
    $region67: #{tpu_custom_call.1} parent=1 // pred_check_branch
      %3849 = sbr.rel (0) target = $region69
    $region68: #{tpu_custom_call.1} parent=1 // pred_region
      %3851 = dma.done [#allocation4], 128
    $region69: #{tpu_custom_call.1} parent=1 // pred_fallthru
      _
    %3852 = vsyncpa [#allocation3], 1
    %3853 = vsyncpa [#allocation6], 1
    %3854 = vsyncpa [#allocation9], 1
    %3855 = vsyncpa [#allocation12], 1
    %3856 = vsyncpa [#allocation4], 1

</llo_original>
